<compile_context>
chip_gen: v5e
topology: v5e:2x2
jax: 0.10.0
libtpu: 0.0.40
codegen_flags: <defaults>
</compile_context>

<pallas_src>
import math

import jax
import jax.numpy as jnp
from jax import lax
from jax.experimental import pallas as pl
from jax.experimental.pallas import tpu as pltpu

FREQ_EMB_SIZE = 256      # frequency_embedding_size
HALF = FREQ_EMB_SIZE // 2
HIDDEN_SIZE = 32         # hidden_size
MAX_PERIOD = 10000.0
MAX_TN = 512             # max timesteps (lanes) per grid step; sweep 256-1024


def timestep_embedder_kernel(t_ref, freqs_ref, w1t_ref, b1_ref, w2_ref, b2_ref,
                             out_ref):
    """Fused sinusoidal embedding -> Linear -> SiLU -> Linear.

    Heavy work (sin/cos/SiLU, first matmul) is done with the batch on the
    lane axis (lane-dense); the last dot flips back to batch-major output.
    """
    t = t_ref[...]           # (1, TN)   f32, timesteps on lanes
    freqs = freqs_ref[...]   # (HALF, 1) f32

    # args[k, n] = t[n] * freqs[k]   -> (HALF, TN), lane-dense
    args = freqs * t

    # Sublane-stack cos/sin -> single K=256 MXU push (native depth on v6e/v7x;
    # on v5e it is simply two 128-deep passes, same work as split-K).
    emb = jnp.concatenate([jnp.cos(args), jnp.sin(args)], axis=0)  # (FREQ, TN)

    # h = W1^T @ [cos; sin] + b1    -> (HIDDEN, TN).  f32 operands throughout:
    # MXU is idle here, bf16 packs were VALU filler on the saturated slot.
    h = jnp.dot(w1t_ref[...], emb, preferred_element_type=jnp.float32)
    h = h + b1_ref[...]                       # (HIDDEN, 1) broadcast over lanes

    h = h * jax.nn.sigmoid(h)                 # SiLU in f32

    # out[n, j] = sum_i h[i, n] * w2[i, j]  == (h^T @ w2)  -> (TN, HIDDEN).
    # Contracting h's dim 0 lets the kernel emit the batch-major output block
    # directly, removing the wrapper-side transpose pass entirely.
    out = lax.dot_general(h, w2_ref[...], (((0,), (0,)), ((), ())),
                          preferred_element_type=jnp.float32)
    out = out + b2_ref[...]                   # (1, HIDDEN) broadcast over rows

    out_ref[...] = out.astype(out_ref.dtype)  # (TN, HIDDEN) block


def prepare_timestep_embedder_params(w1, b1, w2, b2):
    """One-time preprocessing (call at module init, not per forward).

    w1: (FREQ_EMB_SIZE, HIDDEN), w2: (HIDDEN, HIDDEN), both stored as
    (in_features, out_features) -- the transpose of nn.Linear.weight storage.
    """
    w1t = jnp.asarray(w1, jnp.float32).T                       # (HIDDEN, FREQ)
    b1c = jnp.asarray(b1, jnp.float32).reshape(HIDDEN_SIZE, 1)  # column
    w2c = jnp.asarray(w2, jnp.float32)                          # (HIDDEN, HIDDEN)
    b2r = jnp.asarray(b2, jnp.float32).reshape(1, HIDDEN_SIZE)  # row
    freqs = jnp.exp(
        -math.log(MAX_PERIOD) * jnp.arange(HALF, dtype=jnp.float32) / HALF
    ).reshape(HALF, 1)                                          # (HALF, 1)
    return w1t, b1c, w2c, b2r, freqs


def _pick_tn(n):
    """Largest lane tile <= MAX_TN that still leaves >=2 grid steps whenever
    the batch spans >=2 lane blocks (v7x: both TensorCores stay busy)."""
    blocks = -(-n // 128)                      # ceil(n / 128)
    tn_blocks = min(MAX_TN // 128, max(1, blocks // 2))
    return tn_blocks * 128


def timestep_embedder(t, params):
    """t: (N,) timesteps (fractional OK).  Returns (N, HIDDEN_SIZE) float32."""
    w1t, b1c, w2c, b2r, freqs = params
    n = t.shape[0]
    tn = _pick_tn(n)
    n_pad = -(-n // tn) * tn

    # Timesteps on the lane axis, zero-padded to a multiple of TN.
    t_row = jnp.pad(t.astype(jnp.float32).reshape(1, n),
                    ((0, 0), (0, n_pad - n)))

    const = lambda shape: pl.BlockSpec(shape, lambda i: (0, 0))

    out = pl.pallas_call(
        timestep_embedder_kernel,
        out_shape=jax.ShapeDtypeStruct((n_pad, HIDDEN_SIZE), jnp.float32),
        grid=(n_pad // tn,),
        in_specs=[
            pl.BlockSpec((1, tn), lambda i: (0, i)),     # t (batch tiled)
            const((HALF, 1)),                            # freqs table
            const((HIDDEN_SIZE, FREQ_EMB_SIZE)),         # w1^T (fused cos|sin)
            const((HIDDEN_SIZE, 1)),                     # b1 (column)
            const((HIDDEN_SIZE, HIDDEN_SIZE)),           # w2 (in, out)
            const((1, HIDDEN_SIZE)),                     # b2 (row)
        ],
        out_specs=pl.BlockSpec((tn, HIDDEN_SIZE), lambda i: (i, 0)),
        compiler_params=pltpu.CompilerParams(
            dimension_semantics=("parallel",)),
    )(t_row, freqs, w1t, b1c, w2c, b2r)

    return out[:n]   # drop padding only; no transpose pass


def reference(t, w1, b1, w2, b2):
    """Pure-JAX f32 reference matching the PyTorch forward."""
    freqs = jnp.exp(
        -math.log(MAX_PERIOD) * jnp.arange(HALF, dtype=jnp.float32) / HALF
    )
    args = t[:, None].astype(jnp.float32) * freqs[None]
    emb = jnp.concatenate([jnp.cos(args), jnp.sin(args)], axis=-1)
    h = emb @ w1 + b1
    h = h * jax.nn.sigmoid(h)
    return h @ w2 + b2


if __name__ == "__main__":
    key = jax.random.PRNGKey(0)
    k_t, k_w1, k_b1, k_w2, k_b2 = jax.random.split(key, 5)

    # Synthetic parameters in (in_features, out_features) layout (same math as
    # nn.Linear; a caller holding raw PyTorch .weight must transpose first).
    w1 = jax.random.normal(k_w1, (FREQ_EMB_SIZE, HIDDEN_SIZE), jnp.float32) * 0.02
    b1 = jax.random.normal(k_b1, (HIDDEN_SIZE,), jnp.float32) * 0.02
    w2 = jax.random.normal(k_w2, (HIDDEN_SIZE, HIDDEN_SIZE), jnp.float32) * 0.02
    b2 = jax.random.normal(k_b2, (HIDDEN_SIZE,), jnp.float32) * 0.02

    params = prepare_timestep_embedder_params(w1, b1, w2, b2)

    # Small batch (module spec), a padded multi-step grid at TN=128, and a
    # larger batch exercising the TN=512 tile with >=2 parallel grid steps.
    for n in (8, 300, 1500):
        t = jax.random.uniform(k_t, (n,), jnp.float32, 0.0, 1000.0)
        out = jax.block_until_ready(timestep_embedder(t, params))
        ref = reference(t, w1, b1, w2, b2)
        assert out.shape == (n, HIDDEN_SIZE)
        # All-f32 matmul path => much tighter than the old bf16 tolerance.
        assert jnp.allclose(out, ref, atol=1e-3, rtol=1e-3), f"mismatch at N={n}"

    print("KERNEL_OK")
</pallas_src>

<mosaic_0001>
module attributes {stable_mosaic.version = 11 : i64} {
  func.func @timestep_embedder_kernel(%arg0: i32, %arg1: memref<1x128xf32, #tpu.memory_space<vmem>>, %arg2: memref<128x1xf32, #tpu.memory_space<vmem>>, %arg3: memref<32x256xf32, #tpu.memory_space<vmem>>, %arg4: memref<32x1xf32, #tpu.memory_space<vmem>>, %arg5: memref<32x32xf32, #tpu.memory_space<vmem>>, %arg6: memref<1x32xf32, #tpu.memory_space<vmem>>, %arg7: memref<128x32xf32, #tpu.memory_space<vmem>>) attributes {dimension_semantics = [#tpu.dimension_semantics<parallel>], iteration_bounds = array<i64: 1>, scalar_prefetch = 0 : i64, scratch_operands = 0 : i64, tpu.core_type = #tpu.core_type<tc>, window_params = [{transform_indices = @transform_0, window_bounds = array<i64: 1, 128>}, {pipeline_mode = #tpu.pipeline_mode<synchronous>, transform_indices = @transform_1, window_bounds = array<i64: 128, 1>}, {pipeline_mode = #tpu.pipeline_mode<synchronous>, transform_indices = @transform_2, window_bounds = array<i64: 32, 256>}, {pipeline_mode = #tpu.pipeline_mode<synchronous>, transform_indices = @transform_3, window_bounds = array<i64: 32, 1>}, {pipeline_mode = #tpu.pipeline_mode<synchronous>, transform_indices = @transform_4, window_bounds = array<i64: 32, 32>}, {pipeline_mode = #tpu.pipeline_mode<synchronous>, transform_indices = @transform_5, window_bounds = array<i64: 1, 32>}, {transform_indices = @transform_6, window_bounds = array<i64: 128, 32>}]} {
    %c0 = arith.constant 0 : index
    %c0_0 = arith.constant 0 : index
    %0 = vector.load %arg1[%c0, %c0_0] : memref<1x128xf32, #tpu.memory_space<vmem>>, vector<1x128xf32>
    %c0_1 = arith.constant 0 : index
    %c0_2 = arith.constant 0 : index
    %1 = vector.load %arg2[%c0_1, %c0_2] : memref<128x1xf32, #tpu.memory_space<vmem>>, vector<128x1xf32>
    %2 = vector.broadcast %1 : vector<128x1xf32> to vector<128x128xf32>
    %3 = vector.broadcast %0 : vector<1x128xf32> to vector<128x128xf32>
    %4 = arith.mulf %2, %3 : vector<128x128xf32>
    %5 = math.cos %4 : vector<128x128xf32>
    %6 = math.sin %4 : vector<128x128xf32>
    %7 = tpu.concatenate %5, %6 in 0 : vector<128x128xf32>, vector<128x128xf32> -> vector<256x128xf32>
    %c0_3 = arith.constant 0 : index
    %c0_4 = arith.constant 0 : index
    %8 = vector.load %arg3[%c0_3, %c0_4] : memref<32x256xf32, #tpu.memory_space<vmem>>, vector<32x256xf32>
    %cst = arith.constant dense<0.000000e+00> : vector<32x128xf32>
    %9 = tpu.matmul %8, %7, %cst {dimension_numbers = #tpu.dot_dimension_numbers<[1], [0], [0], [1], [0, 0, 1, 1], [], []>} : vector<32x256xf32>, vector<256x128xf32>, vector<32x128xf32> -> vector<32x128xf32>
    %c0_5 = arith.constant 0 : index
    %c0_6 = arith.constant 0 : index
    %10 = vector.load %arg4[%c0_5, %c0_6] : memref<32x1xf32, #tpu.memory_space<vmem>>, vector<32x1xf32>
    %11 = vector.broadcast %10 : vector<32x1xf32> to vector<32x128xf32>
    %12 = arith.addf %9, %11 : vector<32x128xf32>
    %13 = arith.negf %12 : vector<32x128xf32>
    %14 = math.exp %13 : vector<32x128xf32>
    %cst_7 = arith.constant 1.000000e+00 : f32
    %15 = vector.broadcast %cst_7 : f32 to vector<32x128xf32>
    %16 = arith.addf %15, %14 : vector<32x128xf32>
    %17 = arith.divf %15, %16 : vector<32x128xf32>
    %18 = arith.mulf %12, %17 : vector<32x128xf32>
    %c0_8 = arith.constant 0 : index
    %c0_9 = arith.constant 0 : index
    %19 = vector.load %arg5[%c0_8, %c0_9] : memref<32x32xf32, #tpu.memory_space<vmem>>, vector<32x32xf32>
    %cst_10 = arith.constant dense<0.000000e+00> : vector<128x32xf32>
    %20 = tpu.matmul %18, %19, %cst_10 {dimension_numbers = #tpu.dot_dimension_numbers<[0], [0], [1], [1], [0, 1, 1, 1], [], []>} : vector<32x128xf32>, vector<32x32xf32>, vector<128x32xf32> -> vector<128x32xf32>
    %c0_11 = arith.constant 0 : index
    %c0_12 = arith.constant 0 : index
    %21 = vector.load %arg6[%c0_11, %c0_12] : memref<1x32xf32, #tpu.memory_space<vmem>>, vector<1x32xf32>
    %22 = vector.broadcast %21 : vector<1x32xf32> to vector<128x32xf32>
    %23 = arith.addf %20, %22 : vector<128x32xf32>
    %c0_13 = arith.constant 0 : index
    %c0_14 = arith.constant 0 : index
    %24 = vector.load %arg7[%c0_13, %c0_14] : memref<128x32xf32, #tpu.memory_space<vmem>>, vector<128x32xf32>
    tpu.vector_store %arg7[%c0_13, %c0_14], %23 {strides = array<i32>} : memref<128x32xf32, #tpu.memory_space<vmem>>, vector<128x32xf32>,
    return
  }
  func.func @transform_0(%arg0: i32) -> (i32, i32) {
    %c0_i32 = arith.constant 0 : i32
    %c0_i32_0 = arith.constant 0 : i32
    return %c0_i32, %arg0 : i32, i32
  }
  func.func @transform_1(%arg0: i32) -> (i32, i32) {
    %c0_i32 = arith.constant 0 : i32
    %c0_i32_0 = arith.constant 0 : i32
    %c0_i32_1 = arith.constant 0 : i32
    return %c0_i32, %c0_i32_0 : i32, i32
  }
  func.func @transform_2(%arg0: i32) -> (i32, i32) {
    %c0_i32 = arith.constant 0 : i32
    %c0_i32_0 = arith.constant 0 : i32
    %c0_i32_1 = arith.constant 0 : i32
    return %c0_i32, %c0_i32_0 : i32, i32
  }
  func.func @transform_3(%arg0: i32) -> (i32, i32) {
    %c0_i32 = arith.constant 0 : i32
    %c0_i32_0 = arith.constant 0 : i32
    %c0_i32_1 = arith.constant 0 : i32
    return %c0_i32, %c0_i32_0 : i32, i32
  }
  func.func @transform_4(%arg0: i32) -> (i32, i32) {
    %c0_i32 = arith.constant 0 : i32
    %c0_i32_0 = arith.constant 0 : i32
    %c0_i32_1 = arith.constant 0 : i32
    return %c0_i32, %c0_i32_0 : i32, i32
  }
  func.func @transform_5(%arg0: i32) -> (i32, i32) {
    %c0_i32 = arith.constant 0 : i32
    %c0_i32_0 = arith.constant 0 : i32
    %c0_i32_1 = arith.constant 0 : i32
    return %c0_i32, %c0_i32_0 : i32, i32
  }
  func.func @transform_6(%arg0: i32) -> (i32, i32) {
    %c0_i32 = arith.constant 0 : i32
    %c0_i32_0 = arith.constant 0 : i32
    return %arg0, %c0_i32 : i32, i32
  }
}

</mosaic_0001>

<llo_original>
// kernel: tpu_custom_call.1
$region0: #{tpu_custom_call.1}
  #allocation0 [shape = 'u32[]', space=smem, size = 0x4, offset = 0x4, fixed_abs, tag = 'smem constant byte address 0x4 - core index']
  #allocation1 [shape = 'u32[72,128]{1,0:T(1,128)}', space=vmem, size = 0x9000, scoped, tag = 'internal scratch']
  %s0 = inlined_call_operand.vmem [shape: f32[1,128], index: 0, kind: input, shape index: {}]
  %s1 = inlined_call_operand.vmem [shape: f32[128,1], index: 1, kind: input, shape index: {}]
  %s2 = inlined_call_operand.vmem [shape: f32[32,256], index: 2, kind: input, shape index: {}]
  %s3 = inlined_call_operand.vmem [shape: f32[32,1], index: 3, kind: input, shape index: {}]
  %s4 = inlined_call_operand.vmem [shape: f32[32,32], index: 4, kind: input, shape index: {}]
  %s5 = inlined_call_operand.vmem [shape: f32[1,32], index: 5, kind: input, shape index: {}]
  %s6 = inlined_call_operand.vmem [shape: f32[128,32], index: 6, kind: output, shape index: {}]
  %s7 = sld [smem:[#allocation0]]
  $region34: #{tpu_custom_call.1} parent=0
    _
  %s9 = ssub.s32 1, %s7
  %s10 = scalar_select 0, %s9, %s7
  // Predicated region
  $region2: #{tpu_custom_call.1} parent=0 // pred_check
    _
  $region3: #{tpu_custom_call.1} parent=0 // pred_check_branch
    %12 = sbr.rel (0) target = $region5
  $region4: #{tpu_custom_call.1} parent=0 // pred_region
    _
  $region5: #{tpu_custom_call.1} parent=0 // pred_fallthru
    _
  // Predicated region
  $region6: #{tpu_custom_call.1} parent=0 // pred_check
    _
  $region7: #{tpu_custom_call.1} parent=0 // pred_check_branch
    %14 = sbr.rel (0) target = $region9
  $region8: #{tpu_custom_call.1} parent=0 // pred_region
    _
  $region9: #{tpu_custom_call.1} parent=0 // pred_fallthru
    _
  // Predicated region
  $region10: #{tpu_custom_call.1} parent=0 // pred_check
    _
  $region11: #{tpu_custom_call.1} parent=0 // pred_check_branch
    %16 = sbr.rel (0) target = $region13
  $region12: #{tpu_custom_call.1} parent=0 // pred_region
    _
  $region13: #{tpu_custom_call.1} parent=0 // pred_fallthru
    _
  // Predicated region
  $region14: #{tpu_custom_call.1} parent=0 // pred_check
    _
  $region15: #{tpu_custom_call.1} parent=0 // pred_check_branch
    %18 = sbr.rel (0) target = $region17
  $region16: #{tpu_custom_call.1} parent=0 // pred_region
    _
  $region17: #{tpu_custom_call.1} parent=0 // pred_fallthru
    _
  // Predicated region
  $region18: #{tpu_custom_call.1} parent=0 // pred_check
    _
  $region19: #{tpu_custom_call.1} parent=0 // pred_check_branch
    %20 = sbr.rel (0) target = $region21
  $region20: #{tpu_custom_call.1} parent=0 // pred_region
    _
  $region21: #{tpu_custom_call.1} parent=0 // pred_fallthru
    _
  // Predicated region
  $region22: #{tpu_custom_call.1} parent=0 // pred_check
    _
  $region23: #{tpu_custom_call.1} parent=0 // pred_check_branch
    %22 = sbr.rel (0) target = $region25
  $region24: #{tpu_custom_call.1} parent=0 // pred_region
    _
  $region25: #{tpu_custom_call.1} parent=0 // pred_fallthru
    _
  %v23 = vld [vmem:[%s0] sm:$0x1]
  %v24 = vld [vmem:[%s1] sm:$0xff]
  %v25 = vld [vmem:[%s1 + $0x8] sm:$0xff]
  %v26 = vld [vmem:[%s1 + $0x10] sm:$0xff]
  %v27 = vld [vmem:[%s1 + $0x18] sm:$0xff]
  %v28 = vld [vmem:[%s1 + $0x20] sm:$0xff]
  %v29 = vld [vmem:[%s1 + $0x28] sm:$0xff]
  %v30 = vld [vmem:[%s1 + $0x30] sm:$0xff]
  %v31 = vld [vmem:[%s1 + $0x38] sm:$0xff]
  %v32 = vld [vmem:[%s1 + $0x40] sm:$0xff]
  %v33 = vld [vmem:[%s1 + $0x48] sm:$0xff]
  %v34 = vld [vmem:[%s1 + $0x50] sm:$0xff]
  %v35 = vld [vmem:[%s1 + $0x58] sm:$0xff]
  %v36 = vld [vmem:[%s1 + $0x60] sm:$0xff]
  %v37 = vld [vmem:[%s1 + $0x68] sm:$0xff]
  %v38 = vld [vmem:[%s1 + $0x70] sm:$0xff]
  %v39 = vld [vmem:[%s1 + $0x78] sm:$0xff]
  %41 = vset.pattern.permute.xlu0 0
  %42 = vperm.xlu0 %41, %v24
  %v43 = vpop.permute.xlu0 %42
  %46 = vset.pattern.permute.xlu0 0
  %47 = vperm.xlu0 %46, %v25
  %v48 = vpop.permute.xlu0 %47
  %51 = vset.pattern.permute.xlu0 0
  %52 = vperm.xlu0 %51, %v26
  %v53 = vpop.permute.xlu0 %52
  %56 = vset.pattern.permute.xlu0 0
  %57 = vperm.xlu0 %56, %v27
  %v58 = vpop.permute.xlu0 %57
  %61 = vset.pattern.permute.xlu0 0
  %62 = vperm.xlu0 %61, %v28
  %v63 = vpop.permute.xlu0 %62
  %66 = vset.pattern.permute.xlu0 0
  %67 = vperm.xlu0 %66, %v29
  %v68 = vpop.permute.xlu0 %67
  %71 = vset.pattern.permute.xlu0 0
  %72 = vperm.xlu0 %71, %v30
  %v73 = vpop.permute.xlu0 %72
  %76 = vset.pattern.permute.xlu0 0
  %77 = vperm.xlu0 %76, %v31
  %v78 = vpop.permute.xlu0 %77
  %81 = vset.pattern.permute.xlu0 0
  %82 = vperm.xlu0 %81, %v32
  %v83 = vpop.permute.xlu0 %82
  %86 = vset.pattern.permute.xlu0 0
  %87 = vperm.xlu0 %86, %v33
  %v88 = vpop.permute.xlu0 %87
  %91 = vset.pattern.permute.xlu0 0
  %92 = vperm.xlu0 %91, %v34
  %v93 = vpop.permute.xlu0 %92
  %96 = vset.pattern.permute.xlu0 0
  %97 = vperm.xlu0 %96, %v35
  %v98 = vpop.permute.xlu0 %97
  %101 = vset.pattern.permute.xlu0 0
  %102 = vperm.xlu0 %101, %v36
  %v103 = vpop.permute.xlu0 %102
  %106 = vset.pattern.permute.xlu0 0
  %107 = vperm.xlu0 %106, %v37
  %v108 = vpop.permute.xlu0 %107
  %111 = vset.pattern.permute.xlu0 0
  %112 = vperm.xlu0 %111, %v38
  %v113 = vpop.permute.xlu0 %112
  %116 = vset.pattern.permute.xlu0 0
  %117 = vperm.xlu0 %116, %v39
  %v118 = vpop.permute.xlu0 %117
  %v121 = vperm.slane %v23, 0
  %v123 = vmul.f32 %v43, %v121
  %v124 = vmul.f32 %v48, %v121
  %v125 = vmul.f32 %v53, %v121
  %v126 = vmul.f32 %v58, %v121
  %v127 = vmul.f32 %v63, %v121
  %v128 = vmul.f32 %v68, %v121
  %v129 = vmul.f32 %v73, %v121
  %v130 = vmul.f32 %v78, %v121
  %v131 = vmul.f32 %v83, %v121
  %v132 = vmul.f32 %v88, %v121
  %v133 = vmul.f32 %v93, %v121
  %v134 = vmul.f32 %v98, %v121
  %v135 = vmul.f32 %v103, %v121
  %v136 = vmul.f32 %v108, %v121
  %v137 = vmul.f32 %v113, %v121
  %v138 = vmul.f32 %v118, %v121
  %v139 = vand.u32 2147483647, %v123
  %vm140 = vcmp.le.f32.partialorder %v139, 0.7853982
  %vm141 = vcmp.lt.s32.totalorder %v123, 0
  %v142 = vand.u32 %v123, 2139095040
  %v143 = vshrl.u32 %v142, 23
  %v144 = vsub.s32 %v143, 127
  %v145 = vand.u32 2147483647, %v123
  %v146 = vand.u32 %v145, 8388607
  %v147 = vor.u32 %v146, 8388608
  %v148 = vsub.s32 0, %v147
  %v149 = vadd.s32 %v144, 1
  %vm150 = vcmp.gt.s32.totalorder %v149, 0
  %v151 = vsel %vm150, %v149, 0
  %v152 = vshrl.u32 %v151, 5
  %v153 = vand.u32 %v151, 31
  %v154 = vsub.s32 32, %v153
  %v155 = vshrl.u32 683565275, %v154
  %v156 = vshll.u32 683565275, %v153
  %v157 = vshrl.u32 2475754826, %v154
  %v158 = vor.u32 %v156, %v157
  %v159 = vshll.u32 2475754826, %v153
  %v160 = vshrl.u32 2131351028, %v154
  %v161 = vor.u32 %v159, %v160
  %v162 = vshll.u32 2131351028, %v153
  %v163 = vshrl.u32 2102212464, %v154
  %v164 = vor.u32 %v162, %v163
  %v165 = vshll.u32 2102212464, %v153
  %v166 = vshrl.u32 920167782, %v154
  %v167 = vor.u32 %v165, %v166
  %v168 = vshll.u32 920167782, %v153
  %v169 = vshrl.u32 1326507024, %v154
  %v170 = vor.u32 %v168, %v169
  %vm171 = vcmp.lt.s32.totalorder %v152, 1
  %vm172 = vcmp.lt.s32.totalorder %v152, 2
  %vm173 = vcmp.lt.s32.totalorder %v152, 3
  %vm174 = vcmp.lt.s32.totalorder %v152, 4
  %v175 = vsel %vm171, %v155, %v158
  %v176 = vsel %vm174, %v164, 2102212464
  %v177 = vsel %vm173, %v161, %v176
  %v178 = vsel %vm172, %v175, %v177
  %v179 = vsel %vm171, %v158, %v161
  %v180 = vsel %vm174, %v167, 920167782
  %v181 = vsel %vm173, %v164, %v180
  %v182 = vsel %vm172, %v179, %v181
  %v183 = vsel %vm171, %v161, %v164
  %v184 = vsel %vm174, %v170, 1326507024
  %v185 = vsel %vm173, %v167, %v184
  %v186 = vsel %vm172, %v183, %v185
  %v187 = vshll.u32 %v147, 8
  %v188 = vand.u32 %v187, 65535
  %v189 = vshrl.u32 %v187, 16
  %v190 = vand.u32 %v186, 65535
  %v191 = vshrl.u32 %v186, 16
  %v192 = vmul.u32 %v188, %v190
  %v193 = vmul.u32 %v188, %v191
  %v194 = vmul.u32 %v189, %v190
  %v195 = vmul.u32 %v189, %v191
  %v196 = vshll.u32 %v193, 16
  %v197 = vshrl.u32 %v193, 16
  %v198 = vshll.u32 %v194, 16
  %v199 = vshrl.u32 %v194, 16
  %vm200 = vc.u32 %v192, %v196
  %v201 = vsel %vm200, 1, 0
  %v202 = vadd.s32 %v192, %v196
  %v203 = vadd.s32 %v195, %v201
  %vm204 = vc.u32 %v202, %v198
  %v205 = vsel %vm204, 1, 0
  %v206 = vadd.s32 %v202, %v198
  %v207 = vadd.s32 %v203, %v205
  %v208 = vadd.s32 %v207, %v197
  %v209 = vadd.s32 %v208, %v199
  %v210 = vand.u32 %v187, 65535
  %v211 = vshrl.u32 %v187, 16
  %v212 = vand.u32 %v182, 65535
  %v213 = vshrl.u32 %v182, 16
  %v214 = vmul.u32 %v210, %v212
  %v215 = vmul.u32 %v210, %v213
  %v216 = vmul.u32 %v211, %v212
  %v217 = vmul.u32 %v211, %v213
  %v218 = vshll.u32 %v215, 16
  %v219 = vshrl.u32 %v215, 16
  %v220 = vshll.u32 %v216, 16
  %v221 = vshrl.u32 %v216, 16
  %vm222 = vc.u32 %v214, %v218
  %v223 = vsel %vm222, 1, 0
  %v224 = vadd.s32 %v214, %v218
  %v225 = vadd.s32 %v217, %v223
  %vm226 = vc.u32 %v224, %v220
  %v227 = vsel %vm226, 1, 0
  %v228 = vadd.s32 %v224, %v220
  %v229 = vadd.s32 %v225, %v227
  %v230 = vadd.s32 %v229, %v219
  %v231 = vadd.s32 %v230, %v221
  %v232 = vmul.u32 %v187, %v178
  %v233 = vadd.s32 %v209, %v228
  %vm234 = vc.u32 %v209, %v228
  %v235 = vadd.s32 %v231, 1
  %v236 = vsel %vm234, %v235, %v231
  %v237 = vadd.s32 %v232, %v236
  %v238 = vadd.s32 %v237, 536870912
  %v239 = vshrl.u32 %v238, 30
  %v240 = vshll.u32 %v239, 30
  %v241 = vsub.s32 %v237, %v240
  %vm242 = vcmp.lt.s32.totalorder %v241, 0
  %v243 = vsub.s32 0, %v241
  %v244 = vsel %vm242, %v243, %v241
  %v245 = vclz %v244
  %v246 = vsub.s32 %v245, 2
  %vm247 = vcmp.gt.s32.totalorder 0, %v246
  %v248 = vsel %vm247, 0, %v246
  %v249 = vsub.s32 32, %v248
  %v250 = vshll.u32 %v241, %v248
  %v251 = vshrl.u32 %v233, %v249
  %v252 = vor.u32 %v250, %v251
  %v253 = vsub.s32 4294967266, %v248
  %v254 = vadd.s32 %v253, 127
  %v255 = vshll.u32 %v254, 23
  %v256 = vor.u32 4788187, %v255
  %v257 = vand.u32 2147483647, %v256
  %v259 = vcvt.s32.f32 %v252
  %v260 = vmul.f32 %v259, %v257
  %v261 = vxor.u32 %v260, 2147483648
  %v262 = vsel %vm141, %v261, %v260
  %v263 = vsub.s32 4, %v239
  %v264 = vsel %vm141, %v263, %v239
  %v265 = vsel %vm140, %v123, %v262
  %v266 = vsel %vm140, 0, %v264
  %v267 = vmul.f32 %v265, %v265
  %v268 = vmul.f32 %v267, -0.001358992
  %v269 = vadd.f32 %v268, 0.041655596
  %v270 = vmul.f32 %v267, %v269
  %v271 = vadd.f32 %v270, -0.4999988
  %v272 = vmul.f32 %v267, %v271
  %v273 = vadd.f32 1.0, %v272
  %v274 = vmul.f32 %v265, %v265
  %v275 = vmul.f32 %v274, -0.00019511016
  %v276 = vadd.f32 %v275, 0.008332121
  %v277 = vmul.f32 %v274, %v276
  %v278 = vadd.f32 %v277, -0.16666654
  %v279 = vmul.f32 %v274, %v278
  %v280 = vadd.f32 %v279, 1.0
  %v281 = vmul.f32 %v280, %v265
  %vm282 = vweird.f32 %v123
  %v283 = vand.u32 %v266, 3
  %vm284 = vcmp.lt.s32.totalorder %v283, 2
  %vm285 = vcmp.eq.s32.totalorder %v283, 0
  %v286 = vxor.u32 %v281, 2147483648
  %v287 = vsel %vm285, %v273, %v286
  %vm288 = vcmp.eq.s32.totalorder %v283, 2
  %v289 = vxor.u32 %v273, 2147483648
  %v290 = vsel %vm288, %v289, %v281
  %v291 = vsel %vm284, %v287, %v290
  %v292 = vsel %vm282, nan, %v291
  %v293 = vand.u32 2147483647, %v124
  %vm294 = vcmp.le.f32.partialorder %v293, 0.7853982
  %vm295 = vcmp.lt.s32.totalorder %v124, 0
  %v296 = vand.u32 %v124, 2139095040
  %v297 = vshrl.u32 %v296, 23
  %v298 = vsub.s32 %v297, 127
  %v299 = vand.u32 2147483647, %v124
  %v300 = vand.u32 %v299, 8388607
  %v301 = vor.u32 %v300, 8388608
  %v302 = vsub.s32 0, %v301
  %v303 = vadd.s32 %v298, 1
  %vm304 = vcmp.gt.s32.totalorder %v303, 0
  %v305 = vsel %vm304, %v303, 0
  %v306 = vshrl.u32 %v305, 5
  %v307 = vand.u32 %v305, 31
  %v308 = vsub.s32 32, %v307
  %v309 = vshrl.u32 683565275, %v308
  %v310 = vshll.u32 683565275, %v307
  %v311 = vshrl.u32 2475754826, %v308
  %v312 = vor.u32 %v310, %v311
  %v313 = vshll.u32 2475754826, %v307
  %v314 = vshrl.u32 2131351028, %v308
  %v315 = vor.u32 %v313, %v314
  %v316 = vshll.u32 2131351028, %v307
  %v317 = vshrl.u32 2102212464, %v308
  %v318 = vor.u32 %v316, %v317
  %v319 = vshll.u32 2102212464, %v307
  %v320 = vshrl.u32 920167782, %v308
  %v321 = vor.u32 %v319, %v320
  %v322 = vshll.u32 920167782, %v307
  %v323 = vshrl.u32 1326507024, %v308
  %v324 = vor.u32 %v322, %v323
  %vm325 = vcmp.lt.s32.totalorder %v306, 1
  %vm326 = vcmp.lt.s32.totalorder %v306, 2
  %vm327 = vcmp.lt.s32.totalorder %v306, 3
  %vm328 = vcmp.lt.s32.totalorder %v306, 4
  %v329 = vsel %vm325, %v309, %v312
  %v330 = vsel %vm328, %v318, 2102212464
  %v331 = vsel %vm327, %v315, %v330
  %v332 = vsel %vm326, %v329, %v331
  %v333 = vsel %vm325, %v312, %v315
  %v334 = vsel %vm328, %v321, 920167782
  %v335 = vsel %vm327, %v318, %v334
  %v336 = vsel %vm326, %v333, %v335
  %v337 = vsel %vm325, %v315, %v318
  %v338 = vsel %vm328, %v324, 1326507024
  %v339 = vsel %vm327, %v321, %v338
  %v340 = vsel %vm326, %v337, %v339
  %v341 = vshll.u32 %v301, 8
  %v342 = vand.u32 %v341, 65535
  %v343 = vshrl.u32 %v341, 16
  %v344 = vand.u32 %v340, 65535
  %v345 = vshrl.u32 %v340, 16
  %v346 = vmul.u32 %v342, %v344
  %v347 = vmul.u32 %v342, %v345
  %v348 = vmul.u32 %v343, %v344
  %v349 = vmul.u32 %v343, %v345
  %v350 = vshll.u32 %v347, 16
  %v351 = vshrl.u32 %v347, 16
  %v352 = vshll.u32 %v348, 16
  %v353 = vshrl.u32 %v348, 16
  %vm354 = vc.u32 %v346, %v350
  %v355 = vsel %vm354, 1, 0
  %v356 = vadd.s32 %v346, %v350
  %v357 = vadd.s32 %v349, %v355
  %vm358 = vc.u32 %v356, %v352
  %v359 = vsel %vm358, 1, 0
  %v360 = vadd.s32 %v356, %v352
  %v361 = vadd.s32 %v357, %v359
  %v362 = vadd.s32 %v361, %v351
  %v363 = vadd.s32 %v362, %v353
  %v364 = vand.u32 %v341, 65535
  %v365 = vshrl.u32 %v341, 16
  %v366 = vand.u32 %v336, 65535
  %v367 = vshrl.u32 %v336, 16
  %v368 = vmul.u32 %v364, %v366
  %v369 = vmul.u32 %v364, %v367
  %v370 = vmul.u32 %v365, %v366
  %v371 = vmul.u32 %v365, %v367
  %v372 = vshll.u32 %v369, 16
  %v373 = vshrl.u32 %v369, 16
  %v374 = vshll.u32 %v370, 16
  %v375 = vshrl.u32 %v370, 16
  %vm376 = vc.u32 %v368, %v372
  %v377 = vsel %vm376, 1, 0
  %v378 = vadd.s32 %v368, %v372
  %v379 = vadd.s32 %v371, %v377
  %vm380 = vc.u32 %v378, %v374
  %v381 = vsel %vm380, 1, 0
  %v382 = vadd.s32 %v378, %v374
  %v383 = vadd.s32 %v379, %v381
  %v384 = vadd.s32 %v383, %v373
  %v385 = vadd.s32 %v384, %v375
  %v386 = vmul.u32 %v341, %v332
  %v387 = vadd.s32 %v363, %v382
  %vm388 = vc.u32 %v363, %v382
  %v389 = vadd.s32 %v385, 1
  %v390 = vsel %vm388, %v389, %v385
  %v391 = vadd.s32 %v386, %v390
  %v392 = vadd.s32 %v391, 536870912
  %v393 = vshrl.u32 %v392, 30
  %v394 = vshll.u32 %v393, 30
  %v395 = vsub.s32 %v391, %v394
  %vm396 = vcmp.lt.s32.totalorder %v395, 0
  %v397 = vsub.s32 0, %v395
  %v398 = vsel %vm396, %v397, %v395
  %v399 = vclz %v398
  %v400 = vsub.s32 %v399, 2
  %vm401 = vcmp.gt.s32.totalorder 0, %v400
  %v402 = vsel %vm401, 0, %v400
  %v403 = vsub.s32 32, %v402
  %v404 = vshll.u32 %v395, %v402
  %v405 = vshrl.u32 %v387, %v403
  %v406 = vor.u32 %v404, %v405
  %v407 = vsub.s32 4294967266, %v402
  %v408 = vadd.s32 %v407, 127
  %v409 = vshll.u32 %v408, 23
  %v410 = vor.u32 4788187, %v409
  %v411 = vand.u32 2147483647, %v410
  %v413 = vcvt.s32.f32 %v406
  %v414 = vmul.f32 %v413, %v411
  %v415 = vxor.u32 %v414, 2147483648
  %v416 = vsel %vm295, %v415, %v414
  %v417 = vsub.s32 4, %v393
  %v418 = vsel %vm295, %v417, %v393
  %v419 = vsel %vm294, %v124, %v416
  %v420 = vsel %vm294, 0, %v418
  %v421 = vmul.f32 %v419, %v419
  %v422 = vmul.f32 %v421, -0.001358992
  %v423 = vadd.f32 %v422, 0.041655596
  %v424 = vmul.f32 %v421, %v423
  %v425 = vadd.f32 %v424, -0.4999988
  %v426 = vmul.f32 %v421, %v425
  %v427 = vadd.f32 1.0, %v426
  %v428 = vmul.f32 %v419, %v419
  %v429 = vmul.f32 %v428, -0.00019511016
  %v430 = vadd.f32 %v429, 0.008332121
  %v431 = vmul.f32 %v428, %v430
  %v432 = vadd.f32 %v431, -0.16666654
  %v433 = vmul.f32 %v428, %v432
  %v434 = vadd.f32 %v433, 1.0
  %v435 = vmul.f32 %v434, %v419
  %vm436 = vweird.f32 %v124
  %v437 = vand.u32 %v420, 3
  %vm438 = vcmp.lt.s32.totalorder %v437, 2
  %vm439 = vcmp.eq.s32.totalorder %v437, 0
  %v440 = vxor.u32 %v435, 2147483648
  %v441 = vsel %vm439, %v427, %v440
  %vm442 = vcmp.eq.s32.totalorder %v437, 2
  %v443 = vxor.u32 %v427, 2147483648
  %v444 = vsel %vm442, %v443, %v435
  %v445 = vsel %vm438, %v441, %v444
  %v446 = vsel %vm436, nan, %v445
  %v447 = vand.u32 2147483647, %v125
  %vm448 = vcmp.le.f32.partialorder %v447, 0.7853982
  %vm449 = vcmp.lt.s32.totalorder %v125, 0
  %v450 = vand.u32 %v125, 2139095040
  %v451 = vshrl.u32 %v450, 23
  %v452 = vsub.s32 %v451, 127
  %v453 = vand.u32 2147483647, %v125
  %v454 = vand.u32 %v453, 8388607
  %v455 = vor.u32 %v454, 8388608
  %v456 = vsub.s32 0, %v455
  %v457 = vadd.s32 %v452, 1
  %vm458 = vcmp.gt.s32.totalorder %v457, 0
  %v459 = vsel %vm458, %v457, 0
  %v460 = vshrl.u32 %v459, 5
  %v461 = vand.u32 %v459, 31
  %v462 = vsub.s32 32, %v461
  %v463 = vshrl.u32 683565275, %v462
  %v464 = vshll.u32 683565275, %v461
  %v465 = vshrl.u32 2475754826, %v462
  %v466 = vor.u32 %v464, %v465
  %v467 = vshll.u32 2475754826, %v461
  %v468 = vshrl.u32 2131351028, %v462
  %v469 = vor.u32 %v467, %v468
  %v470 = vshll.u32 2131351028, %v461
  %v471 = vshrl.u32 2102212464, %v462
  %v472 = vor.u32 %v470, %v471
  %v473 = vshll.u32 2102212464, %v461
  %v474 = vshrl.u32 920167782, %v462
  %v475 = vor.u32 %v473, %v474
  %v476 = vshll.u32 920167782, %v461
  %v477 = vshrl.u32 1326507024, %v462
  %v478 = vor.u32 %v476, %v477
  %vm479 = vcmp.lt.s32.totalorder %v460, 1
  %vm480 = vcmp.lt.s32.totalorder %v460, 2
  %vm481 = vcmp.lt.s32.totalorder %v460, 3
  %vm482 = vcmp.lt.s32.totalorder %v460, 4
  %v483 = vsel %vm479, %v463, %v466
  %v484 = vsel %vm482, %v472, 2102212464
  %v485 = vsel %vm481, %v469, %v484
  %v486 = vsel %vm480, %v483, %v485
  %v487 = vsel %vm479, %v466, %v469
  %v488 = vsel %vm482, %v475, 920167782
  %v489 = vsel %vm481, %v472, %v488
  %v490 = vsel %vm480, %v487, %v489
  %v491 = vsel %vm479, %v469, %v472
  %v492 = vsel %vm482, %v478, 1326507024
  %v493 = vsel %vm481, %v475, %v492
  %v494 = vsel %vm480, %v491, %v493
  %v495 = vshll.u32 %v455, 8
  %v496 = vand.u32 %v495, 65535
  %v497 = vshrl.u32 %v495, 16
  %v498 = vand.u32 %v494, 65535
  %v499 = vshrl.u32 %v494, 16
  %v500 = vmul.u32 %v496, %v498
  %v501 = vmul.u32 %v496, %v499
  %v502 = vmul.u32 %v497, %v498
  %v503 = vmul.u32 %v497, %v499
  %v504 = vshll.u32 %v501, 16
  %v505 = vshrl.u32 %v501, 16
  %v506 = vshll.u32 %v502, 16
  %v507 = vshrl.u32 %v502, 16
  %vm508 = vc.u32 %v500, %v504
  %v509 = vsel %vm508, 1, 0
  %v510 = vadd.s32 %v500, %v504
  %v511 = vadd.s32 %v503, %v509
  %vm512 = vc.u32 %v510, %v506
  %v513 = vsel %vm512, 1, 0
  %v514 = vadd.s32 %v510, %v506
  %v515 = vadd.s32 %v511, %v513
  %v516 = vadd.s32 %v515, %v505
  %v517 = vadd.s32 %v516, %v507
  %v518 = vand.u32 %v495, 65535
  %v519 = vshrl.u32 %v495, 16
  %v520 = vand.u32 %v490, 65535
  %v521 = vshrl.u32 %v490, 16
  %v522 = vmul.u32 %v518, %v520
  %v523 = vmul.u32 %v518, %v521
  %v524 = vmul.u32 %v519, %v520
  %v525 = vmul.u32 %v519, %v521
  %v526 = vshll.u32 %v523, 16
  %v527 = vshrl.u32 %v523, 16
  %v528 = vshll.u32 %v524, 16
  %v529 = vshrl.u32 %v524, 16
  %vm530 = vc.u32 %v522, %v526
  %v531 = vsel %vm530, 1, 0
  %v532 = vadd.s32 %v522, %v526
  %v533 = vadd.s32 %v525, %v531
  %vm534 = vc.u32 %v532, %v528
  %v535 = vsel %vm534, 1, 0
  %v536 = vadd.s32 %v532, %v528
  %v537 = vadd.s32 %v533, %v535
  %v538 = vadd.s32 %v537, %v527
  %v539 = vadd.s32 %v538, %v529
  %v540 = vmul.u32 %v495, %v486
  %v541 = vadd.s32 %v517, %v536
  %vm542 = vc.u32 %v517, %v536
  %v543 = vadd.s32 %v539, 1
  %v544 = vsel %vm542, %v543, %v539
  %v545 = vadd.s32 %v540, %v544
  %v546 = vadd.s32 %v545, 536870912
  %v547 = vshrl.u32 %v546, 30
  %v548 = vshll.u32 %v547, 30
  %v549 = vsub.s32 %v545, %v548
  %vm550 = vcmp.lt.s32.totalorder %v549, 0
  %v551 = vsub.s32 0, %v549
  %v552 = vsel %vm550, %v551, %v549
  %v553 = vclz %v552
  %v554 = vsub.s32 %v553, 2
  %vm555 = vcmp.gt.s32.totalorder 0, %v554
  %v556 = vsel %vm555, 0, %v554
  %v557 = vsub.s32 32, %v556
  %v558 = vshll.u32 %v549, %v556
  %v559 = vshrl.u32 %v541, %v557
  %v560 = vor.u32 %v558, %v559
  %v561 = vsub.s32 4294967266, %v556
  %v562 = vadd.s32 %v561, 127
  %v563 = vshll.u32 %v562, 23
  %v564 = vor.u32 4788187, %v563
  %v565 = vand.u32 2147483647, %v564
  %v567 = vcvt.s32.f32 %v560
  %v568 = vmul.f32 %v567, %v565
  %v569 = vxor.u32 %v568, 2147483648
  %v570 = vsel %vm449, %v569, %v568
  %v571 = vsub.s32 4, %v547
  %v572 = vsel %vm449, %v571, %v547
  %v573 = vsel %vm448, %v125, %v570
  %v574 = vsel %vm448, 0, %v572
  %v575 = vmul.f32 %v573, %v573
  %v576 = vmul.f32 %v575, -0.001358992
  %v577 = vadd.f32 %v576, 0.041655596
  %v578 = vmul.f32 %v575, %v577
  %v579 = vadd.f32 %v578, -0.4999988
  %v580 = vmul.f32 %v575, %v579
  %v581 = vadd.f32 1.0, %v580
  %v582 = vmul.f32 %v573, %v573
  %v583 = vmul.f32 %v582, -0.00019511016
  %v584 = vadd.f32 %v583, 0.008332121
  %v585 = vmul.f32 %v582, %v584
  %v586 = vadd.f32 %v585, -0.16666654
  %v587 = vmul.f32 %v582, %v586
  %v588 = vadd.f32 %v587, 1.0
  %v589 = vmul.f32 %v588, %v573
  %vm590 = vweird.f32 %v125
  %v591 = vand.u32 %v574, 3
  %vm592 = vcmp.lt.s32.totalorder %v591, 2
  %vm593 = vcmp.eq.s32.totalorder %v591, 0
  %v594 = vxor.u32 %v589, 2147483648
  %v595 = vsel %vm593, %v581, %v594
  %vm596 = vcmp.eq.s32.totalorder %v591, 2
  %v597 = vxor.u32 %v581, 2147483648
  %v598 = vsel %vm596, %v597, %v589
  %v599 = vsel %vm592, %v595, %v598
  %v600 = vsel %vm590, nan, %v599
  %v601 = vand.u32 2147483647, %v126
  %vm602 = vcmp.le.f32.partialorder %v601, 0.7853982
  %vm603 = vcmp.lt.s32.totalorder %v126, 0
  %v604 = vand.u32 %v126, 2139095040
  %v605 = vshrl.u32 %v604, 23
  %v606 = vsub.s32 %v605, 127
  %v607 = vand.u32 2147483647, %v126
  %v608 = vand.u32 %v607, 8388607
  %v609 = vor.u32 %v608, 8388608
  %v610 = vsub.s32 0, %v609
  %v611 = vadd.s32 %v606, 1
  %vm612 = vcmp.gt.s32.totalorder %v611, 0
  %v613 = vsel %vm612, %v611, 0
  %v614 = vshrl.u32 %v613, 5
  %v615 = vand.u32 %v613, 31
  %v616 = vsub.s32 32, %v615
  %v617 = vshrl.u32 683565275, %v616
  %v618 = vshll.u32 683565275, %v615
  %v619 = vshrl.u32 2475754826, %v616
  %v620 = vor.u32 %v618, %v619
  %v621 = vshll.u32 2475754826, %v615
  %v622 = vshrl.u32 2131351028, %v616
  %v623 = vor.u32 %v621, %v622
  %v624 = vshll.u32 2131351028, %v615
  %v625 = vshrl.u32 2102212464, %v616
  %v626 = vor.u32 %v624, %v625
  %v627 = vshll.u32 2102212464, %v615
  %v628 = vshrl.u32 920167782, %v616
  %v629 = vor.u32 %v627, %v628
  %v630 = vshll.u32 920167782, %v615
  %v631 = vshrl.u32 1326507024, %v616
  %v632 = vor.u32 %v630, %v631
  %vm633 = vcmp.lt.s32.totalorder %v614, 1
  %vm634 = vcmp.lt.s32.totalorder %v614, 2
  %vm635 = vcmp.lt.s32.totalorder %v614, 3
  %vm636 = vcmp.lt.s32.totalorder %v614, 4
  %v637 = vsel %vm633, %v617, %v620
  %v638 = vsel %vm636, %v626, 2102212464
  %v639 = vsel %vm635, %v623, %v638
  %v640 = vsel %vm634, %v637, %v639
  %v641 = vsel %vm633, %v620, %v623
  %v642 = vsel %vm636, %v629, 920167782
  %v643 = vsel %vm635, %v626, %v642
  %v644 = vsel %vm634, %v641, %v643
  %v645 = vsel %vm633, %v623, %v626
  %v646 = vsel %vm636, %v632, 1326507024
  %v647 = vsel %vm635, %v629, %v646
  %v648 = vsel %vm634, %v645, %v647
  %v649 = vshll.u32 %v609, 8
  %v650 = vand.u32 %v649, 65535
  %v651 = vshrl.u32 %v649, 16
  %v652 = vand.u32 %v648, 65535
  %v653 = vshrl.u32 %v648, 16
  %v654 = vmul.u32 %v650, %v652
  %v655 = vmul.u32 %v650, %v653
  %v656 = vmul.u32 %v651, %v652
  %v657 = vmul.u32 %v651, %v653
  %v658 = vshll.u32 %v655, 16
  %v659 = vshrl.u32 %v655, 16
  %v660 = vshll.u32 %v656, 16
  %v661 = vshrl.u32 %v656, 16
  %vm662 = vc.u32 %v654, %v658
  %v663 = vsel %vm662, 1, 0
  %v664 = vadd.s32 %v654, %v658
  %v665 = vadd.s32 %v657, %v663
  %vm666 = vc.u32 %v664, %v660
  %v667 = vsel %vm666, 1, 0
  %v668 = vadd.s32 %v664, %v660
  %v669 = vadd.s32 %v665, %v667
  %v670 = vadd.s32 %v669, %v659
  %v671 = vadd.s32 %v670, %v661
  %v672 = vand.u32 %v649, 65535
  %v673 = vshrl.u32 %v649, 16
  %v674 = vand.u32 %v644, 65535
  %v675 = vshrl.u32 %v644, 16
  %v676 = vmul.u32 %v672, %v674
  %v677 = vmul.u32 %v672, %v675
  %v678 = vmul.u32 %v673, %v674
  %v679 = vmul.u32 %v673, %v675
  %v680 = vshll.u32 %v677, 16
  %v681 = vshrl.u32 %v677, 16
  %v682 = vshll.u32 %v678, 16
  %v683 = vshrl.u32 %v678, 16
  %vm684 = vc.u32 %v676, %v680
  %v685 = vsel %vm684, 1, 0
  %v686 = vadd.s32 %v676, %v680
  %v687 = vadd.s32 %v679, %v685
  %vm688 = vc.u32 %v686, %v682
  %v689 = vsel %vm688, 1, 0
  %v690 = vadd.s32 %v686, %v682
  %v691 = vadd.s32 %v687, %v689
  %v692 = vadd.s32 %v691, %v681
  %v693 = vadd.s32 %v692, %v683
  %v694 = vmul.u32 %v649, %v640
  %v695 = vadd.s32 %v671, %v690
  %vm696 = vc.u32 %v671, %v690
  %v697 = vadd.s32 %v693, 1
  %v698 = vsel %vm696, %v697, %v693
  %v699 = vadd.s32 %v694, %v698
  %v700 = vadd.s32 %v699, 536870912
  %v701 = vshrl.u32 %v700, 30
  %v702 = vshll.u32 %v701, 30
  %v703 = vsub.s32 %v699, %v702
  %vm704 = vcmp.lt.s32.totalorder %v703, 0
  %v705 = vsub.s32 0, %v703
  %v706 = vsel %vm704, %v705, %v703
  %v707 = vclz %v706
  %v708 = vsub.s32 %v707, 2
  %vm709 = vcmp.gt.s32.totalorder 0, %v708
  %v710 = vsel %vm709, 0, %v708
  %v711 = vsub.s32 32, %v710
  %v712 = vshll.u32 %v703, %v710
  %v713 = vshrl.u32 %v695, %v711
  %v714 = vor.u32 %v712, %v713
  %v715 = vsub.s32 4294967266, %v710
  %v716 = vadd.s32 %v715, 127
  %v717 = vshll.u32 %v716, 23
  %v718 = vor.u32 4788187, %v717
  %v719 = vand.u32 2147483647, %v718
  %v721 = vcvt.s32.f32 %v714
  %v722 = vmul.f32 %v721, %v719
  %v723 = vxor.u32 %v722, 2147483648
  %v724 = vsel %vm603, %v723, %v722
  %v725 = vsub.s32 4, %v701
  %v726 = vsel %vm603, %v725, %v701
  %v727 = vsel %vm602, %v126, %v724
  %v728 = vsel %vm602, 0, %v726
  %v729 = vmul.f32 %v727, %v727
  %v730 = vmul.f32 %v729, -0.001358992
  %v731 = vadd.f32 %v730, 0.041655596
  %v732 = vmul.f32 %v729, %v731
  %v733 = vadd.f32 %v732, -0.4999988
  %v734 = vmul.f32 %v729, %v733
  %v735 = vadd.f32 1.0, %v734
  %v736 = vmul.f32 %v727, %v727
  %v737 = vmul.f32 %v736, -0.00019511016
  %v738 = vadd.f32 %v737, 0.008332121
  %v739 = vmul.f32 %v736, %v738
  %v740 = vadd.f32 %v739, -0.16666654
  %v741 = vmul.f32 %v736, %v740
  %v742 = vadd.f32 %v741, 1.0
  %v743 = vmul.f32 %v742, %v727
  %vm744 = vweird.f32 %v126
  %v745 = vand.u32 %v728, 3
  %vm746 = vcmp.lt.s32.totalorder %v745, 2
  %vm747 = vcmp.eq.s32.totalorder %v745, 0
  %v748 = vxor.u32 %v743, 2147483648
  %v749 = vsel %vm747, %v735, %v748
  %vm750 = vcmp.eq.s32.totalorder %v745, 2
  %v751 = vxor.u32 %v735, 2147483648
  %v752 = vsel %vm750, %v751, %v743
  %v753 = vsel %vm746, %v749, %v752
  %v754 = vsel %vm744, nan, %v753
  %v755 = vand.u32 2147483647, %v127
  %vm756 = vcmp.le.f32.partialorder %v755, 0.7853982
  %vm757 = vcmp.lt.s32.totalorder %v127, 0
  %v758 = vand.u32 %v127, 2139095040
  %v759 = vshrl.u32 %v758, 23
  %v760 = vsub.s32 %v759, 127
  %v761 = vand.u32 2147483647, %v127
  %v762 = vand.u32 %v761, 8388607
  %v763 = vor.u32 %v762, 8388608
  %v764 = vsub.s32 0, %v763
  %v765 = vadd.s32 %v760, 1
  %vm766 = vcmp.gt.s32.totalorder %v765, 0
  %v767 = vsel %vm766, %v765, 0
  %v768 = vshrl.u32 %v767, 5
  %v769 = vand.u32 %v767, 31
  %v770 = vsub.s32 32, %v769
  %v771 = vshrl.u32 683565275, %v770
  %v772 = vshll.u32 683565275, %v769
  %v773 = vshrl.u32 2475754826, %v770
  %v774 = vor.u32 %v772, %v773
  %v775 = vshll.u32 2475754826, %v769
  %v776 = vshrl.u32 2131351028, %v770
  %v777 = vor.u32 %v775, %v776
  %v778 = vshll.u32 2131351028, %v769
  %v779 = vshrl.u32 2102212464, %v770
  %v780 = vor.u32 %v778, %v779
  %v781 = vshll.u32 2102212464, %v769
  %v782 = vshrl.u32 920167782, %v770
  %v783 = vor.u32 %v781, %v782
  %v784 = vshll.u32 920167782, %v769
  %v785 = vshrl.u32 1326507024, %v770
  %v786 = vor.u32 %v784, %v785
  %vm787 = vcmp.lt.s32.totalorder %v768, 1
  %vm788 = vcmp.lt.s32.totalorder %v768, 2
  %vm789 = vcmp.lt.s32.totalorder %v768, 3
  %vm790 = vcmp.lt.s32.totalorder %v768, 4
  %v791 = vsel %vm787, %v771, %v774
  %v792 = vsel %vm790, %v780, 2102212464
  %v793 = vsel %vm789, %v777, %v792
  %v794 = vsel %vm788, %v791, %v793
  %v795 = vsel %vm787, %v774, %v777
  %v796 = vsel %vm790, %v783, 920167782
  %v797 = vsel %vm789, %v780, %v796
  %v798 = vsel %vm788, %v795, %v797
  %v799 = vsel %vm787, %v777, %v780
  %v800 = vsel %vm790, %v786, 1326507024
  %v801 = vsel %vm789, %v783, %v800
  %v802 = vsel %vm788, %v799, %v801
  %v803 = vshll.u32 %v763, 8
  %v804 = vand.u32 %v803, 65535
  %v805 = vshrl.u32 %v803, 16
  %v806 = vand.u32 %v802, 65535
  %v807 = vshrl.u32 %v802, 16
  %v808 = vmul.u32 %v804, %v806
  %v809 = vmul.u32 %v804, %v807
  %v810 = vmul.u32 %v805, %v806
  %v811 = vmul.u32 %v805, %v807
  %v812 = vshll.u32 %v809, 16
  %v813 = vshrl.u32 %v809, 16
  %v814 = vshll.u32 %v810, 16
  %v815 = vshrl.u32 %v810, 16
  %vm816 = vc.u32 %v808, %v812
  %v817 = vsel %vm816, 1, 0
  %v818 = vadd.s32 %v808, %v812
  %v819 = vadd.s32 %v811, %v817
  %vm820 = vc.u32 %v818, %v814
  %v821 = vsel %vm820, 1, 0
  %v822 = vadd.s32 %v818, %v814
  %v823 = vadd.s32 %v819, %v821
  %v824 = vadd.s32 %v823, %v813
  %v825 = vadd.s32 %v824, %v815
  %v826 = vand.u32 %v803, 65535
  %v827 = vshrl.u32 %v803, 16
  %v828 = vand.u32 %v798, 65535
  %v829 = vshrl.u32 %v798, 16
  %v830 = vmul.u32 %v826, %v828
  %v831 = vmul.u32 %v826, %v829
  %v832 = vmul.u32 %v827, %v828
  %v833 = vmul.u32 %v827, %v829
  %v834 = vshll.u32 %v831, 16
  %v835 = vshrl.u32 %v831, 16
  %v836 = vshll.u32 %v832, 16
  %v837 = vshrl.u32 %v832, 16
  %vm838 = vc.u32 %v830, %v834
  %v839 = vsel %vm838, 1, 0
  %v840 = vadd.s32 %v830, %v834
  %v841 = vadd.s32 %v833, %v839
  %vm842 = vc.u32 %v840, %v836
  %v843 = vsel %vm842, 1, 0
  %v844 = vadd.s32 %v840, %v836
  %v845 = vadd.s32 %v841, %v843
  %v846 = vadd.s32 %v845, %v835
  %v847 = vadd.s32 %v846, %v837
  %v848 = vmul.u32 %v803, %v794
  %v849 = vadd.s32 %v825, %v844
  %vm850 = vc.u32 %v825, %v844
  %v851 = vadd.s32 %v847, 1
  %v852 = vsel %vm850, %v851, %v847
  %v853 = vadd.s32 %v848, %v852
  %v854 = vadd.s32 %v853, 536870912
  %v855 = vshrl.u32 %v854, 30
  %v856 = vshll.u32 %v855, 30
  %v857 = vsub.s32 %v853, %v856
  %vm858 = vcmp.lt.s32.totalorder %v857, 0
  %v859 = vsub.s32 0, %v857
  %v860 = vsel %vm858, %v859, %v857
  %v861 = vclz %v860
  %v862 = vsub.s32 %v861, 2
  %vm863 = vcmp.gt.s32.totalorder 0, %v862
  %v864 = vsel %vm863, 0, %v862
  %v865 = vsub.s32 32, %v864
  %v866 = vshll.u32 %v857, %v864
  %v867 = vshrl.u32 %v849, %v865
  %v868 = vor.u32 %v866, %v867
  %v869 = vsub.s32 4294967266, %v864
  %v870 = vadd.s32 %v869, 127
  %v871 = vshll.u32 %v870, 23
  %v872 = vor.u32 4788187, %v871
  %v873 = vand.u32 2147483647, %v872
  %v875 = vcvt.s32.f32 %v868
  %v876 = vmul.f32 %v875, %v873
  %v877 = vxor.u32 %v876, 2147483648
  %v878 = vsel %vm757, %v877, %v876
  %v879 = vsub.s32 4, %v855
  %v880 = vsel %vm757, %v879, %v855
  %v881 = vsel %vm756, %v127, %v878
  %v882 = vsel %vm756, 0, %v880
  %v883 = vmul.f32 %v881, %v881
  %v884 = vmul.f32 %v883, -0.001358992
  %v885 = vadd.f32 %v884, 0.041655596
  %v886 = vmul.f32 %v883, %v885
  %v887 = vadd.f32 %v886, -0.4999988
  %v888 = vmul.f32 %v883, %v887
  %v889 = vadd.f32 1.0, %v888
  %v890 = vmul.f32 %v881, %v881
  %v891 = vmul.f32 %v890, -0.00019511016
  %v892 = vadd.f32 %v891, 0.008332121
  %v893 = vmul.f32 %v890, %v892
  %v894 = vadd.f32 %v893, -0.16666654
  %v895 = vmul.f32 %v890, %v894
  %v896 = vadd.f32 %v895, 1.0
  %v897 = vmul.f32 %v896, %v881
  %vm898 = vweird.f32 %v127
  %v899 = vand.u32 %v882, 3
  %vm900 = vcmp.lt.s32.totalorder %v899, 2
  %vm901 = vcmp.eq.s32.totalorder %v899, 0
  %v902 = vxor.u32 %v897, 2147483648
  %v903 = vsel %vm901, %v889, %v902
  %vm904 = vcmp.eq.s32.totalorder %v899, 2
  %v905 = vxor.u32 %v889, 2147483648
  %v906 = vsel %vm904, %v905, %v897
  %v907 = vsel %vm900, %v903, %v906
  %v908 = vsel %vm898, nan, %v907
  %v909 = vand.u32 2147483647, %v128
  %vm910 = vcmp.le.f32.partialorder %v909, 0.7853982
  %vm911 = vcmp.lt.s32.totalorder %v128, 0
  %v912 = vand.u32 %v128, 2139095040
  %v913 = vshrl.u32 %v912, 23
  %v914 = vsub.s32 %v913, 127
  %v915 = vand.u32 2147483647, %v128
  %v916 = vand.u32 %v915, 8388607
  %v917 = vor.u32 %v916, 8388608
  %v918 = vsub.s32 0, %v917
  %v919 = vadd.s32 %v914, 1
  %vm920 = vcmp.gt.s32.totalorder %v919, 0
  %v921 = vsel %vm920, %v919, 0
  %v922 = vshrl.u32 %v921, 5
  %v923 = vand.u32 %v921, 31
  %v924 = vsub.s32 32, %v923
  %v925 = vshrl.u32 683565275, %v924
  %v926 = vshll.u32 683565275, %v923
  %v927 = vshrl.u32 2475754826, %v924
  %v928 = vor.u32 %v926, %v927
  %v929 = vshll.u32 2475754826, %v923
  %v930 = vshrl.u32 2131351028, %v924
  %v931 = vor.u32 %v929, %v930
  %v932 = vshll.u32 2131351028, %v923
  %v933 = vshrl.u32 2102212464, %v924
  %v934 = vor.u32 %v932, %v933
  %v935 = vshll.u32 2102212464, %v923
  %v936 = vshrl.u32 920167782, %v924
  %v937 = vor.u32 %v935, %v936
  %v938 = vshll.u32 920167782, %v923
  %v939 = vshrl.u32 1326507024, %v924
  %v940 = vor.u32 %v938, %v939
  %vm941 = vcmp.lt.s32.totalorder %v922, 1
  %vm942 = vcmp.lt.s32.totalorder %v922, 2
  %vm943 = vcmp.lt.s32.totalorder %v922, 3
  %vm944 = vcmp.lt.s32.totalorder %v922, 4
  %v945 = vsel %vm941, %v925, %v928
  %v946 = vsel %vm944, %v934, 2102212464
  %v947 = vsel %vm943, %v931, %v946
  %v948 = vsel %vm942, %v945, %v947
  %v949 = vsel %vm941, %v928, %v931
  %v950 = vsel %vm944, %v937, 920167782
  %v951 = vsel %vm943, %v934, %v950
  %v952 = vsel %vm942, %v949, %v951
  %v953 = vsel %vm941, %v931, %v934
  %v954 = vsel %vm944, %v940, 1326507024
  %v955 = vsel %vm943, %v937, %v954
  %v956 = vsel %vm942, %v953, %v955
  %v957 = vshll.u32 %v917, 8
  %v958 = vand.u32 %v957, 65535
  %v959 = vshrl.u32 %v957, 16
  %v960 = vand.u32 %v956, 65535
  %v961 = vshrl.u32 %v956, 16
  %v962 = vmul.u32 %v958, %v960
  %v963 = vmul.u32 %v958, %v961
  %v964 = vmul.u32 %v959, %v960
  %v965 = vmul.u32 %v959, %v961
  %v966 = vshll.u32 %v963, 16
  %v967 = vshrl.u32 %v963, 16
  %v968 = vshll.u32 %v964, 16
  %v969 = vshrl.u32 %v964, 16
  %vm970 = vc.u32 %v962, %v966
  %v971 = vsel %vm970, 1, 0
  %v972 = vadd.s32 %v962, %v966
  %v973 = vadd.s32 %v965, %v971
  %vm974 = vc.u32 %v972, %v968
  %v975 = vsel %vm974, 1, 0
  %v976 = vadd.s32 %v972, %v968
  %v977 = vadd.s32 %v973, %v975
  %v978 = vadd.s32 %v977, %v967
  %v979 = vadd.s32 %v978, %v969
  %v980 = vand.u32 %v957, 65535
  %v981 = vshrl.u32 %v957, 16
  %v982 = vand.u32 %v952, 65535
  %v983 = vshrl.u32 %v952, 16
  %v984 = vmul.u32 %v980, %v982
  %v985 = vmul.u32 %v980, %v983
  %v986 = vmul.u32 %v981, %v982
  %v987 = vmul.u32 %v981, %v983
  %v988 = vshll.u32 %v985, 16
  %v989 = vshrl.u32 %v985, 16
  %v990 = vshll.u32 %v986, 16
  %v991 = vshrl.u32 %v986, 16
  %vm992 = vc.u32 %v984, %v988
  %v993 = vsel %vm992, 1, 0
  %v994 = vadd.s32 %v984, %v988
  %v995 = vadd.s32 %v987, %v993
  %vm996 = vc.u32 %v994, %v990
  %v997 = vsel %vm996, 1, 0
  %v998 = vadd.s32 %v994, %v990
  %v999 = vadd.s32 %v995, %v997
  %v1000 = vadd.s32 %v999, %v989
  %v1001 = vadd.s32 %v1000, %v991
  %v1002 = vmul.u32 %v957, %v948
  %v1003 = vadd.s32 %v979, %v998
  %vm1004 = vc.u32 %v979, %v998
  %v1005 = vadd.s32 %v1001, 1
  %v1006 = vsel %vm1004, %v1005, %v1001
  %v1007 = vadd.s32 %v1002, %v1006
  %v1008 = vadd.s32 %v1007, 536870912
  %v1009 = vshrl.u32 %v1008, 30
  %v1010 = vshll.u32 %v1009, 30
  %v1011 = vsub.s32 %v1007, %v1010
  %vm1012 = vcmp.lt.s32.totalorder %v1011, 0
  %v1013 = vsub.s32 0, %v1011
  %v1014 = vsel %vm1012, %v1013, %v1011
  %v1015 = vclz %v1014
  %v1016 = vsub.s32 %v1015, 2
  %vm1017 = vcmp.gt.s32.totalorder 0, %v1016
  %v1018 = vsel %vm1017, 0, %v1016
  %v1019 = vsub.s32 32, %v1018
  %v1020 = vshll.u32 %v1011, %v1018
  %v1021 = vshrl.u32 %v1003, %v1019
  %v1022 = vor.u32 %v1020, %v1021
  %v1023 = vsub.s32 4294967266, %v1018
  %v1024 = vadd.s32 %v1023, 127
  %v1025 = vshll.u32 %v1024, 23
  %v1026 = vor.u32 4788187, %v1025
  %v1027 = vand.u32 2147483647, %v1026
  %v1029 = vcvt.s32.f32 %v1022
  %v1030 = vmul.f32 %v1029, %v1027
  %v1031 = vxor.u32 %v1030, 2147483648
  %v1032 = vsel %vm911, %v1031, %v1030
  %v1033 = vsub.s32 4, %v1009
  %v1034 = vsel %vm911, %v1033, %v1009
  %v1035 = vsel %vm910, %v128, %v1032
  %v1036 = vsel %vm910, 0, %v1034
  %v1037 = vmul.f32 %v1035, %v1035
  %v1038 = vmul.f32 %v1037, -0.001358992
  %v1039 = vadd.f32 %v1038, 0.041655596
  %v1040 = vmul.f32 %v1037, %v1039
  %v1041 = vadd.f32 %v1040, -0.4999988
  %v1042 = vmul.f32 %v1037, %v1041
  %v1043 = vadd.f32 1.0, %v1042
  %v1044 = vmul.f32 %v1035, %v1035
  %v1045 = vmul.f32 %v1044, -0.00019511016
  %v1046 = vadd.f32 %v1045, 0.008332121
  %v1047 = vmul.f32 %v1044, %v1046
  %v1048 = vadd.f32 %v1047, -0.16666654
  %v1049 = vmul.f32 %v1044, %v1048
  %v1050 = vadd.f32 %v1049, 1.0
  %v1051 = vmul.f32 %v1050, %v1035
  %vm1052 = vweird.f32 %v128
  %v1053 = vand.u32 %v1036, 3
  %vm1054 = vcmp.lt.s32.totalorder %v1053, 2
  %vm1055 = vcmp.eq.s32.totalorder %v1053, 0
  %v1056 = vxor.u32 %v1051, 2147483648
  %v1057 = vsel %vm1055, %v1043, %v1056
  %vm1058 = vcmp.eq.s32.totalorder %v1053, 2
  %v1059 = vxor.u32 %v1043, 2147483648
  %v1060 = vsel %vm1058, %v1059, %v1051
  %v1061 = vsel %vm1054, %v1057, %v1060
  %v1062 = vsel %vm1052, nan, %v1061
  %v1063 = vand.u32 2147483647, %v129
  %vm1064 = vcmp.le.f32.partialorder %v1063, 0.7853982
  %vm1065 = vcmp.lt.s32.totalorder %v129, 0
  %v1066 = vand.u32 %v129, 2139095040
  %v1067 = vshrl.u32 %v1066, 23
  %v1068 = vsub.s32 %v1067, 127
  %v1069 = vand.u32 2147483647, %v129
  %v1070 = vand.u32 %v1069, 8388607
  %v1071 = vor.u32 %v1070, 8388608
  %v1072 = vsub.s32 0, %v1071
  %v1073 = vadd.s32 %v1068, 1
  %vm1074 = vcmp.gt.s32.totalorder %v1073, 0
  %v1075 = vsel %vm1074, %v1073, 0
  %v1076 = vshrl.u32 %v1075, 5
  %v1077 = vand.u32 %v1075, 31
  %v1078 = vsub.s32 32, %v1077
  %v1079 = vshrl.u32 683565275, %v1078
  %v1080 = vshll.u32 683565275, %v1077
  %v1081 = vshrl.u32 2475754826, %v1078
  %v1082 = vor.u32 %v1080, %v1081
  %v1083 = vshll.u32 2475754826, %v1077
  %v1084 = vshrl.u32 2131351028, %v1078
  %v1085 = vor.u32 %v1083, %v1084
  %v1086 = vshll.u32 2131351028, %v1077
  %v1087 = vshrl.u32 2102212464, %v1078
  %v1088 = vor.u32 %v1086, %v1087
  %v1089 = vshll.u32 2102212464, %v1077
  %v1090 = vshrl.u32 920167782, %v1078
  %v1091 = vor.u32 %v1089, %v1090
  %v1092 = vshll.u32 920167782, %v1077
  %v1093 = vshrl.u32 1326507024, %v1078
  %v1094 = vor.u32 %v1092, %v1093
  %vm1095 = vcmp.lt.s32.totalorder %v1076, 1
  %vm1096 = vcmp.lt.s32.totalorder %v1076, 2
  %vm1097 = vcmp.lt.s32.totalorder %v1076, 3
  %vm1098 = vcmp.lt.s32.totalorder %v1076, 4
  %v1099 = vsel %vm1095, %v1079, %v1082
  %v1100 = vsel %vm1098, %v1088, 2102212464
  %v1101 = vsel %vm1097, %v1085, %v1100
  %v1102 = vsel %vm1096, %v1099, %v1101
  %v1103 = vsel %vm1095, %v1082, %v1085
  %v1104 = vsel %vm1098, %v1091, 920167782
  %v1105 = vsel %vm1097, %v1088, %v1104
  %v1106 = vsel %vm1096, %v1103, %v1105
  %v1107 = vsel %vm1095, %v1085, %v1088
  %v1108 = vsel %vm1098, %v1094, 1326507024
  %v1109 = vsel %vm1097, %v1091, %v1108
  %v1110 = vsel %vm1096, %v1107, %v1109
  %v1111 = vshll.u32 %v1071, 8
  %v1112 = vand.u32 %v1111, 65535
  %v1113 = vshrl.u32 %v1111, 16
  %v1114 = vand.u32 %v1110, 65535
  %v1115 = vshrl.u32 %v1110, 16
  %v1116 = vmul.u32 %v1112, %v1114
  %v1117 = vmul.u32 %v1112, %v1115
  %v1118 = vmul.u32 %v1113, %v1114
  %v1119 = vmul.u32 %v1113, %v1115
  %v1120 = vshll.u32 %v1117, 16
  %v1121 = vshrl.u32 %v1117, 16
  %v1122 = vshll.u32 %v1118, 16
  %v1123 = vshrl.u32 %v1118, 16
  %vm1124 = vc.u32 %v1116, %v1120
  %v1125 = vsel %vm1124, 1, 0
  %v1126 = vadd.s32 %v1116, %v1120
  %v1127 = vadd.s32 %v1119, %v1125
  %vm1128 = vc.u32 %v1126, %v1122
  %v1129 = vsel %vm1128, 1, 0
  %v1130 = vadd.s32 %v1126, %v1122
  %v1131 = vadd.s32 %v1127, %v1129
  %v1132 = vadd.s32 %v1131, %v1121
  %v1133 = vadd.s32 %v1132, %v1123
  %v1134 = vand.u32 %v1111, 65535
  %v1135 = vshrl.u32 %v1111, 16
  %v1136 = vand.u32 %v1106, 65535
  %v1137 = vshrl.u32 %v1106, 16
  %v1138 = vmul.u32 %v1134, %v1136
  %v1139 = vmul.u32 %v1134, %v1137
  %v1140 = vmul.u32 %v1135, %v1136
  %v1141 = vmul.u32 %v1135, %v1137
  %v1142 = vshll.u32 %v1139, 16
  %v1143 = vshrl.u32 %v1139, 16
  %v1144 = vshll.u32 %v1140, 16
  %v1145 = vshrl.u32 %v1140, 16
  %vm1146 = vc.u32 %v1138, %v1142
  %v1147 = vsel %vm1146, 1, 0
  %v1148 = vadd.s32 %v1138, %v1142
  %v1149 = vadd.s32 %v1141, %v1147
  %vm1150 = vc.u32 %v1148, %v1144
  %v1151 = vsel %vm1150, 1, 0
  %v1152 = vadd.s32 %v1148, %v1144
  %v1153 = vadd.s32 %v1149, %v1151
  %v1154 = vadd.s32 %v1153, %v1143
  %v1155 = vadd.s32 %v1154, %v1145
  %v1156 = vmul.u32 %v1111, %v1102
  %v1157 = vadd.s32 %v1133, %v1152
  %vm1158 = vc.u32 %v1133, %v1152
  %v1159 = vadd.s32 %v1155, 1
  %v1160 = vsel %vm1158, %v1159, %v1155
  %v1161 = vadd.s32 %v1156, %v1160
  %v1162 = vadd.s32 %v1161, 536870912
  %v1163 = vshrl.u32 %v1162, 30
  %v1164 = vshll.u32 %v1163, 30
  %v1165 = vsub.s32 %v1161, %v1164
  %vm1166 = vcmp.lt.s32.totalorder %v1165, 0
  %v1167 = vsub.s32 0, %v1165
  %v1168 = vsel %vm1166, %v1167, %v1165
  %v1169 = vclz %v1168
  %v1170 = vsub.s32 %v1169, 2
  %vm1171 = vcmp.gt.s32.totalorder 0, %v1170
  %v1172 = vsel %vm1171, 0, %v1170
  %v1173 = vsub.s32 32, %v1172
  %v1174 = vshll.u32 %v1165, %v1172
  %v1175 = vshrl.u32 %v1157, %v1173
  %v1176 = vor.u32 %v1174, %v1175
  %v1177 = vsub.s32 4294967266, %v1172
  %v1178 = vadd.s32 %v1177, 127
  %v1179 = vshll.u32 %v1178, 23
  %v1180 = vor.u32 4788187, %v1179
  %v1181 = vand.u32 2147483647, %v1180
  %v1183 = vcvt.s32.f32 %v1176
  %v1184 = vmul.f32 %v1183, %v1181
  %v1185 = vxor.u32 %v1184, 2147483648
  %v1186 = vsel %vm1065, %v1185, %v1184
  %v1187 = vsub.s32 4, %v1163
  %v1188 = vsel %vm1065, %v1187, %v1163
  %v1189 = vsel %vm1064, %v129, %v1186
  %v1190 = vsel %vm1064, 0, %v1188
  %v1191 = vmul.f32 %v1189, %v1189
  %v1192 = vmul.f32 %v1191, -0.001358992
  %v1193 = vadd.f32 %v1192, 0.041655596
  %v1194 = vmul.f32 %v1191, %v1193
  %v1195 = vadd.f32 %v1194, -0.4999988
  %v1196 = vmul.f32 %v1191, %v1195
  %v1197 = vadd.f32 1.0, %v1196
  %v1198 = vmul.f32 %v1189, %v1189
  %v1199 = vmul.f32 %v1198, -0.00019511016
  %v1200 = vadd.f32 %v1199, 0.008332121
  %v1201 = vmul.f32 %v1198, %v1200
  %v1202 = vadd.f32 %v1201, -0.16666654
  %v1203 = vmul.f32 %v1198, %v1202
  %v1204 = vadd.f32 %v1203, 1.0
  %v1205 = vmul.f32 %v1204, %v1189
  %vm1206 = vweird.f32 %v129
  %v1207 = vand.u32 %v1190, 3
  %vm1208 = vcmp.lt.s32.totalorder %v1207, 2
  %vm1209 = vcmp.eq.s32.totalorder %v1207, 0
  %v1210 = vxor.u32 %v1205, 2147483648
  %v1211 = vsel %vm1209, %v1197, %v1210
  %vm1212 = vcmp.eq.s32.totalorder %v1207, 2
  %v1213 = vxor.u32 %v1197, 2147483648
  %v1214 = vsel %vm1212, %v1213, %v1205
  %v1215 = vsel %vm1208, %v1211, %v1214
  %v1216 = vsel %vm1206, nan, %v1215
  %v1217 = vand.u32 2147483647, %v130
  %vm1218 = vcmp.le.f32.partialorder %v1217, 0.7853982
  %vm1219 = vcmp.lt.s32.totalorder %v130, 0
  %v1220 = vand.u32 %v130, 2139095040
  %v1221 = vshrl.u32 %v1220, 23
  %v1222 = vsub.s32 %v1221, 127
  %v1223 = vand.u32 2147483647, %v130
  %v1224 = vand.u32 %v1223, 8388607
  %v1225 = vor.u32 %v1224, 8388608
  %v1226 = vsub.s32 0, %v1225
  %v1227 = vadd.s32 %v1222, 1
  %vm1228 = vcmp.gt.s32.totalorder %v1227, 0
  %v1229 = vsel %vm1228, %v1227, 0
  %v1230 = vshrl.u32 %v1229, 5
  %v1231 = vand.u32 %v1229, 31
  %v1232 = vsub.s32 32, %v1231
  %v1233 = vshrl.u32 683565275, %v1232
  %v1234 = vshll.u32 683565275, %v1231
  %v1235 = vshrl.u32 2475754826, %v1232
  %v1236 = vor.u32 %v1234, %v1235
  %v1237 = vshll.u32 2475754826, %v1231
  %v1238 = vshrl.u32 2131351028, %v1232
  %v1239 = vor.u32 %v1237, %v1238
  %v1240 = vshll.u32 2131351028, %v1231
  %v1241 = vshrl.u32 2102212464, %v1232
  %v1242 = vor.u32 %v1240, %v1241
  %v1243 = vshll.u32 2102212464, %v1231
  %v1244 = vshrl.u32 920167782, %v1232
  %v1245 = vor.u32 %v1243, %v1244
  %v1246 = vshll.u32 920167782, %v1231
  %v1247 = vshrl.u32 1326507024, %v1232
  %v1248 = vor.u32 %v1246, %v1247
  %vm1249 = vcmp.lt.s32.totalorder %v1230, 1
  %vm1250 = vcmp.lt.s32.totalorder %v1230, 2
  %vm1251 = vcmp.lt.s32.totalorder %v1230, 3
  %vm1252 = vcmp.lt.s32.totalorder %v1230, 4
  %v1253 = vsel %vm1249, %v1233, %v1236
  %v1254 = vsel %vm1252, %v1242, 2102212464
  %v1255 = vsel %vm1251, %v1239, %v1254
  %v1256 = vsel %vm1250, %v1253, %v1255
  %v1257 = vsel %vm1249, %v1236, %v1239
  %v1258 = vsel %vm1252, %v1245, 920167782
  %v1259 = vsel %vm1251, %v1242, %v1258
  %v1260 = vsel %vm1250, %v1257, %v1259
  %v1261 = vsel %vm1249, %v1239, %v1242
  %v1262 = vsel %vm1252, %v1248, 1326507024
  %v1263 = vsel %vm1251, %v1245, %v1262
  %v1264 = vsel %vm1250, %v1261, %v1263
  %v1265 = vshll.u32 %v1225, 8
  %v1266 = vand.u32 %v1265, 65535
  %v1267 = vshrl.u32 %v1265, 16
  %v1268 = vand.u32 %v1264, 65535
  %v1269 = vshrl.u32 %v1264, 16
  %v1270 = vmul.u32 %v1266, %v1268
  %v1271 = vmul.u32 %v1266, %v1269
  %v1272 = vmul.u32 %v1267, %v1268
  %v1273 = vmul.u32 %v1267, %v1269
  %v1274 = vshll.u32 %v1271, 16
  %v1275 = vshrl.u32 %v1271, 16
  %v1276 = vshll.u32 %v1272, 16
  %v1277 = vshrl.u32 %v1272, 16
  %vm1278 = vc.u32 %v1270, %v1274
  %v1279 = vsel %vm1278, 1, 0
  %v1280 = vadd.s32 %v1270, %v1274
  %v1281 = vadd.s32 %v1273, %v1279
  %vm1282 = vc.u32 %v1280, %v1276
  %v1283 = vsel %vm1282, 1, 0
  %v1284 = vadd.s32 %v1280, %v1276
  %v1285 = vadd.s32 %v1281, %v1283
  %v1286 = vadd.s32 %v1285, %v1275
  %v1287 = vadd.s32 %v1286, %v1277
  %v1288 = vand.u32 %v1265, 65535
  %v1289 = vshrl.u32 %v1265, 16
  %v1290 = vand.u32 %v1260, 65535
  %v1291 = vshrl.u32 %v1260, 16
  %v1292 = vmul.u32 %v1288, %v1290
  %v1293 = vmul.u32 %v1288, %v1291
  %v1294 = vmul.u32 %v1289, %v1290
  %v1295 = vmul.u32 %v1289, %v1291
  %v1296 = vshll.u32 %v1293, 16
  %v1297 = vshrl.u32 %v1293, 16
  %v1298 = vshll.u32 %v1294, 16
  %v1299 = vshrl.u32 %v1294, 16
  %vm1300 = vc.u32 %v1292, %v1296
  %v1301 = vsel %vm1300, 1, 0
  %v1302 = vadd.s32 %v1292, %v1296
  %v1303 = vadd.s32 %v1295, %v1301
  %vm1304 = vc.u32 %v1302, %v1298
  %v1305 = vsel %vm1304, 1, 0
  %v1306 = vadd.s32 %v1302, %v1298
  %v1307 = vadd.s32 %v1303, %v1305
  %v1308 = vadd.s32 %v1307, %v1297
  %v1309 = vadd.s32 %v1308, %v1299
  %v1310 = vmul.u32 %v1265, %v1256
  %v1311 = vadd.s32 %v1287, %v1306
  %vm1312 = vc.u32 %v1287, %v1306
  %v1313 = vadd.s32 %v1309, 1
  %v1314 = vsel %vm1312, %v1313, %v1309
  %v1315 = vadd.s32 %v1310, %v1314
  %v1316 = vadd.s32 %v1315, 536870912
  %v1317 = vshrl.u32 %v1316, 30
  %v1318 = vshll.u32 %v1317, 30
  %v1319 = vsub.s32 %v1315, %v1318
  %vm1320 = vcmp.lt.s32.totalorder %v1319, 0
  %v1321 = vsub.s32 0, %v1319
  %v1322 = vsel %vm1320, %v1321, %v1319
  %v1323 = vclz %v1322
  %v1324 = vsub.s32 %v1323, 2
  %vm1325 = vcmp.gt.s32.totalorder 0, %v1324
  %v1326 = vsel %vm1325, 0, %v1324
  %v1327 = vsub.s32 32, %v1326
  %v1328 = vshll.u32 %v1319, %v1326
  %v1329 = vshrl.u32 %v1311, %v1327
  %v1330 = vor.u32 %v1328, %v1329
  %v1331 = vsub.s32 4294967266, %v1326
  %v1332 = vadd.s32 %v1331, 127
  %v1333 = vshll.u32 %v1332, 23
  %v1334 = vor.u32 4788187, %v1333
  %v1335 = vand.u32 2147483647, %v1334
  %v1337 = vcvt.s32.f32 %v1330
  %v1338 = vmul.f32 %v1337, %v1335
  %v1339 = vxor.u32 %v1338, 2147483648
  %v1340 = vsel %vm1219, %v1339, %v1338
  %v1341 = vsub.s32 4, %v1317
  %v1342 = vsel %vm1219, %v1341, %v1317
  %v1343 = vsel %vm1218, %v130, %v1340
  %v1344 = vsel %vm1218, 0, %v1342
  %v1345 = vmul.f32 %v1343, %v1343
  %v1346 = vmul.f32 %v1345, -0.001358992
  %v1347 = vadd.f32 %v1346, 0.041655596
  %v1348 = vmul.f32 %v1345, %v1347
  %v1349 = vadd.f32 %v1348, -0.4999988
  %v1350 = vmul.f32 %v1345, %v1349
  %v1351 = vadd.f32 1.0, %v1350
  %v1352 = vmul.f32 %v1343, %v1343
  %v1353 = vmul.f32 %v1352, -0.00019511016
  %v1354 = vadd.f32 %v1353, 0.008332121
  %v1355 = vmul.f32 %v1352, %v1354
  %v1356 = vadd.f32 %v1355, -0.16666654
  %v1357 = vmul.f32 %v1352, %v1356
  %v1358 = vadd.f32 %v1357, 1.0
  %v1359 = vmul.f32 %v1358, %v1343
  %vm1360 = vweird.f32 %v130
  %v1361 = vand.u32 %v1344, 3
  %vm1362 = vcmp.lt.s32.totalorder %v1361, 2
  %vm1363 = vcmp.eq.s32.totalorder %v1361, 0
  %v1364 = vxor.u32 %v1359, 2147483648
  %v1365 = vsel %vm1363, %v1351, %v1364
  %vm1366 = vcmp.eq.s32.totalorder %v1361, 2
  %v1367 = vxor.u32 %v1351, 2147483648
  %v1368 = vsel %vm1366, %v1367, %v1359
  %v1369 = vsel %vm1362, %v1365, %v1368
  %v1370 = vsel %vm1360, nan, %v1369
  %v1371 = vand.u32 2147483647, %v131
  %vm1372 = vcmp.le.f32.partialorder %v1371, 0.7853982
  %vm1373 = vcmp.lt.s32.totalorder %v131, 0
  %v1374 = vand.u32 %v131, 2139095040
  %v1375 = vshrl.u32 %v1374, 23
  %v1376 = vsub.s32 %v1375, 127
  %v1377 = vand.u32 2147483647, %v131
  %v1378 = vand.u32 %v1377, 8388607
  %v1379 = vor.u32 %v1378, 8388608
  %v1380 = vsub.s32 0, %v1379
  %v1381 = vadd.s32 %v1376, 1
  %vm1382 = vcmp.gt.s32.totalorder %v1381, 0
  %v1383 = vsel %vm1382, %v1381, 0
  %v1384 = vshrl.u32 %v1383, 5
  %v1385 = vand.u32 %v1383, 31
  %v1386 = vsub.s32 32, %v1385
  %v1387 = vshrl.u32 683565275, %v1386
  %v1388 = vshll.u32 683565275, %v1385
  %v1389 = vshrl.u32 2475754826, %v1386
  %v1390 = vor.u32 %v1388, %v1389
  %v1391 = vshll.u32 2475754826, %v1385
  %v1392 = vshrl.u32 2131351028, %v1386
  %v1393 = vor.u32 %v1391, %v1392
  %v1394 = vshll.u32 2131351028, %v1385
  %v1395 = vshrl.u32 2102212464, %v1386
  %v1396 = vor.u32 %v1394, %v1395
  %v1397 = vshll.u32 2102212464, %v1385
  %v1398 = vshrl.u32 920167782, %v1386
  %v1399 = vor.u32 %v1397, %v1398
  %v1400 = vshll.u32 920167782, %v1385
  %v1401 = vshrl.u32 1326507024, %v1386
  %v1402 = vor.u32 %v1400, %v1401
  %vm1403 = vcmp.lt.s32.totalorder %v1384, 1
  %vm1404 = vcmp.lt.s32.totalorder %v1384, 2
  %vm1405 = vcmp.lt.s32.totalorder %v1384, 3
  %vm1406 = vcmp.lt.s32.totalorder %v1384, 4
  %v1407 = vsel %vm1403, %v1387, %v1390
  %v1408 = vsel %vm1406, %v1396, 2102212464
  %v1409 = vsel %vm1405, %v1393, %v1408
  %v1410 = vsel %vm1404, %v1407, %v1409
  %v1411 = vsel %vm1403, %v1390, %v1393
  %v1412 = vsel %vm1406, %v1399, 920167782
  %v1413 = vsel %vm1405, %v1396, %v1412
  %v1414 = vsel %vm1404, %v1411, %v1413
  %v1415 = vsel %vm1403, %v1393, %v1396
  %v1416 = vsel %vm1406, %v1402, 1326507024
  %v1417 = vsel %vm1405, %v1399, %v1416
  %v1418 = vsel %vm1404, %v1415, %v1417
  %v1419 = vshll.u32 %v1379, 8
  %v1420 = vand.u32 %v1419, 65535
  %v1421 = vshrl.u32 %v1419, 16
  %v1422 = vand.u32 %v1418, 65535
  %v1423 = vshrl.u32 %v1418, 16
  %v1424 = vmul.u32 %v1420, %v1422
  %v1425 = vmul.u32 %v1420, %v1423
  %v1426 = vmul.u32 %v1421, %v1422
  %v1427 = vmul.u32 %v1421, %v1423
  %v1428 = vshll.u32 %v1425, 16
  %v1429 = vshrl.u32 %v1425, 16
  %v1430 = vshll.u32 %v1426, 16
  %v1431 = vshrl.u32 %v1426, 16
  %vm1432 = vc.u32 %v1424, %v1428
  %v1433 = vsel %vm1432, 1, 0
  %v1434 = vadd.s32 %v1424, %v1428
  %v1435 = vadd.s32 %v1427, %v1433
  %vm1436 = vc.u32 %v1434, %v1430
  %v1437 = vsel %vm1436, 1, 0
  %v1438 = vadd.s32 %v1434, %v1430
  %v1439 = vadd.s32 %v1435, %v1437
  %v1440 = vadd.s32 %v1439, %v1429
  %v1441 = vadd.s32 %v1440, %v1431
  %v1442 = vand.u32 %v1419, 65535
  %v1443 = vshrl.u32 %v1419, 16
  %v1444 = vand.u32 %v1414, 65535
  %v1445 = vshrl.u32 %v1414, 16
  %v1446 = vmul.u32 %v1442, %v1444
  %v1447 = vmul.u32 %v1442, %v1445
  %v1448 = vmul.u32 %v1443, %v1444
  %v1449 = vmul.u32 %v1443, %v1445
  %v1450 = vshll.u32 %v1447, 16
  %v1451 = vshrl.u32 %v1447, 16
  %v1452 = vshll.u32 %v1448, 16
  %v1453 = vshrl.u32 %v1448, 16
  %vm1454 = vc.u32 %v1446, %v1450
  %v1455 = vsel %vm1454, 1, 0
  %v1456 = vadd.s32 %v1446, %v1450
  %v1457 = vadd.s32 %v1449, %v1455
  %vm1458 = vc.u32 %v1456, %v1452
  %v1459 = vsel %vm1458, 1, 0
  %v1460 = vadd.s32 %v1456, %v1452
  %v1461 = vadd.s32 %v1457, %v1459
  %v1462 = vadd.s32 %v1461, %v1451
  %v1463 = vadd.s32 %v1462, %v1453
  %v1464 = vmul.u32 %v1419, %v1410
  %v1465 = vadd.s32 %v1441, %v1460
  %vm1466 = vc.u32 %v1441, %v1460
  %v1467 = vadd.s32 %v1463, 1
  %v1468 = vsel %vm1466, %v1467, %v1463
  %v1469 = vadd.s32 %v1464, %v1468
  %v1470 = vadd.s32 %v1469, 536870912
  %v1471 = vshrl.u32 %v1470, 30
  %v1472 = vshll.u32 %v1471, 30
  %v1473 = vsub.s32 %v1469, %v1472
  %vm1474 = vcmp.lt.s32.totalorder %v1473, 0
  %v1475 = vsub.s32 0, %v1473
  %v1476 = vsel %vm1474, %v1475, %v1473
  %v1477 = vclz %v1476
  %v1478 = vsub.s32 %v1477, 2
  %vm1479 = vcmp.gt.s32.totalorder 0, %v1478
  %v1480 = vsel %vm1479, 0, %v1478
  %v1481 = vsub.s32 32, %v1480
  %v1482 = vshll.u32 %v1473, %v1480
  %v1483 = vshrl.u32 %v1465, %v1481
  %v1484 = vor.u32 %v1482, %v1483
  %v1485 = vsub.s32 4294967266, %v1480
  %v1486 = vadd.s32 %v1485, 127
  %v1487 = vshll.u32 %v1486, 23
  %v1488 = vor.u32 4788187, %v1487
  %v1489 = vand.u32 2147483647, %v1488
  %v1491 = vcvt.s32.f32 %v1484
  %v1492 = vmul.f32 %v1491, %v1489
  %v1493 = vxor.u32 %v1492, 2147483648
  %v1494 = vsel %vm1373, %v1493, %v1492
  %v1495 = vsub.s32 4, %v1471
  %v1496 = vsel %vm1373, %v1495, %v1471
  %v1497 = vsel %vm1372, %v131, %v1494
  %v1498 = vsel %vm1372, 0, %v1496
  %v1499 = vmul.f32 %v1497, %v1497
  %v1500 = vmul.f32 %v1499, -0.001358992
  %v1501 = vadd.f32 %v1500, 0.041655596
  %v1502 = vmul.f32 %v1499, %v1501
  %v1503 = vadd.f32 %v1502, -0.4999988
  %v1504 = vmul.f32 %v1499, %v1503
  %v1505 = vadd.f32 1.0, %v1504
  %v1506 = vmul.f32 %v1497, %v1497
  %v1507 = vmul.f32 %v1506, -0.00019511016
  %v1508 = vadd.f32 %v1507, 0.008332121
  %v1509 = vmul.f32 %v1506, %v1508
  %v1510 = vadd.f32 %v1509, -0.16666654
  %v1511 = vmul.f32 %v1506, %v1510
  %v1512 = vadd.f32 %v1511, 1.0
  %v1513 = vmul.f32 %v1512, %v1497
  %vm1514 = vweird.f32 %v131
  %v1515 = vand.u32 %v1498, 3
  %vm1516 = vcmp.lt.s32.totalorder %v1515, 2
  %vm1517 = vcmp.eq.s32.totalorder %v1515, 0
  %v1518 = vxor.u32 %v1513, 2147483648
  %v1519 = vsel %vm1517, %v1505, %v1518
  %vm1520 = vcmp.eq.s32.totalorder %v1515, 2
  %v1521 = vxor.u32 %v1505, 2147483648
  %v1522 = vsel %vm1520, %v1521, %v1513
  %v1523 = vsel %vm1516, %v1519, %v1522
  %v1524 = vsel %vm1514, nan, %v1523
  %v1525 = vand.u32 2147483647, %v132
  %vm1526 = vcmp.le.f32.partialorder %v1525, 0.7853982
  %vm1527 = vcmp.lt.s32.totalorder %v132, 0
  %v1528 = vand.u32 %v132, 2139095040
  %v1529 = vshrl.u32 %v1528, 23
  %v1530 = vsub.s32 %v1529, 127
  %v1531 = vand.u32 2147483647, %v132
  %v1532 = vand.u32 %v1531, 8388607
  %v1533 = vor.u32 %v1532, 8388608
  %v1534 = vsub.s32 0, %v1533
  %v1535 = vadd.s32 %v1530, 1
  %vm1536 = vcmp.gt.s32.totalorder %v1535, 0
  %v1537 = vsel %vm1536, %v1535, 0
  %v1538 = vshrl.u32 %v1537, 5
  %v1539 = vand.u32 %v1537, 31
  %v1540 = vsub.s32 32, %v1539
  %v1541 = vshrl.u32 683565275, %v1540
  %v1542 = vshll.u32 683565275, %v1539
  %v1543 = vshrl.u32 2475754826, %v1540
  %v1544 = vor.u32 %v1542, %v1543
  %v1545 = vshll.u32 2475754826, %v1539
  %v1546 = vshrl.u32 2131351028, %v1540
  %v1547 = vor.u32 %v1545, %v1546
  %v1548 = vshll.u32 2131351028, %v1539
  %v1549 = vshrl.u32 2102212464, %v1540
  %v1550 = vor.u32 %v1548, %v1549
  %v1551 = vshll.u32 2102212464, %v1539
  %v1552 = vshrl.u32 920167782, %v1540
  %v1553 = vor.u32 %v1551, %v1552
  %v1554 = vshll.u32 920167782, %v1539
  %v1555 = vshrl.u32 1326507024, %v1540
  %v1556 = vor.u32 %v1554, %v1555
  %vm1557 = vcmp.lt.s32.totalorder %v1538, 1
  %vm1558 = vcmp.lt.s32.totalorder %v1538, 2
  %vm1559 = vcmp.lt.s32.totalorder %v1538, 3
  %vm1560 = vcmp.lt.s32.totalorder %v1538, 4
  %v1561 = vsel %vm1557, %v1541, %v1544
  %v1562 = vsel %vm1560, %v1550, 2102212464
  %v1563 = vsel %vm1559, %v1547, %v1562
  %v1564 = vsel %vm1558, %v1561, %v1563
  %v1565 = vsel %vm1557, %v1544, %v1547
  %v1566 = vsel %vm1560, %v1553, 920167782
  %v1567 = vsel %vm1559, %v1550, %v1566
  %v1568 = vsel %vm1558, %v1565, %v1567
  %v1569 = vsel %vm1557, %v1547, %v1550
  %v1570 = vsel %vm1560, %v1556, 1326507024
  %v1571 = vsel %vm1559, %v1553, %v1570
  %v1572 = vsel %vm1558, %v1569, %v1571
  %v1573 = vshll.u32 %v1533, 8
  %v1574 = vand.u32 %v1573, 65535
  %v1575 = vshrl.u32 %v1573, 16
  %v1576 = vand.u32 %v1572, 65535
  %v1577 = vshrl.u32 %v1572, 16
  %v1578 = vmul.u32 %v1574, %v1576
  %v1579 = vmul.u32 %v1574, %v1577
  %v1580 = vmul.u32 %v1575, %v1576
  %v1581 = vmul.u32 %v1575, %v1577
  %v1582 = vshll.u32 %v1579, 16
  %v1583 = vshrl.u32 %v1579, 16
  %v1584 = vshll.u32 %v1580, 16
  %v1585 = vshrl.u32 %v1580, 16
  %vm1586 = vc.u32 %v1578, %v1582
  %v1587 = vsel %vm1586, 1, 0
  %v1588 = vadd.s32 %v1578, %v1582
  %v1589 = vadd.s32 %v1581, %v1587
  %vm1590 = vc.u32 %v1588, %v1584
  %v1591 = vsel %vm1590, 1, 0
  %v1592 = vadd.s32 %v1588, %v1584
  %v1593 = vadd.s32 %v1589, %v1591
  %v1594 = vadd.s32 %v1593, %v1583
  %v1595 = vadd.s32 %v1594, %v1585
  %v1596 = vand.u32 %v1573, 65535
  %v1597 = vshrl.u32 %v1573, 16
  %v1598 = vand.u32 %v1568, 65535
  %v1599 = vshrl.u32 %v1568, 16
  %v1600 = vmul.u32 %v1596, %v1598
  %v1601 = vmul.u32 %v1596, %v1599
  %v1602 = vmul.u32 %v1597, %v1598
  %v1603 = vmul.u32 %v1597, %v1599
  %v1604 = vshll.u32 %v1601, 16
  %v1605 = vshrl.u32 %v1601, 16
  %v1606 = vshll.u32 %v1602, 16
  %v1607 = vshrl.u32 %v1602, 16
  %vm1608 = vc.u32 %v1600, %v1604
  %v1609 = vsel %vm1608, 1, 0
  %v1610 = vadd.s32 %v1600, %v1604
  %v1611 = vadd.s32 %v1603, %v1609
  %vm1612 = vc.u32 %v1610, %v1606
  %v1613 = vsel %vm1612, 1, 0
  %v1614 = vadd.s32 %v1610, %v1606
  %v1615 = vadd.s32 %v1611, %v1613
  %v1616 = vadd.s32 %v1615, %v1605
  %v1617 = vadd.s32 %v1616, %v1607
  %v1618 = vmul.u32 %v1573, %v1564
  %v1619 = vadd.s32 %v1595, %v1614
  %vm1620 = vc.u32 %v1595, %v1614
  %v1621 = vadd.s32 %v1617, 1
  %v1622 = vsel %vm1620, %v1621, %v1617
  %v1623 = vadd.s32 %v1618, %v1622
  %v1624 = vadd.s32 %v1623, 536870912
  %v1625 = vshrl.u32 %v1624, 30
  %v1626 = vshll.u32 %v1625, 30
  %v1627 = vsub.s32 %v1623, %v1626
  %vm1628 = vcmp.lt.s32.totalorder %v1627, 0
  %v1629 = vsub.s32 0, %v1627
  %v1630 = vsel %vm1628, %v1629, %v1627
  %v1631 = vclz %v1630
  %v1632 = vsub.s32 %v1631, 2
  %vm1633 = vcmp.gt.s32.totalorder 0, %v1632
  %v1634 = vsel %vm1633, 0, %v1632
  %v1635 = vsub.s32 32, %v1634
  %v1636 = vshll.u32 %v1627, %v1634
  %v1637 = vshrl.u32 %v1619, %v1635
  %v1638 = vor.u32 %v1636, %v1637
  %v1639 = vsub.s32 4294967266, %v1634
  %v1640 = vadd.s32 %v1639, 127
  %v1641 = vshll.u32 %v1640, 23
  %v1642 = vor.u32 4788187, %v1641
  %v1643 = vand.u32 2147483647, %v1642
  %v1645 = vcvt.s32.f32 %v1638
  %v1646 = vmul.f32 %v1645, %v1643
  %v1647 = vxor.u32 %v1646, 2147483648
  %v1648 = vsel %vm1527, %v1647, %v1646
  %v1649 = vsub.s32 4, %v1625
  %v1650 = vsel %vm1527, %v1649, %v1625
  %v1651 = vsel %vm1526, %v132, %v1648
  %v1652 = vsel %vm1526, 0, %v1650
  %v1653 = vmul.f32 %v1651, %v1651
  %v1654 = vmul.f32 %v1653, -0.001358992
  %v1655 = vadd.f32 %v1654, 0.041655596
  %v1656 = vmul.f32 %v1653, %v1655
  %v1657 = vadd.f32 %v1656, -0.4999988
  %v1658 = vmul.f32 %v1653, %v1657
  %v1659 = vadd.f32 1.0, %v1658
  %v1660 = vmul.f32 %v1651, %v1651
  %v1661 = vmul.f32 %v1660, -0.00019511016
  %v1662 = vadd.f32 %v1661, 0.008332121
  %v1663 = vmul.f32 %v1660, %v1662
  %v1664 = vadd.f32 %v1663, -0.16666654
  %v1665 = vmul.f32 %v1660, %v1664
  %v1666 = vadd.f32 %v1665, 1.0
  %v1667 = vmul.f32 %v1666, %v1651
  %vm1668 = vweird.f32 %v132
  %v1669 = vand.u32 %v1652, 3
  %vm1670 = vcmp.lt.s32.totalorder %v1669, 2
  %vm1671 = vcmp.eq.s32.totalorder %v1669, 0
  %v1672 = vxor.u32 %v1667, 2147483648
  %v1673 = vsel %vm1671, %v1659, %v1672
  %vm1674 = vcmp.eq.s32.totalorder %v1669, 2
  %v1675 = vxor.u32 %v1659, 2147483648
  %v1676 = vsel %vm1674, %v1675, %v1667
  %v1677 = vsel %vm1670, %v1673, %v1676
  %v1678 = vsel %vm1668, nan, %v1677
  %v1679 = vand.u32 2147483647, %v133
  %vm1680 = vcmp.le.f32.partialorder %v1679, 0.7853982
  %vm1681 = vcmp.lt.s32.totalorder %v133, 0
  %v1682 = vand.u32 %v133, 2139095040
  %v1683 = vshrl.u32 %v1682, 23
  %v1684 = vsub.s32 %v1683, 127
  %v1685 = vand.u32 2147483647, %v133
  %v1686 = vand.u32 %v1685, 8388607
  %v1687 = vor.u32 %v1686, 8388608
  %v1688 = vsub.s32 0, %v1687
  %v1689 = vadd.s32 %v1684, 1
  %vm1690 = vcmp.gt.s32.totalorder %v1689, 0
  %v1691 = vsel %vm1690, %v1689, 0
  %v1692 = vshrl.u32 %v1691, 5
  %v1693 = vand.u32 %v1691, 31
  %v1694 = vsub.s32 32, %v1693
  %v1695 = vshrl.u32 683565275, %v1694
  %v1696 = vshll.u32 683565275, %v1693
  %v1697 = vshrl.u32 2475754826, %v1694
  %v1698 = vor.u32 %v1696, %v1697
  %v1699 = vshll.u32 2475754826, %v1693
  %v1700 = vshrl.u32 2131351028, %v1694
  %v1701 = vor.u32 %v1699, %v1700
  %v1702 = vshll.u32 2131351028, %v1693
  %v1703 = vshrl.u32 2102212464, %v1694
  %v1704 = vor.u32 %v1702, %v1703
  %v1705 = vshll.u32 2102212464, %v1693
  %v1706 = vshrl.u32 920167782, %v1694
  %v1707 = vor.u32 %v1705, %v1706
  %v1708 = vshll.u32 920167782, %v1693
  %v1709 = vshrl.u32 1326507024, %v1694
  %v1710 = vor.u32 %v1708, %v1709
  %vm1711 = vcmp.lt.s32.totalorder %v1692, 1
  %vm1712 = vcmp.lt.s32.totalorder %v1692, 2
  %vm1713 = vcmp.lt.s32.totalorder %v1692, 3
  %vm1714 = vcmp.lt.s32.totalorder %v1692, 4
  %v1715 = vsel %vm1711, %v1695, %v1698
  %v1716 = vsel %vm1714, %v1704, 2102212464
  %v1717 = vsel %vm1713, %v1701, %v1716
  %v1718 = vsel %vm1712, %v1715, %v1717
  %v1719 = vsel %vm1711, %v1698, %v1701
  %v1720 = vsel %vm1714, %v1707, 920167782
  %v1721 = vsel %vm1713, %v1704, %v1720
  %v1722 = vsel %vm1712, %v1719, %v1721
  %v1723 = vsel %vm1711, %v1701, %v1704
  %v1724 = vsel %vm1714, %v1710, 1326507024
  %v1725 = vsel %vm1713, %v1707, %v1724
  %v1726 = vsel %vm1712, %v1723, %v1725
  %v1727 = vshll.u32 %v1687, 8
  %v1728 = vand.u32 %v1727, 65535
  %v1729 = vshrl.u32 %v1727, 16
  %v1730 = vand.u32 %v1726, 65535
  %v1731 = vshrl.u32 %v1726, 16
  %v1732 = vmul.u32 %v1728, %v1730
  %v1733 = vmul.u32 %v1728, %v1731
  %v1734 = vmul.u32 %v1729, %v1730
  %v1735 = vmul.u32 %v1729, %v1731
  %v1736 = vshll.u32 %v1733, 16
  %v1737 = vshrl.u32 %v1733, 16
  %v1738 = vshll.u32 %v1734, 16
  %v1739 = vshrl.u32 %v1734, 16
  %vm1740 = vc.u32 %v1732, %v1736
  %v1741 = vsel %vm1740, 1, 0
  %v1742 = vadd.s32 %v1732, %v1736
  %v1743 = vadd.s32 %v1735, %v1741
  %vm1744 = vc.u32 %v1742, %v1738
  %v1745 = vsel %vm1744, 1, 0
  %v1746 = vadd.s32 %v1742, %v1738
  %v1747 = vadd.s32 %v1743, %v1745
  %v1748 = vadd.s32 %v1747, %v1737
  %v1749 = vadd.s32 %v1748, %v1739
  %v1750 = vand.u32 %v1727, 65535
  %v1751 = vshrl.u32 %v1727, 16
  %v1752 = vand.u32 %v1722, 65535
  %v1753 = vshrl.u32 %v1722, 16
  %v1754 = vmul.u32 %v1750, %v1752
  %v1755 = vmul.u32 %v1750, %v1753
  %v1756 = vmul.u32 %v1751, %v1752
  %v1757 = vmul.u32 %v1751, %v1753
  %v1758 = vshll.u32 %v1755, 16
  %v1759 = vshrl.u32 %v1755, 16
  %v1760 = vshll.u32 %v1756, 16
  %v1761 = vshrl.u32 %v1756, 16
  %vm1762 = vc.u32 %v1754, %v1758
  %v1763 = vsel %vm1762, 1, 0
  %v1764 = vadd.s32 %v1754, %v1758
  %v1765 = vadd.s32 %v1757, %v1763
  %vm1766 = vc.u32 %v1764, %v1760
  %v1767 = vsel %vm1766, 1, 0
  %v1768 = vadd.s32 %v1764, %v1760
  %v1769 = vadd.s32 %v1765, %v1767
  %v1770 = vadd.s32 %v1769, %v1759
  %v1771 = vadd.s32 %v1770, %v1761
  %v1772 = vmul.u32 %v1727, %v1718
  %v1773 = vadd.s32 %v1749, %v1768
  %vm1774 = vc.u32 %v1749, %v1768
  %v1775 = vadd.s32 %v1771, 1
  %v1776 = vsel %vm1774, %v1775, %v1771
  %v1777 = vadd.s32 %v1772, %v1776
  %v1778 = vadd.s32 %v1777, 536870912
  %v1779 = vshrl.u32 %v1778, 30
  %v1780 = vshll.u32 %v1779, 30
  %v1781 = vsub.s32 %v1777, %v1780
  %vm1782 = vcmp.lt.s32.totalorder %v1781, 0
  %v1783 = vsub.s32 0, %v1781
  %v1784 = vsel %vm1782, %v1783, %v1781
  %v1785 = vclz %v1784
  %v1786 = vsub.s32 %v1785, 2
  %vm1787 = vcmp.gt.s32.totalorder 0, %v1786
  %v1788 = vsel %vm1787, 0, %v1786
  %v1789 = vsub.s32 32, %v1788
  %v1790 = vshll.u32 %v1781, %v1788
  %v1791 = vshrl.u32 %v1773, %v1789
  %v1792 = vor.u32 %v1790, %v1791
  %v1793 = vsub.s32 4294967266, %v1788
  %v1794 = vadd.s32 %v1793, 127
  %v1795 = vshll.u32 %v1794, 23
  %v1796 = vor.u32 4788187, %v1795
  %v1797 = vand.u32 2147483647, %v1796
  %v1799 = vcvt.s32.f32 %v1792
  %v1800 = vmul.f32 %v1799, %v1797
  %v1801 = vxor.u32 %v1800, 2147483648
  %v1802 = vsel %vm1681, %v1801, %v1800
  %v1803 = vsub.s32 4, %v1779
  %v1804 = vsel %vm1681, %v1803, %v1779
  %v1805 = vsel %vm1680, %v133, %v1802
  %v1806 = vsel %vm1680, 0, %v1804
  %v1807 = vmul.f32 %v1805, %v1805
  %v1808 = vmul.f32 %v1807, -0.001358992
  %v1809 = vadd.f32 %v1808, 0.041655596
  %v1810 = vmul.f32 %v1807, %v1809
  %v1811 = vadd.f32 %v1810, -0.4999988
  %v1812 = vmul.f32 %v1807, %v1811
  %v1813 = vadd.f32 1.0, %v1812
  %v1814 = vmul.f32 %v1805, %v1805
  %v1815 = vmul.f32 %v1814, -0.00019511016
  %v1816 = vadd.f32 %v1815, 0.008332121
  %v1817 = vmul.f32 %v1814, %v1816
  %v1818 = vadd.f32 %v1817, -0.16666654
  %v1819 = vmul.f32 %v1814, %v1818
  %v1820 = vadd.f32 %v1819, 1.0
  %v1821 = vmul.f32 %v1820, %v1805
  %vm1822 = vweird.f32 %v133
  %v1823 = vand.u32 %v1806, 3
  %vm1824 = vcmp.lt.s32.totalorder %v1823, 2
  %vm1825 = vcmp.eq.s32.totalorder %v1823, 0
  %v1826 = vxor.u32 %v1821, 2147483648
  %v1827 = vsel %vm1825, %v1813, %v1826
  %vm1828 = vcmp.eq.s32.totalorder %v1823, 2
  %v1829 = vxor.u32 %v1813, 2147483648
  %v1830 = vsel %vm1828, %v1829, %v1821
  %v1831 = vsel %vm1824, %v1827, %v1830
  %v1832 = vsel %vm1822, nan, %v1831
  %v1833 = vand.u32 2147483647, %v134
  %vm1834 = vcmp.le.f32.partialorder %v1833, 0.7853982
  %vm1835 = vcmp.lt.s32.totalorder %v134, 0
  %v1836 = vand.u32 %v134, 2139095040
  %v1837 = vshrl.u32 %v1836, 23
  %v1838 = vsub.s32 %v1837, 127
  %v1839 = vand.u32 2147483647, %v134
  %v1840 = vand.u32 %v1839, 8388607
  %v1841 = vor.u32 %v1840, 8388608
  %v1842 = vsub.s32 0, %v1841
  %v1843 = vadd.s32 %v1838, 1
  %vm1844 = vcmp.gt.s32.totalorder %v1843, 0
  %v1845 = vsel %vm1844, %v1843, 0
  %v1846 = vshrl.u32 %v1845, 5
  %v1847 = vand.u32 %v1845, 31
  %v1848 = vsub.s32 32, %v1847
  %v1849 = vshrl.u32 683565275, %v1848
  %v1850 = vshll.u32 683565275, %v1847
  %v1851 = vshrl.u32 2475754826, %v1848
  %v1852 = vor.u32 %v1850, %v1851
  %v1853 = vshll.u32 2475754826, %v1847
  %v1854 = vshrl.u32 2131351028, %v1848
  %v1855 = vor.u32 %v1853, %v1854
  %v1856 = vshll.u32 2131351028, %v1847
  %v1857 = vshrl.u32 2102212464, %v1848
  %v1858 = vor.u32 %v1856, %v1857
  %v1859 = vshll.u32 2102212464, %v1847
  %v1860 = vshrl.u32 920167782, %v1848
  %v1861 = vor.u32 %v1859, %v1860
  %v1862 = vshll.u32 920167782, %v1847
  %v1863 = vshrl.u32 1326507024, %v1848
  %v1864 = vor.u32 %v1862, %v1863
  %vm1865 = vcmp.lt.s32.totalorder %v1846, 1
  %vm1866 = vcmp.lt.s32.totalorder %v1846, 2
  %vm1867 = vcmp.lt.s32.totalorder %v1846, 3
  %vm1868 = vcmp.lt.s32.totalorder %v1846, 4
  %v1869 = vsel %vm1865, %v1849, %v1852
  %v1870 = vsel %vm1868, %v1858, 2102212464
  %v1871 = vsel %vm1867, %v1855, %v1870
  %v1872 = vsel %vm1866, %v1869, %v1871
  %v1873 = vsel %vm1865, %v1852, %v1855
  %v1874 = vsel %vm1868, %v1861, 920167782
  %v1875 = vsel %vm1867, %v1858, %v1874
  %v1876 = vsel %vm1866, %v1873, %v1875
  %v1877 = vsel %vm1865, %v1855, %v1858
  %v1878 = vsel %vm1868, %v1864, 1326507024
  %v1879 = vsel %vm1867, %v1861, %v1878
  %v1880 = vsel %vm1866, %v1877, %v1879
  %v1881 = vshll.u32 %v1841, 8
  %v1882 = vand.u32 %v1881, 65535
  %v1883 = vshrl.u32 %v1881, 16
  %v1884 = vand.u32 %v1880, 65535
  %v1885 = vshrl.u32 %v1880, 16
  %v1886 = vmul.u32 %v1882, %v1884
  %v1887 = vmul.u32 %v1882, %v1885
  %v1888 = vmul.u32 %v1883, %v1884
  %v1889 = vmul.u32 %v1883, %v1885
  %v1890 = vshll.u32 %v1887, 16
  %v1891 = vshrl.u32 %v1887, 16
  %v1892 = vshll.u32 %v1888, 16
  %v1893 = vshrl.u32 %v1888, 16
  %vm1894 = vc.u32 %v1886, %v1890
  %v1895 = vsel %vm1894, 1, 0
  %v1896 = vadd.s32 %v1886, %v1890
  %v1897 = vadd.s32 %v1889, %v1895
  %vm1898 = vc.u32 %v1896, %v1892
  %v1899 = vsel %vm1898, 1, 0
  %v1900 = vadd.s32 %v1896, %v1892
  %v1901 = vadd.s32 %v1897, %v1899
  %v1902 = vadd.s32 %v1901, %v1891
  %v1903 = vadd.s32 %v1902, %v1893
  %v1904 = vand.u32 %v1881, 65535
  %v1905 = vshrl.u32 %v1881, 16
  %v1906 = vand.u32 %v1876, 65535
  %v1907 = vshrl.u32 %v1876, 16
  %v1908 = vmul.u32 %v1904, %v1906
  %v1909 = vmul.u32 %v1904, %v1907
  %v1910 = vmul.u32 %v1905, %v1906
  %v1911 = vmul.u32 %v1905, %v1907
  %v1912 = vshll.u32 %v1909, 16
  %v1913 = vshrl.u32 %v1909, 16
  %v1914 = vshll.u32 %v1910, 16
  %v1915 = vshrl.u32 %v1910, 16
  %vm1916 = vc.u32 %v1908, %v1912
  %v1917 = vsel %vm1916, 1, 0
  %v1918 = vadd.s32 %v1908, %v1912
  %v1919 = vadd.s32 %v1911, %v1917
  %vm1920 = vc.u32 %v1918, %v1914
  %v1921 = vsel %vm1920, 1, 0
  %v1922 = vadd.s32 %v1918, %v1914
  %v1923 = vadd.s32 %v1919, %v1921
  %v1924 = vadd.s32 %v1923, %v1913
  %v1925 = vadd.s32 %v1924, %v1915
  %v1926 = vmul.u32 %v1881, %v1872
  %v1927 = vadd.s32 %v1903, %v1922
  %vm1928 = vc.u32 %v1903, %v1922
  %v1929 = vadd.s32 %v1925, 1
  %v1930 = vsel %vm1928, %v1929, %v1925
  %v1931 = vadd.s32 %v1926, %v1930
  %v1932 = vadd.s32 %v1931, 536870912
  %v1933 = vshrl.u32 %v1932, 30
  %v1934 = vshll.u32 %v1933, 30
  %v1935 = vsub.s32 %v1931, %v1934
  %vm1936 = vcmp.lt.s32.totalorder %v1935, 0
  %v1937 = vsub.s32 0, %v1935
  %v1938 = vsel %vm1936, %v1937, %v1935
  %v1939 = vclz %v1938
  %v1940 = vsub.s32 %v1939, 2
  %vm1941 = vcmp.gt.s32.totalorder 0, %v1940
  %v1942 = vsel %vm1941, 0, %v1940
  %v1943 = vsub.s32 32, %v1942
  %v1944 = vshll.u32 %v1935, %v1942
  %v1945 = vshrl.u32 %v1927, %v1943
  %v1946 = vor.u32 %v1944, %v1945
  %v1947 = vsub.s32 4294967266, %v1942
  %v1948 = vadd.s32 %v1947, 127
  %v1949 = vshll.u32 %v1948, 23
  %v1950 = vor.u32 4788187, %v1949
  %v1951 = vand.u32 2147483647, %v1950
  %v1953 = vcvt.s32.f32 %v1946
  %v1954 = vmul.f32 %v1953, %v1951
  %v1955 = vxor.u32 %v1954, 2147483648
  %v1956 = vsel %vm1835, %v1955, %v1954
  %v1957 = vsub.s32 4, %v1933
  %v1958 = vsel %vm1835, %v1957, %v1933
  %v1959 = vsel %vm1834, %v134, %v1956
  %v1960 = vsel %vm1834, 0, %v1958
  %v1961 = vmul.f32 %v1959, %v1959
  %v1962 = vmul.f32 %v1961, -0.001358992
  %v1963 = vadd.f32 %v1962, 0.041655596
  %v1964 = vmul.f32 %v1961, %v1963
  %v1965 = vadd.f32 %v1964, -0.4999988
  %v1966 = vmul.f32 %v1961, %v1965
  %v1967 = vadd.f32 1.0, %v1966
  %v1968 = vmul.f32 %v1959, %v1959
  %v1969 = vmul.f32 %v1968, -0.00019511016
  %v1970 = vadd.f32 %v1969, 0.008332121
  %v1971 = vmul.f32 %v1968, %v1970
  %v1972 = vadd.f32 %v1971, -0.16666654
  %v1973 = vmul.f32 %v1968, %v1972
  %v1974 = vadd.f32 %v1973, 1.0
  %v1975 = vmul.f32 %v1974, %v1959
  %vm1976 = vweird.f32 %v134
  %v1977 = vand.u32 %v1960, 3
  %vm1978 = vcmp.lt.s32.totalorder %v1977, 2
  %vm1979 = vcmp.eq.s32.totalorder %v1977, 0
  %v1980 = vxor.u32 %v1975, 2147483648
  %v1981 = vsel %vm1979, %v1967, %v1980
  %vm1982 = vcmp.eq.s32.totalorder %v1977, 2
  %v1983 = vxor.u32 %v1967, 2147483648
  %v1984 = vsel %vm1982, %v1983, %v1975
  %v1985 = vsel %vm1978, %v1981, %v1984
  %v1986 = vsel %vm1976, nan, %v1985
  %v1987 = vand.u32 2147483647, %v135
  %vm1988 = vcmp.le.f32.partialorder %v1987, 0.7853982
  %vm1989 = vcmp.lt.s32.totalorder %v135, 0
  %v1990 = vand.u32 %v135, 2139095040
  %v1991 = vshrl.u32 %v1990, 23
  %v1992 = vsub.s32 %v1991, 127
  %v1993 = vand.u32 2147483647, %v135
  %v1994 = vand.u32 %v1993, 8388607
  %v1995 = vor.u32 %v1994, 8388608
  %v1996 = vsub.s32 0, %v1995
  %v1997 = vadd.s32 %v1992, 1
  %vm1998 = vcmp.gt.s32.totalorder %v1997, 0
  %v1999 = vsel %vm1998, %v1997, 0
  %v2000 = vshrl.u32 %v1999, 5
  %v2001 = vand.u32 %v1999, 31
  %v2002 = vsub.s32 32, %v2001
  %v2003 = vshrl.u32 683565275, %v2002
  %v2004 = vshll.u32 683565275, %v2001
  %v2005 = vshrl.u32 2475754826, %v2002
  %v2006 = vor.u32 %v2004, %v2005
  %v2007 = vshll.u32 2475754826, %v2001
  %v2008 = vshrl.u32 2131351028, %v2002
  %v2009 = vor.u32 %v2007, %v2008
  %v2010 = vshll.u32 2131351028, %v2001
  %v2011 = vshrl.u32 2102212464, %v2002
  %v2012 = vor.u32 %v2010, %v2011
  %v2013 = vshll.u32 2102212464, %v2001
  %v2014 = vshrl.u32 920167782, %v2002
  %v2015 = vor.u32 %v2013, %v2014
  %v2016 = vshll.u32 920167782, %v2001
  %v2017 = vshrl.u32 1326507024, %v2002
  %v2018 = vor.u32 %v2016, %v2017
  %vm2019 = vcmp.lt.s32.totalorder %v2000, 1
  %vm2020 = vcmp.lt.s32.totalorder %v2000, 2
  %vm2021 = vcmp.lt.s32.totalorder %v2000, 3
  %vm2022 = vcmp.lt.s32.totalorder %v2000, 4
  %v2023 = vsel %vm2019, %v2003, %v2006
  %v2024 = vsel %vm2022, %v2012, 2102212464
  %v2025 = vsel %vm2021, %v2009, %v2024
  %v2026 = vsel %vm2020, %v2023, %v2025
  %v2027 = vsel %vm2019, %v2006, %v2009
  %v2028 = vsel %vm2022, %v2015, 920167782
  %v2029 = vsel %vm2021, %v2012, %v2028
  %v2030 = vsel %vm2020, %v2027, %v2029
  %v2031 = vsel %vm2019, %v2009, %v2012
  %v2032 = vsel %vm2022, %v2018, 1326507024
  %v2033 = vsel %vm2021, %v2015, %v2032
  %v2034 = vsel %vm2020, %v2031, %v2033
  %v2035 = vshll.u32 %v1995, 8
  %v2036 = vand.u32 %v2035, 65535
  %v2037 = vshrl.u32 %v2035, 16
  %v2038 = vand.u32 %v2034, 65535
  %v2039 = vshrl.u32 %v2034, 16
  %v2040 = vmul.u32 %v2036, %v2038
  %v2041 = vmul.u32 %v2036, %v2039
  %v2042 = vmul.u32 %v2037, %v2038
  %v2043 = vmul.u32 %v2037, %v2039
  %v2044 = vshll.u32 %v2041, 16
  %v2045 = vshrl.u32 %v2041, 16
  %v2046 = vshll.u32 %v2042, 16
  %v2047 = vshrl.u32 %v2042, 16
  %vm2048 = vc.u32 %v2040, %v2044
  %v2049 = vsel %vm2048, 1, 0
  %v2050 = vadd.s32 %v2040, %v2044
  %v2051 = vadd.s32 %v2043, %v2049
  %vm2052 = vc.u32 %v2050, %v2046
  %v2053 = vsel %vm2052, 1, 0
  %v2054 = vadd.s32 %v2050, %v2046
  %v2055 = vadd.s32 %v2051, %v2053
  %v2056 = vadd.s32 %v2055, %v2045
  %v2057 = vadd.s32 %v2056, %v2047
  %v2058 = vand.u32 %v2035, 65535
  %v2059 = vshrl.u32 %v2035, 16
  %v2060 = vand.u32 %v2030, 65535
  %v2061 = vshrl.u32 %v2030, 16
  %v2062 = vmul.u32 %v2058, %v2060
  %v2063 = vmul.u32 %v2058, %v2061
  %v2064 = vmul.u32 %v2059, %v2060
  %v2065 = vmul.u32 %v2059, %v2061
  %v2066 = vshll.u32 %v2063, 16
  %v2067 = vshrl.u32 %v2063, 16
  %v2068 = vshll.u32 %v2064, 16
  %v2069 = vshrl.u32 %v2064, 16
  %vm2070 = vc.u32 %v2062, %v2066
  %v2071 = vsel %vm2070, 1, 0
  %v2072 = vadd.s32 %v2062, %v2066
  %v2073 = vadd.s32 %v2065, %v2071
  %vm2074 = vc.u32 %v2072, %v2068
  %v2075 = vsel %vm2074, 1, 0
  %v2076 = vadd.s32 %v2072, %v2068
  %v2077 = vadd.s32 %v2073, %v2075
  %v2078 = vadd.s32 %v2077, %v2067
  %v2079 = vadd.s32 %v2078, %v2069
  %v2080 = vmul.u32 %v2035, %v2026
  %v2081 = vadd.s32 %v2057, %v2076
  %vm2082 = vc.u32 %v2057, %v2076
  %v2083 = vadd.s32 %v2079, 1
  %v2084 = vsel %vm2082, %v2083, %v2079
  %v2085 = vadd.s32 %v2080, %v2084
  %v2086 = vadd.s32 %v2085, 536870912
  %v2087 = vshrl.u32 %v2086, 30
  %v2088 = vshll.u32 %v2087, 30
  %v2089 = vsub.s32 %v2085, %v2088
  %vm2090 = vcmp.lt.s32.totalorder %v2089, 0
  %v2091 = vsub.s32 0, %v2089
  %v2092 = vsel %vm2090, %v2091, %v2089
  %v2093 = vclz %v2092
  %v2094 = vsub.s32 %v2093, 2
  %vm2095 = vcmp.gt.s32.totalorder 0, %v2094
  %v2096 = vsel %vm2095, 0, %v2094
  %v2097 = vsub.s32 32, %v2096
  %v2098 = vshll.u32 %v2089, %v2096
  %v2099 = vshrl.u32 %v2081, %v2097
  %v2100 = vor.u32 %v2098, %v2099
  %v2101 = vsub.s32 4294967266, %v2096
  %v2102 = vadd.s32 %v2101, 127
  %v2103 = vshll.u32 %v2102, 23
  %v2104 = vor.u32 4788187, %v2103
  %v2105 = vand.u32 2147483647, %v2104
  %v2107 = vcvt.s32.f32 %v2100
  %v2108 = vmul.f32 %v2107, %v2105
  %v2109 = vxor.u32 %v2108, 2147483648
  %v2110 = vsel %vm1989, %v2109, %v2108
  %v2111 = vsub.s32 4, %v2087
  %v2112 = vsel %vm1989, %v2111, %v2087
  %v2113 = vsel %vm1988, %v135, %v2110
  %v2114 = vsel %vm1988, 0, %v2112
  %v2115 = vmul.f32 %v2113, %v2113
  %v2116 = vmul.f32 %v2115, -0.001358992
  %v2117 = vadd.f32 %v2116, 0.041655596
  %v2118 = vmul.f32 %v2115, %v2117
  %v2119 = vadd.f32 %v2118, -0.4999988
  %v2120 = vmul.f32 %v2115, %v2119
  %v2121 = vadd.f32 1.0, %v2120
  %v2122 = vmul.f32 %v2113, %v2113
  %v2123 = vmul.f32 %v2122, -0.00019511016
  %v2124 = vadd.f32 %v2123, 0.008332121
  %v2125 = vmul.f32 %v2122, %v2124
  %v2126 = vadd.f32 %v2125, -0.16666654
  %v2127 = vmul.f32 %v2122, %v2126
  %v2128 = vadd.f32 %v2127, 1.0
  %v2129 = vmul.f32 %v2128, %v2113
  %vm2130 = vweird.f32 %v135
  %v2131 = vand.u32 %v2114, 3
  %vm2132 = vcmp.lt.s32.totalorder %v2131, 2
  %vm2133 = vcmp.eq.s32.totalorder %v2131, 0
  %v2134 = vxor.u32 %v2129, 2147483648
  %v2135 = vsel %vm2133, %v2121, %v2134
  %vm2136 = vcmp.eq.s32.totalorder %v2131, 2
  %v2137 = vxor.u32 %v2121, 2147483648
  %v2138 = vsel %vm2136, %v2137, %v2129
  %v2139 = vsel %vm2132, %v2135, %v2138
  %v2140 = vsel %vm2130, nan, %v2139
  %v2141 = vand.u32 2147483647, %v136
  %vm2142 = vcmp.le.f32.partialorder %v2141, 0.7853982
  %vm2143 = vcmp.lt.s32.totalorder %v136, 0
  %v2144 = vand.u32 %v136, 2139095040
  %v2145 = vshrl.u32 %v2144, 23
  %v2146 = vsub.s32 %v2145, 127
  %v2147 = vand.u32 2147483647, %v136
  %v2148 = vand.u32 %v2147, 8388607
  %v2149 = vor.u32 %v2148, 8388608
  %v2150 = vsub.s32 0, %v2149
  %v2151 = vadd.s32 %v2146, 1
  %vm2152 = vcmp.gt.s32.totalorder %v2151, 0
  %v2153 = vsel %vm2152, %v2151, 0
  %v2154 = vshrl.u32 %v2153, 5
  %v2155 = vand.u32 %v2153, 31
  %v2156 = vsub.s32 32, %v2155
  %v2157 = vshrl.u32 683565275, %v2156
  %v2158 = vshll.u32 683565275, %v2155
  %v2159 = vshrl.u32 2475754826, %v2156
  %v2160 = vor.u32 %v2158, %v2159
  %v2161 = vshll.u32 2475754826, %v2155
  %v2162 = vshrl.u32 2131351028, %v2156
  %v2163 = vor.u32 %v2161, %v2162
  %v2164 = vshll.u32 2131351028, %v2155
  %v2165 = vshrl.u32 2102212464, %v2156
  %v2166 = vor.u32 %v2164, %v2165
  %v2167 = vshll.u32 2102212464, %v2155
  %v2168 = vshrl.u32 920167782, %v2156
  %v2169 = vor.u32 %v2167, %v2168
  %v2170 = vshll.u32 920167782, %v2155
  %v2171 = vshrl.u32 1326507024, %v2156
  %v2172 = vor.u32 %v2170, %v2171
  %vm2173 = vcmp.lt.s32.totalorder %v2154, 1
  %vm2174 = vcmp.lt.s32.totalorder %v2154, 2
  %vm2175 = vcmp.lt.s32.totalorder %v2154, 3
  %vm2176 = vcmp.lt.s32.totalorder %v2154, 4
  %v2177 = vsel %vm2173, %v2157, %v2160
  %v2178 = vsel %vm2176, %v2166, 2102212464
  %v2179 = vsel %vm2175, %v2163, %v2178
  %v2180 = vsel %vm2174, %v2177, %v2179
  %v2181 = vsel %vm2173, %v2160, %v2163
  %v2182 = vsel %vm2176, %v2169, 920167782
  %v2183 = vsel %vm2175, %v2166, %v2182
  %v2184 = vsel %vm2174, %v2181, %v2183
  %v2185 = vsel %vm2173, %v2163, %v2166
  %v2186 = vsel %vm2176, %v2172, 1326507024
  %v2187 = vsel %vm2175, %v2169, %v2186
  %v2188 = vsel %vm2174, %v2185, %v2187
  %v2189 = vshll.u32 %v2149, 8
  %v2190 = vand.u32 %v2189, 65535
  %v2191 = vshrl.u32 %v2189, 16
  %v2192 = vand.u32 %v2188, 65535
  %v2193 = vshrl.u32 %v2188, 16
  %v2194 = vmul.u32 %v2190, %v2192
  %v2195 = vmul.u32 %v2190, %v2193
  %v2196 = vmul.u32 %v2191, %v2192
  %v2197 = vmul.u32 %v2191, %v2193
  %v2198 = vshll.u32 %v2195, 16
  %v2199 = vshrl.u32 %v2195, 16
  %v2200 = vshll.u32 %v2196, 16
  %v2201 = vshrl.u32 %v2196, 16
  %vm2202 = vc.u32 %v2194, %v2198
  %v2203 = vsel %vm2202, 1, 0
  %v2204 = vadd.s32 %v2194, %v2198
  %v2205 = vadd.s32 %v2197, %v2203
  %vm2206 = vc.u32 %v2204, %v2200
  %v2207 = vsel %vm2206, 1, 0
  %v2208 = vadd.s32 %v2204, %v2200
  %v2209 = vadd.s32 %v2205, %v2207
  %v2210 = vadd.s32 %v2209, %v2199
  %v2211 = vadd.s32 %v2210, %v2201
  %v2212 = vand.u32 %v2189, 65535
  %v2213 = vshrl.u32 %v2189, 16
  %v2214 = vand.u32 %v2184, 65535
  %v2215 = vshrl.u32 %v2184, 16
  %v2216 = vmul.u32 %v2212, %v2214
  %v2217 = vmul.u32 %v2212, %v2215
  %v2218 = vmul.u32 %v2213, %v2214
  %v2219 = vmul.u32 %v2213, %v2215
  %v2220 = vshll.u32 %v2217, 16
  %v2221 = vshrl.u32 %v2217, 16
  %v2222 = vshll.u32 %v2218, 16
  %v2223 = vshrl.u32 %v2218, 16
  %vm2224 = vc.u32 %v2216, %v2220
  %v2225 = vsel %vm2224, 1, 0
  %v2226 = vadd.s32 %v2216, %v2220
  %v2227 = vadd.s32 %v2219, %v2225
  %vm2228 = vc.u32 %v2226, %v2222
  %v2229 = vsel %vm2228, 1, 0
  %v2230 = vadd.s32 %v2226, %v2222
  %v2231 = vadd.s32 %v2227, %v2229
  %v2232 = vadd.s32 %v2231, %v2221
  %v2233 = vadd.s32 %v2232, %v2223
  %v2234 = vmul.u32 %v2189, %v2180
  %v2235 = vadd.s32 %v2211, %v2230
  %vm2236 = vc.u32 %v2211, %v2230
  %v2237 = vadd.s32 %v2233, 1
  %v2238 = vsel %vm2236, %v2237, %v2233
  %v2239 = vadd.s32 %v2234, %v2238
  %v2240 = vadd.s32 %v2239, 536870912
  %v2241 = vshrl.u32 %v2240, 30
  %v2242 = vshll.u32 %v2241, 30
  %v2243 = vsub.s32 %v2239, %v2242
  %vm2244 = vcmp.lt.s32.totalorder %v2243, 0
  %v2245 = vsub.s32 0, %v2243
  %v2246 = vsel %vm2244, %v2245, %v2243
  %v2247 = vclz %v2246
  %v2248 = vsub.s32 %v2247, 2
  %vm2249 = vcmp.gt.s32.totalorder 0, %v2248
  %v2250 = vsel %vm2249, 0, %v2248
  %v2251 = vsub.s32 32, %v2250
  %v2252 = vshll.u32 %v2243, %v2250
  %v2253 = vshrl.u32 %v2235, %v2251
  %v2254 = vor.u32 %v2252, %v2253
  %v2255 = vsub.s32 4294967266, %v2250
  %v2256 = vadd.s32 %v2255, 127
  %v2257 = vshll.u32 %v2256, 23
  %v2258 = vor.u32 4788187, %v2257
  %v2259 = vand.u32 2147483647, %v2258
  %v2261 = vcvt.s32.f32 %v2254
  %v2262 = vmul.f32 %v2261, %v2259
  %v2263 = vxor.u32 %v2262, 2147483648
  %v2264 = vsel %vm2143, %v2263, %v2262
  %v2265 = vsub.s32 4, %v2241
  %v2266 = vsel %vm2143, %v2265, %v2241
  %v2267 = vsel %vm2142, %v136, %v2264
  %v2268 = vsel %vm2142, 0, %v2266
  %v2269 = vmul.f32 %v2267, %v2267
  %v2270 = vmul.f32 %v2269, -0.001358992
  %v2271 = vadd.f32 %v2270, 0.041655596
  %v2272 = vmul.f32 %v2269, %v2271
  %v2273 = vadd.f32 %v2272, -0.4999988
  %v2274 = vmul.f32 %v2269, %v2273
  %v2275 = vadd.f32 1.0, %v2274
  %v2276 = vmul.f32 %v2267, %v2267
  %v2277 = vmul.f32 %v2276, -0.00019511016
  %v2278 = vadd.f32 %v2277, 0.008332121
  %v2279 = vmul.f32 %v2276, %v2278
  %v2280 = vadd.f32 %v2279, -0.16666654
  %v2281 = vmul.f32 %v2276, %v2280
  %v2282 = vadd.f32 %v2281, 1.0
  %v2283 = vmul.f32 %v2282, %v2267
  %vm2284 = vweird.f32 %v136
  %v2285 = vand.u32 %v2268, 3
  %vm2286 = vcmp.lt.s32.totalorder %v2285, 2
  %vm2287 = vcmp.eq.s32.totalorder %v2285, 0
  %v2288 = vxor.u32 %v2283, 2147483648
  %v2289 = vsel %vm2287, %v2275, %v2288
  %vm2290 = vcmp.eq.s32.totalorder %v2285, 2
  %v2291 = vxor.u32 %v2275, 2147483648
  %v2292 = vsel %vm2290, %v2291, %v2283
  %v2293 = vsel %vm2286, %v2289, %v2292
  %v2294 = vsel %vm2284, nan, %v2293
  %v2295 = vand.u32 2147483647, %v137
  %vm2296 = vcmp.le.f32.partialorder %v2295, 0.7853982
  %vm2297 = vcmp.lt.s32.totalorder %v137, 0
  %v2298 = vand.u32 %v137, 2139095040
  %v2299 = vshrl.u32 %v2298, 23
  %v2300 = vsub.s32 %v2299, 127
  %v2301 = vand.u32 2147483647, %v137
  %v2302 = vand.u32 %v2301, 8388607
  %v2303 = vor.u32 %v2302, 8388608
  %v2304 = vsub.s32 0, %v2303
  %v2305 = vadd.s32 %v2300, 1
  %vm2306 = vcmp.gt.s32.totalorder %v2305, 0
  %v2307 = vsel %vm2306, %v2305, 0
  %v2308 = vshrl.u32 %v2307, 5
  %v2309 = vand.u32 %v2307, 31
  %v2310 = vsub.s32 32, %v2309
  %v2311 = vshrl.u32 683565275, %v2310
  %v2312 = vshll.u32 683565275, %v2309
  %v2313 = vshrl.u32 2475754826, %v2310
  %v2314 = vor.u32 %v2312, %v2313
  %v2315 = vshll.u32 2475754826, %v2309
  %v2316 = vshrl.u32 2131351028, %v2310
  %v2317 = vor.u32 %v2315, %v2316
  %v2318 = vshll.u32 2131351028, %v2309
  %v2319 = vshrl.u32 2102212464, %v2310
  %v2320 = vor.u32 %v2318, %v2319
  %v2321 = vshll.u32 2102212464, %v2309
  %v2322 = vshrl.u32 920167782, %v2310
  %v2323 = vor.u32 %v2321, %v2322
  %v2324 = vshll.u32 920167782, %v2309
  %v2325 = vshrl.u32 1326507024, %v2310
  %v2326 = vor.u32 %v2324, %v2325
  %vm2327 = vcmp.lt.s32.totalorder %v2308, 1
  %vm2328 = vcmp.lt.s32.totalorder %v2308, 2
  %vm2329 = vcmp.lt.s32.totalorder %v2308, 3
  %vm2330 = vcmp.lt.s32.totalorder %v2308, 4
  %v2331 = vsel %vm2327, %v2311, %v2314
  %v2332 = vsel %vm2330, %v2320, 2102212464
  %v2333 = vsel %vm2329, %v2317, %v2332
  %v2334 = vsel %vm2328, %v2331, %v2333
  %v2335 = vsel %vm2327, %v2314, %v2317
  %v2336 = vsel %vm2330, %v2323, 920167782
  %v2337 = vsel %vm2329, %v2320, %v2336
  %v2338 = vsel %vm2328, %v2335, %v2337
  %v2339 = vsel %vm2327, %v2317, %v2320
  %v2340 = vsel %vm2330, %v2326, 1326507024
  %v2341 = vsel %vm2329, %v2323, %v2340
  %v2342 = vsel %vm2328, %v2339, %v2341
  %v2343 = vshll.u32 %v2303, 8
  %v2344 = vand.u32 %v2343, 65535
  %v2345 = vshrl.u32 %v2343, 16
  %v2346 = vand.u32 %v2342, 65535
  %v2347 = vshrl.u32 %v2342, 16
  %v2348 = vmul.u32 %v2344, %v2346
  %v2349 = vmul.u32 %v2344, %v2347
  %v2350 = vmul.u32 %v2345, %v2346
  %v2351 = vmul.u32 %v2345, %v2347
  %v2352 = vshll.u32 %v2349, 16
  %v2353 = vshrl.u32 %v2349, 16
  %v2354 = vshll.u32 %v2350, 16
  %v2355 = vshrl.u32 %v2350, 16
  %vm2356 = vc.u32 %v2348, %v2352
  %v2357 = vsel %vm2356, 1, 0
  %v2358 = vadd.s32 %v2348, %v2352
  %v2359 = vadd.s32 %v2351, %v2357
  %vm2360 = vc.u32 %v2358, %v2354
  %v2361 = vsel %vm2360, 1, 0
  %v2362 = vadd.s32 %v2358, %v2354
  %v2363 = vadd.s32 %v2359, %v2361
  %v2364 = vadd.s32 %v2363, %v2353
  %v2365 = vadd.s32 %v2364, %v2355
  %v2366 = vand.u32 %v2343, 65535
  %v2367 = vshrl.u32 %v2343, 16
  %v2368 = vand.u32 %v2338, 65535
  %v2369 = vshrl.u32 %v2338, 16
  %v2370 = vmul.u32 %v2366, %v2368
  %v2371 = vmul.u32 %v2366, %v2369
  %v2372 = vmul.u32 %v2367, %v2368
  %v2373 = vmul.u32 %v2367, %v2369
  %v2374 = vshll.u32 %v2371, 16
  %v2375 = vshrl.u32 %v2371, 16
  %v2376 = vshll.u32 %v2372, 16
  %v2377 = vshrl.u32 %v2372, 16
  %vm2378 = vc.u32 %v2370, %v2374
  %v2379 = vsel %vm2378, 1, 0
  %v2380 = vadd.s32 %v2370, %v2374
  %v2381 = vadd.s32 %v2373, %v2379
  %vm2382 = vc.u32 %v2380, %v2376
  %v2383 = vsel %vm2382, 1, 0
  %v2384 = vadd.s32 %v2380, %v2376
  %v2385 = vadd.s32 %v2381, %v2383
  %v2386 = vadd.s32 %v2385, %v2375
  %v2387 = vadd.s32 %v2386, %v2377
  %v2388 = vmul.u32 %v2343, %v2334
  %v2389 = vadd.s32 %v2365, %v2384
  %vm2390 = vc.u32 %v2365, %v2384
  %v2391 = vadd.s32 %v2387, 1
  %v2392 = vsel %vm2390, %v2391, %v2387
  %v2393 = vadd.s32 %v2388, %v2392
  %v2394 = vadd.s32 %v2393, 536870912
  %v2395 = vshrl.u32 %v2394, 30
  %v2396 = vshll.u32 %v2395, 30
  %v2397 = vsub.s32 %v2393, %v2396
  %vm2398 = vcmp.lt.s32.totalorder %v2397, 0
  %v2399 = vsub.s32 0, %v2397
  %v2400 = vsel %vm2398, %v2399, %v2397
  %v2401 = vclz %v2400
  %v2402 = vsub.s32 %v2401, 2
  %vm2403 = vcmp.gt.s32.totalorder 0, %v2402
  %v2404 = vsel %vm2403, 0, %v2402
  %v2405 = vsub.s32 32, %v2404
  %v2406 = vshll.u32 %v2397, %v2404
  %v2407 = vshrl.u32 %v2389, %v2405
  %v2408 = vor.u32 %v2406, %v2407
  %v2409 = vsub.s32 4294967266, %v2404
  %v2410 = vadd.s32 %v2409, 127
  %v2411 = vshll.u32 %v2410, 23
  %v2412 = vor.u32 4788187, %v2411
  %v2413 = vand.u32 2147483647, %v2412
  %v2415 = vcvt.s32.f32 %v2408
  %v2416 = vmul.f32 %v2415, %v2413
  %v2417 = vxor.u32 %v2416, 2147483648
  %v2418 = vsel %vm2297, %v2417, %v2416
  %v2419 = vsub.s32 4, %v2395
  %v2420 = vsel %vm2297, %v2419, %v2395
  %v2421 = vsel %vm2296, %v137, %v2418
  %v2422 = vsel %vm2296, 0, %v2420
  %v2423 = vmul.f32 %v2421, %v2421
  %v2424 = vmul.f32 %v2423, -0.001358992
  %v2425 = vadd.f32 %v2424, 0.041655596
  %v2426 = vmul.f32 %v2423, %v2425
  %v2427 = vadd.f32 %v2426, -0.4999988
  %v2428 = vmul.f32 %v2423, %v2427
  %v2429 = vadd.f32 1.0, %v2428
  %v2430 = vmul.f32 %v2421, %v2421
  %v2431 = vmul.f32 %v2430, -0.00019511016
  %v2432 = vadd.f32 %v2431, 0.008332121
  %v2433 = vmul.f32 %v2430, %v2432
  %v2434 = vadd.f32 %v2433, -0.16666654
  %v2435 = vmul.f32 %v2430, %v2434
  %v2436 = vadd.f32 %v2435, 1.0
  %v2437 = vmul.f32 %v2436, %v2421
  %vm2438 = vweird.f32 %v137
  %v2439 = vand.u32 %v2422, 3
  %vm2440 = vcmp.lt.s32.totalorder %v2439, 2
  %vm2441 = vcmp.eq.s32.totalorder %v2439, 0
  %v2442 = vxor.u32 %v2437, 2147483648
  %v2443 = vsel %vm2441, %v2429, %v2442
  %vm2444 = vcmp.eq.s32.totalorder %v2439, 2
  %v2445 = vxor.u32 %v2429, 2147483648
  %v2446 = vsel %vm2444, %v2445, %v2437
  %v2447 = vsel %vm2440, %v2443, %v2446
  %v2448 = vsel %vm2438, nan, %v2447
  %v2449 = vand.u32 2147483647, %v138
  %vm2450 = vcmp.le.f32.partialorder %v2449, 0.7853982
  %vm2451 = vcmp.lt.s32.totalorder %v138, 0
  %v2452 = vand.u32 %v138, 2139095040
  %v2453 = vshrl.u32 %v2452, 23
  %v2454 = vsub.s32 %v2453, 127
  %v2455 = vand.u32 2147483647, %v138
  %v2456 = vand.u32 %v2455, 8388607
  %v2457 = vor.u32 %v2456, 8388608
  %v2458 = vsub.s32 0, %v2457
  %v2459 = vadd.s32 %v2454, 1
  %vm2460 = vcmp.gt.s32.totalorder %v2459, 0
  %v2461 = vsel %vm2460, %v2459, 0
  %v2462 = vshrl.u32 %v2461, 5
  %v2463 = vand.u32 %v2461, 31
  %v2464 = vsub.s32 32, %v2463
  %v2465 = vshrl.u32 683565275, %v2464
  %v2466 = vshll.u32 683565275, %v2463
  %v2467 = vshrl.u32 2475754826, %v2464
  %v2468 = vor.u32 %v2466, %v2467
  %v2469 = vshll.u32 2475754826, %v2463
  %v2470 = vshrl.u32 2131351028, %v2464
  %v2471 = vor.u32 %v2469, %v2470
  %v2472 = vshll.u32 2131351028, %v2463
  %v2473 = vshrl.u32 2102212464, %v2464
  %v2474 = vor.u32 %v2472, %v2473
  %v2475 = vshll.u32 2102212464, %v2463
  %v2476 = vshrl.u32 920167782, %v2464
  %v2477 = vor.u32 %v2475, %v2476
  %v2478 = vshll.u32 920167782, %v2463
  %v2479 = vshrl.u32 1326507024, %v2464
  %v2480 = vor.u32 %v2478, %v2479
  %vm2481 = vcmp.lt.s32.totalorder %v2462, 1
  %vm2482 = vcmp.lt.s32.totalorder %v2462, 2
  %vm2483 = vcmp.lt.s32.totalorder %v2462, 3
  %vm2484 = vcmp.lt.s32.totalorder %v2462, 4
  %v2485 = vsel %vm2481, %v2465, %v2468
  %v2486 = vsel %vm2484, %v2474, 2102212464
  %v2487 = vsel %vm2483, %v2471, %v2486
  %v2488 = vsel %vm2482, %v2485, %v2487
  %v2489 = vsel %vm2481, %v2468, %v2471
  %v2490 = vsel %vm2484, %v2477, 920167782
  %v2491 = vsel %vm2483, %v2474, %v2490
  %v2492 = vsel %vm2482, %v2489, %v2491
  %v2493 = vsel %vm2481, %v2471, %v2474
  %v2494 = vsel %vm2484, %v2480, 1326507024
  %v2495 = vsel %vm2483, %v2477, %v2494
  %v2496 = vsel %vm2482, %v2493, %v2495
  %v2497 = vshll.u32 %v2457, 8
  %v2498 = vand.u32 %v2497, 65535
  %v2499 = vshrl.u32 %v2497, 16
  %v2500 = vand.u32 %v2496, 65535
  %v2501 = vshrl.u32 %v2496, 16
  %v2502 = vmul.u32 %v2498, %v2500
  %v2503 = vmul.u32 %v2498, %v2501
  %v2504 = vmul.u32 %v2499, %v2500
  %v2505 = vmul.u32 %v2499, %v2501
  %v2506 = vshll.u32 %v2503, 16
  %v2507 = vshrl.u32 %v2503, 16
  %v2508 = vshll.u32 %v2504, 16
  %v2509 = vshrl.u32 %v2504, 16
  %vm2510 = vc.u32 %v2502, %v2506
  %v2511 = vsel %vm2510, 1, 0
  %v2512 = vadd.s32 %v2502, %v2506
  %v2513 = vadd.s32 %v2505, %v2511
  %vm2514 = vc.u32 %v2512, %v2508
  %v2515 = vsel %vm2514, 1, 0
  %v2516 = vadd.s32 %v2512, %v2508
  %v2517 = vadd.s32 %v2513, %v2515
  %v2518 = vadd.s32 %v2517, %v2507
  %v2519 = vadd.s32 %v2518, %v2509
  %v2520 = vand.u32 %v2497, 65535
  %v2521 = vshrl.u32 %v2497, 16
  %v2522 = vand.u32 %v2492, 65535
  %v2523 = vshrl.u32 %v2492, 16
  %v2524 = vmul.u32 %v2520, %v2522
  %v2525 = vmul.u32 %v2520, %v2523
  %v2526 = vmul.u32 %v2521, %v2522
  %v2527 = vmul.u32 %v2521, %v2523
  %v2528 = vshll.u32 %v2525, 16
  %v2529 = vshrl.u32 %v2525, 16
  %v2530 = vshll.u32 %v2526, 16
  %v2531 = vshrl.u32 %v2526, 16
  %vm2532 = vc.u32 %v2524, %v2528
  %v2533 = vsel %vm2532, 1, 0
  %v2534 = vadd.s32 %v2524, %v2528
  %v2535 = vadd.s32 %v2527, %v2533
  %vm2536 = vc.u32 %v2534, %v2530
  %v2537 = vsel %vm2536, 1, 0
  %v2538 = vadd.s32 %v2534, %v2530
  %v2539 = vadd.s32 %v2535, %v2537
  %v2540 = vadd.s32 %v2539, %v2529
  %v2541 = vadd.s32 %v2540, %v2531
  %v2542 = vmul.u32 %v2497, %v2488
  %v2543 = vadd.s32 %v2519, %v2538
  %vm2544 = vc.u32 %v2519, %v2538
  %v2545 = vadd.s32 %v2541, 1
  %v2546 = vsel %vm2544, %v2545, %v2541
  %v2547 = vadd.s32 %v2542, %v2546
  %v2548 = vadd.s32 %v2547, 536870912
  %v2549 = vshrl.u32 %v2548, 30
  %v2550 = vshll.u32 %v2549, 30
  %v2551 = vsub.s32 %v2547, %v2550
  %vm2552 = vcmp.lt.s32.totalorder %v2551, 0
  %v2553 = vsub.s32 0, %v2551
  %v2554 = vsel %vm2552, %v2553, %v2551
  %v2555 = vclz %v2554
  %v2556 = vsub.s32 %v2555, 2
  %vm2557 = vcmp.gt.s32.totalorder 0, %v2556
  %v2558 = vsel %vm2557, 0, %v2556
  %v2559 = vsub.s32 32, %v2558
  %v2560 = vshll.u32 %v2551, %v2558
  %v2561 = vshrl.u32 %v2543, %v2559
  %v2562 = vor.u32 %v2560, %v2561
  %v2563 = vsub.s32 4294967266, %v2558
  %v2564 = vadd.s32 %v2563, 127
  %v2565 = vshll.u32 %v2564, 23
  %v2566 = vor.u32 4788187, %v2565
  %v2567 = vand.u32 2147483647, %v2566
  %v2569 = vcvt.s32.f32 %v2562
  %v2570 = vmul.f32 %v2569, %v2567
  %v2571 = vxor.u32 %v2570, 2147483648
  %v2572 = vsel %vm2451, %v2571, %v2570
  %v2573 = vsub.s32 4, %v2549
  %v2574 = vsel %vm2451, %v2573, %v2549
  %v2575 = vsel %vm2450, %v138, %v2572
  %v2576 = vsel %vm2450, 0, %v2574
  %v2577 = vmul.f32 %v2575, %v2575
  %v2578 = vmul.f32 %v2577, -0.001358992
  %v2579 = vadd.f32 %v2578, 0.041655596
  %v2580 = vmul.f32 %v2577, %v2579
  %v2581 = vadd.f32 %v2580, -0.4999988
  %v2582 = vmul.f32 %v2577, %v2581
  %v2583 = vadd.f32 1.0, %v2582
  %v2584 = vmul.f32 %v2575, %v2575
  %v2585 = vmul.f32 %v2584, -0.00019511016
  %v2586 = vadd.f32 %v2585, 0.008332121
  %v2587 = vmul.f32 %v2584, %v2586
  %v2588 = vadd.f32 %v2587, -0.16666654
  %v2589 = vmul.f32 %v2584, %v2588
  %v2590 = vadd.f32 %v2589, 1.0
  %v2591 = vmul.f32 %v2590, %v2575
  %vm2592 = vweird.f32 %v138
  %v2593 = vand.u32 %v2576, 3
  %vm2594 = vcmp.lt.s32.totalorder %v2593, 2
  %vm2595 = vcmp.eq.s32.totalorder %v2593, 0
  %v2596 = vxor.u32 %v2591, 2147483648
  %v2597 = vsel %vm2595, %v2583, %v2596
  %vm2598 = vcmp.eq.s32.totalorder %v2593, 2
  %v2599 = vxor.u32 %v2583, 2147483648
  %v2600 = vsel %vm2598, %v2599, %v2591
  %v2601 = vsel %vm2594, %v2597, %v2600
  %v2602 = vsel %vm2592, nan, %v2601
  %v2603 = vand.u32 2147483647, %v123
  %vm2604 = vcmp.le.f32.partialorder %v2603, 0.7853982
  %vm2605 = vcmp.lt.s32.totalorder %v123, 0
  %v2606 = vand.u32 %v123, 2139095040
  %v2607 = vshrl.u32 %v2606, 23
  %v2608 = vsub.s32 %v2607, 127
  %v2609 = vand.u32 2147483647, %v123
  %v2610 = vand.u32 %v2609, 8388607
  %v2611 = vor.u32 %v2610, 8388608
  %v2612 = vsub.s32 0, %v2611
  %v2613 = vadd.s32 %v2608, 1
  %vm2614 = vcmp.gt.s32.totalorder %v2613, 0
  %v2615 = vsel %vm2614, %v2613, 0
  %v2616 = vshrl.u32 %v2615, 5
  %v2617 = vand.u32 %v2615, 31
  %v2618 = vsub.s32 32, %v2617
  %v2619 = vshrl.u32 683565275, %v2618
  %v2620 = vshll.u32 683565275, %v2617
  %v2621 = vshrl.u32 2475754826, %v2618
  %v2622 = vor.u32 %v2620, %v2621
  %v2623 = vshll.u32 2475754826, %v2617
  %v2624 = vshrl.u32 2131351028, %v2618
  %v2625 = vor.u32 %v2623, %v2624
  %v2626 = vshll.u32 2131351028, %v2617
  %v2627 = vshrl.u32 2102212464, %v2618
  %v2628 = vor.u32 %v2626, %v2627
  %v2629 = vshll.u32 2102212464, %v2617
  %v2630 = vshrl.u32 920167782, %v2618
  %v2631 = vor.u32 %v2629, %v2630
  %v2632 = vshll.u32 920167782, %v2617
  %v2633 = vshrl.u32 1326507024, %v2618
  %v2634 = vor.u32 %v2632, %v2633
  %vm2635 = vcmp.lt.s32.totalorder %v2616, 1
  %vm2636 = vcmp.lt.s32.totalorder %v2616, 2
  %vm2637 = vcmp.lt.s32.totalorder %v2616, 3
  %vm2638 = vcmp.lt.s32.totalorder %v2616, 4
  %v2639 = vsel %vm2635, %v2619, %v2622
  %v2640 = vsel %vm2638, %v2628, 2102212464
  %v2641 = vsel %vm2637, %v2625, %v2640
  %v2642 = vsel %vm2636, %v2639, %v2641
  %v2643 = vsel %vm2635, %v2622, %v2625
  %v2644 = vsel %vm2638, %v2631, 920167782
  %v2645 = vsel %vm2637, %v2628, %v2644
  %v2646 = vsel %vm2636, %v2643, %v2645
  %v2647 = vsel %vm2635, %v2625, %v2628
  %v2648 = vsel %vm2638, %v2634, 1326507024
  %v2649 = vsel %vm2637, %v2631, %v2648
  %v2650 = vsel %vm2636, %v2647, %v2649
  %v2651 = vshll.u32 %v2611, 8
  %v2652 = vand.u32 %v2651, 65535
  %v2653 = vshrl.u32 %v2651, 16
  %v2654 = vand.u32 %v2650, 65535
  %v2655 = vshrl.u32 %v2650, 16
  %v2656 = vmul.u32 %v2652, %v2654
  %v2657 = vmul.u32 %v2652, %v2655
  %v2658 = vmul.u32 %v2653, %v2654
  %v2659 = vmul.u32 %v2653, %v2655
  %v2660 = vshll.u32 %v2657, 16
  %v2661 = vshrl.u32 %v2657, 16
  %v2662 = vshll.u32 %v2658, 16
  %v2663 = vshrl.u32 %v2658, 16
  %vm2664 = vc.u32 %v2656, %v2660
  %v2665 = vsel %vm2664, 1, 0
  %v2666 = vadd.s32 %v2656, %v2660
  %v2667 = vadd.s32 %v2659, %v2665
  %vm2668 = vc.u32 %v2666, %v2662
  %v2669 = vsel %vm2668, 1, 0
  %v2670 = vadd.s32 %v2666, %v2662
  %v2671 = vadd.s32 %v2667, %v2669
  %v2672 = vadd.s32 %v2671, %v2661
  %v2673 = vadd.s32 %v2672, %v2663
  %v2674 = vand.u32 %v2651, 65535
  %v2675 = vshrl.u32 %v2651, 16
  %v2676 = vand.u32 %v2646, 65535
  %v2677 = vshrl.u32 %v2646, 16
  %v2678 = vmul.u32 %v2674, %v2676
  %v2679 = vmul.u32 %v2674, %v2677
  %v2680 = vmul.u32 %v2675, %v2676
  %v2681 = vmul.u32 %v2675, %v2677
  %v2682 = vshll.u32 %v2679, 16
  %v2683 = vshrl.u32 %v2679, 16
  %v2684 = vshll.u32 %v2680, 16
  %v2685 = vshrl.u32 %v2680, 16
  %vm2686 = vc.u32 %v2678, %v2682
  %v2687 = vsel %vm2686, 1, 0
  %v2688 = vadd.s32 %v2678, %v2682
  %v2689 = vadd.s32 %v2681, %v2687
  %vm2690 = vc.u32 %v2688, %v2684
  %v2691 = vsel %vm2690, 1, 0
  %v2692 = vadd.s32 %v2688, %v2684
  %v2693 = vadd.s32 %v2689, %v2691
  %v2694 = vadd.s32 %v2693, %v2683
  %v2695 = vadd.s32 %v2694, %v2685
  %v2696 = vmul.u32 %v2651, %v2642
  %v2697 = vadd.s32 %v2673, %v2692
  %vm2698 = vc.u32 %v2673, %v2692
  %v2699 = vadd.s32 %v2695, 1
  %v2700 = vsel %vm2698, %v2699, %v2695
  %v2701 = vadd.s32 %v2696, %v2700
  %v2702 = vadd.s32 %v2701, 536870912
  %v2703 = vshrl.u32 %v2702, 30
  %v2704 = vshll.u32 %v2703, 30
  %v2705 = vsub.s32 %v2701, %v2704
  %vm2706 = vcmp.lt.s32.totalorder %v2705, 0
  %v2707 = vsub.s32 0, %v2705
  %v2708 = vsel %vm2706, %v2707, %v2705
  %v2709 = vclz %v2708
  %v2710 = vsub.s32 %v2709, 2
  %vm2711 = vcmp.gt.s32.totalorder 0, %v2710
  %v2712 = vsel %vm2711, 0, %v2710
  %v2713 = vsub.s32 32, %v2712
  %v2714 = vshll.u32 %v2705, %v2712
  %v2715 = vshrl.u32 %v2697, %v2713
  %v2716 = vor.u32 %v2714, %v2715
  %v2717 = vsub.s32 4294967266, %v2712
  %v2718 = vadd.s32 %v2717, 127
  %v2719 = vshll.u32 %v2718, 23
  %v2720 = vor.u32 4788187, %v2719
  %v2721 = vand.u32 2147483647, %v2720
  %v2723 = vcvt.s32.f32 %v2716
  %v2724 = vmul.f32 %v2723, %v2721
  %v2725 = vxor.u32 %v2724, 2147483648
  %v2726 = vsel %vm2605, %v2725, %v2724
  %v2727 = vsub.s32 4, %v2703
  %v2728 = vsel %vm2605, %v2727, %v2703
  %v2729 = vsel %vm2604, %v123, %v2726
  %v2730 = vsel %vm2604, 0, %v2728
  %v2731 = vmul.f32 %v2729, %v2729
  %v2732 = vmul.f32 %v2731, -0.001358992
  %v2733 = vadd.f32 %v2732, 0.041655596
  %v2734 = vmul.f32 %v2731, %v2733
  %v2735 = vadd.f32 %v2734, -0.4999988
  %v2736 = vmul.f32 %v2731, %v2735
  %v2737 = vadd.f32 1.0, %v2736
  %v2738 = vmul.f32 %v2729, %v2729
  %v2739 = vmul.f32 %v2738, -0.00019511016
  %v2740 = vadd.f32 %v2739, 0.008332121
  %v2741 = vmul.f32 %v2738, %v2740
  %v2742 = vadd.f32 %v2741, -0.16666654
  %v2743 = vmul.f32 %v2738, %v2742
  %v2744 = vadd.f32 %v2743, 1.0
  %v2745 = vmul.f32 %v2744, %v2729
  %vm2746 = vweird.f32 %v123
  %v2747 = vadd.s32 %v2730, 3
  %v2748 = vand.u32 %v2747, 3
  %vm2749 = vcmp.lt.s32.totalorder %v2748, 2
  %vm2750 = vcmp.eq.s32.totalorder %v2748, 0
  %v2751 = vxor.u32 %v2745, 2147483648
  %v2752 = vsel %vm2750, %v2737, %v2751
  %vm2753 = vcmp.eq.s32.totalorder %v2748, 2
  %v2754 = vxor.u32 %v2737, 2147483648
  %v2755 = vsel %vm2753, %v2754, %v2745
  %v2756 = vsel %vm2749, %v2752, %v2755
  %v2757 = vsel %vm2746, nan, %v2756
  %v2758 = vand.u32 2147483647, %v124
  %vm2759 = vcmp.le.f32.partialorder %v2758, 0.7853982
  %vm2760 = vcmp.lt.s32.totalorder %v124, 0
  %v2761 = vand.u32 %v124, 2139095040
  %v2762 = vshrl.u32 %v2761, 23
  %v2763 = vsub.s32 %v2762, 127
  %v2764 = vand.u32 2147483647, %v124
  %v2765 = vand.u32 %v2764, 8388607
  %v2766 = vor.u32 %v2765, 8388608
  %v2767 = vsub.s32 0, %v2766
  %v2768 = vadd.s32 %v2763, 1
  %vm2769 = vcmp.gt.s32.totalorder %v2768, 0
  %v2770 = vsel %vm2769, %v2768, 0
  %v2771 = vshrl.u32 %v2770, 5
  %v2772 = vand.u32 %v2770, 31
  %v2773 = vsub.s32 32, %v2772
  %v2774 = vshrl.u32 683565275, %v2773
  %v2775 = vshll.u32 683565275, %v2772
  %v2776 = vshrl.u32 2475754826, %v2773
  %v2777 = vor.u32 %v2775, %v2776
  %v2778 = vshll.u32 2475754826, %v2772
  %v2779 = vshrl.u32 2131351028, %v2773
  %v2780 = vor.u32 %v2778, %v2779
  %v2781 = vshll.u32 2131351028, %v2772
  %v2782 = vshrl.u32 2102212464, %v2773
  %v2783 = vor.u32 %v2781, %v2782
  %v2784 = vshll.u32 2102212464, %v2772
  %v2785 = vshrl.u32 920167782, %v2773
  %v2786 = vor.u32 %v2784, %v2785
  %v2787 = vshll.u32 920167782, %v2772
  %v2788 = vshrl.u32 1326507024, %v2773
  %v2789 = vor.u32 %v2787, %v2788
  %vm2790 = vcmp.lt.s32.totalorder %v2771, 1
  %vm2791 = vcmp.lt.s32.totalorder %v2771, 2
  %vm2792 = vcmp.lt.s32.totalorder %v2771, 3
  %vm2793 = vcmp.lt.s32.totalorder %v2771, 4
  %v2794 = vsel %vm2790, %v2774, %v2777
  %v2795 = vsel %vm2793, %v2783, 2102212464
  %v2796 = vsel %vm2792, %v2780, %v2795
  %v2797 = vsel %vm2791, %v2794, %v2796
  %v2798 = vsel %vm2790, %v2777, %v2780
  %v2799 = vsel %vm2793, %v2786, 920167782
  %v2800 = vsel %vm2792, %v2783, %v2799
  %v2801 = vsel %vm2791, %v2798, %v2800
  %v2802 = vsel %vm2790, %v2780, %v2783
  %v2803 = vsel %vm2793, %v2789, 1326507024
  %v2804 = vsel %vm2792, %v2786, %v2803
  %v2805 = vsel %vm2791, %v2802, %v2804
  %v2806 = vshll.u32 %v2766, 8
  %v2807 = vand.u32 %v2806, 65535
  %v2808 = vshrl.u32 %v2806, 16
  %v2809 = vand.u32 %v2805, 65535
  %v2810 = vshrl.u32 %v2805, 16
  %v2811 = vmul.u32 %v2807, %v2809
  %v2812 = vmul.u32 %v2807, %v2810
  %v2813 = vmul.u32 %v2808, %v2809
  %v2814 = vmul.u32 %v2808, %v2810
  %v2815 = vshll.u32 %v2812, 16
  %v2816 = vshrl.u32 %v2812, 16
  %v2817 = vshll.u32 %v2813, 16
  %v2818 = vshrl.u32 %v2813, 16
  %vm2819 = vc.u32 %v2811, %v2815
  %v2820 = vsel %vm2819, 1, 0
  %v2821 = vadd.s32 %v2811, %v2815
  %v2822 = vadd.s32 %v2814, %v2820
  %vm2823 = vc.u32 %v2821, %v2817
  %v2824 = vsel %vm2823, 1, 0
  %v2825 = vadd.s32 %v2821, %v2817
  %v2826 = vadd.s32 %v2822, %v2824
  %v2827 = vadd.s32 %v2826, %v2816
  %v2828 = vadd.s32 %v2827, %v2818
  %v2829 = vand.u32 %v2806, 65535
  %v2830 = vshrl.u32 %v2806, 16
  %v2831 = vand.u32 %v2801, 65535
  %v2832 = vshrl.u32 %v2801, 16
  %v2833 = vmul.u32 %v2829, %v2831
  %v2834 = vmul.u32 %v2829, %v2832
  %v2835 = vmul.u32 %v2830, %v2831
  %v2836 = vmul.u32 %v2830, %v2832
  %v2837 = vshll.u32 %v2834, 16
  %v2838 = vshrl.u32 %v2834, 16
  %v2839 = vshll.u32 %v2835, 16
  %v2840 = vshrl.u32 %v2835, 16
  %vm2841 = vc.u32 %v2833, %v2837
  %v2842 = vsel %vm2841, 1, 0
  %v2843 = vadd.s32 %v2833, %v2837
  %v2844 = vadd.s32 %v2836, %v2842
  %vm2845 = vc.u32 %v2843, %v2839
  %v2846 = vsel %vm2845, 1, 0
  %v2847 = vadd.s32 %v2843, %v2839
  %v2848 = vadd.s32 %v2844, %v2846
  %v2849 = vadd.s32 %v2848, %v2838
  %v2850 = vadd.s32 %v2849, %v2840
  %v2851 = vmul.u32 %v2806, %v2797
  %v2852 = vadd.s32 %v2828, %v2847
  %vm2853 = vc.u32 %v2828, %v2847
  %v2854 = vadd.s32 %v2850, 1
  %v2855 = vsel %vm2853, %v2854, %v2850
  %v2856 = vadd.s32 %v2851, %v2855
  %v2857 = vadd.s32 %v2856, 536870912
  %v2858 = vshrl.u32 %v2857, 30
  %v2859 = vshll.u32 %v2858, 30
  %v2860 = vsub.s32 %v2856, %v2859
  %vm2861 = vcmp.lt.s32.totalorder %v2860, 0
  %v2862 = vsub.s32 0, %v2860
  %v2863 = vsel %vm2861, %v2862, %v2860
  %v2864 = vclz %v2863
  %v2865 = vsub.s32 %v2864, 2
  %vm2866 = vcmp.gt.s32.totalorder 0, %v2865
  %v2867 = vsel %vm2866, 0, %v2865
  %v2868 = vsub.s32 32, %v2867
  %v2869 = vshll.u32 %v2860, %v2867
  %v2870 = vshrl.u32 %v2852, %v2868
  %v2871 = vor.u32 %v2869, %v2870
  %v2872 = vsub.s32 4294967266, %v2867
  %v2873 = vadd.s32 %v2872, 127
  %v2874 = vshll.u32 %v2873, 23
  %v2875 = vor.u32 4788187, %v2874
  %v2876 = vand.u32 2147483647, %v2875
  %v2878 = vcvt.s32.f32 %v2871
  %v2879 = vmul.f32 %v2878, %v2876
  %v2880 = vxor.u32 %v2879, 2147483648
  %v2881 = vsel %vm2760, %v2880, %v2879
  %v2882 = vsub.s32 4, %v2858
  %v2883 = vsel %vm2760, %v2882, %v2858
  %v2884 = vsel %vm2759, %v124, %v2881
  %v2885 = vsel %vm2759, 0, %v2883
  %v2886 = vmul.f32 %v2884, %v2884
  %v2887 = vmul.f32 %v2886, -0.001358992
  %v2888 = vadd.f32 %v2887, 0.041655596
  %v2889 = vmul.f32 %v2886, %v2888
  %v2890 = vadd.f32 %v2889, -0.4999988
  %v2891 = vmul.f32 %v2886, %v2890
  %v2892 = vadd.f32 1.0, %v2891
  %v2893 = vmul.f32 %v2884, %v2884
  %v2894 = vmul.f32 %v2893, -0.00019511016
  %v2895 = vadd.f32 %v2894, 0.008332121
  %v2896 = vmul.f32 %v2893, %v2895
  %v2897 = vadd.f32 %v2896, -0.16666654
  %v2898 = vmul.f32 %v2893, %v2897
  %v2899 = vadd.f32 %v2898, 1.0
  %v2900 = vmul.f32 %v2899, %v2884
  %vm2901 = vweird.f32 %v124
  %v2902 = vadd.s32 %v2885, 3
  %v2903 = vand.u32 %v2902, 3
  %vm2904 = vcmp.lt.s32.totalorder %v2903, 2
  %vm2905 = vcmp.eq.s32.totalorder %v2903, 0
  %v2906 = vxor.u32 %v2900, 2147483648
  %v2907 = vsel %vm2905, %v2892, %v2906
  %vm2908 = vcmp.eq.s32.totalorder %v2903, 2
  %v2909 = vxor.u32 %v2892, 2147483648
  %v2910 = vsel %vm2908, %v2909, %v2900
  %v2911 = vsel %vm2904, %v2907, %v2910
  %v2912 = vsel %vm2901, nan, %v2911
  %v2913 = vand.u32 2147483647, %v125
  %vm2914 = vcmp.le.f32.partialorder %v2913, 0.7853982
  %vm2915 = vcmp.lt.s32.totalorder %v125, 0
  %v2916 = vand.u32 %v125, 2139095040
  %v2917 = vshrl.u32 %v2916, 23
  %v2918 = vsub.s32 %v2917, 127
  %v2919 = vand.u32 2147483647, %v125
  %v2920 = vand.u32 %v2919, 8388607
  %v2921 = vor.u32 %v2920, 8388608
  %v2922 = vsub.s32 0, %v2921
  %v2923 = vadd.s32 %v2918, 1
  %vm2924 = vcmp.gt.s32.totalorder %v2923, 0
  %v2925 = vsel %vm2924, %v2923, 0
  %v2926 = vshrl.u32 %v2925, 5
  %v2927 = vand.u32 %v2925, 31
  %v2928 = vsub.s32 32, %v2927
  %v2929 = vshrl.u32 683565275, %v2928
  %v2930 = vshll.u32 683565275, %v2927
  %v2931 = vshrl.u32 2475754826, %v2928
  %v2932 = vor.u32 %v2930, %v2931
  %v2933 = vshll.u32 2475754826, %v2927
  %v2934 = vshrl.u32 2131351028, %v2928
  %v2935 = vor.u32 %v2933, %v2934
  %v2936 = vshll.u32 2131351028, %v2927
  %v2937 = vshrl.u32 2102212464, %v2928
  %v2938 = vor.u32 %v2936, %v2937
  %v2939 = vshll.u32 2102212464, %v2927
  %v2940 = vshrl.u32 920167782, %v2928
  %v2941 = vor.u32 %v2939, %v2940
  %v2942 = vshll.u32 920167782, %v2927
  %v2943 = vshrl.u32 1326507024, %v2928
  %v2944 = vor.u32 %v2942, %v2943
  %vm2945 = vcmp.lt.s32.totalorder %v2926, 1
  %vm2946 = vcmp.lt.s32.totalorder %v2926, 2
  %vm2947 = vcmp.lt.s32.totalorder %v2926, 3
  %vm2948 = vcmp.lt.s32.totalorder %v2926, 4
  %v2949 = vsel %vm2945, %v2929, %v2932
  %v2950 = vsel %vm2948, %v2938, 2102212464
  %v2951 = vsel %vm2947, %v2935, %v2950
  %v2952 = vsel %vm2946, %v2949, %v2951
  %v2953 = vsel %vm2945, %v2932, %v2935
  %v2954 = vsel %vm2948, %v2941, 920167782
  %v2955 = vsel %vm2947, %v2938, %v2954
  %v2956 = vsel %vm2946, %v2953, %v2955
  %v2957 = vsel %vm2945, %v2935, %v2938
  %v2958 = vsel %vm2948, %v2944, 1326507024
  %v2959 = vsel %vm2947, %v2941, %v2958
  %v2960 = vsel %vm2946, %v2957, %v2959
  %v2961 = vshll.u32 %v2921, 8
  %v2962 = vand.u32 %v2961, 65535
  %v2963 = vshrl.u32 %v2961, 16
  %v2964 = vand.u32 %v2960, 65535
  %v2965 = vshrl.u32 %v2960, 16
  %v2966 = vmul.u32 %v2962, %v2964
  %v2967 = vmul.u32 %v2962, %v2965
  %v2968 = vmul.u32 %v2963, %v2964
  %v2969 = vmul.u32 %v2963, %v2965
  %v2970 = vshll.u32 %v2967, 16
  %v2971 = vshrl.u32 %v2967, 16
  %v2972 = vshll.u32 %v2968, 16
  %v2973 = vshrl.u32 %v2968, 16
  %vm2974 = vc.u32 %v2966, %v2970
  %v2975 = vsel %vm2974, 1, 0
  %v2976 = vadd.s32 %v2966, %v2970
  %v2977 = vadd.s32 %v2969, %v2975
  %vm2978 = vc.u32 %v2976, %v2972
  %v2979 = vsel %vm2978, 1, 0
  %v2980 = vadd.s32 %v2976, %v2972
  %v2981 = vadd.s32 %v2977, %v2979
  %v2982 = vadd.s32 %v2981, %v2971
  %v2983 = vadd.s32 %v2982, %v2973
  %v2984 = vand.u32 %v2961, 65535
  %v2985 = vshrl.u32 %v2961, 16
  %v2986 = vand.u32 %v2956, 65535
  %v2987 = vshrl.u32 %v2956, 16
  %v2988 = vmul.u32 %v2984, %v2986
  %v2989 = vmul.u32 %v2984, %v2987
  %v2990 = vmul.u32 %v2985, %v2986
  %v2991 = vmul.u32 %v2985, %v2987
  %v2992 = vshll.u32 %v2989, 16
  %v2993 = vshrl.u32 %v2989, 16
  %v2994 = vshll.u32 %v2990, 16
  %v2995 = vshrl.u32 %v2990, 16
  %vm2996 = vc.u32 %v2988, %v2992
  %v2997 = vsel %vm2996, 1, 0
  %v2998 = vadd.s32 %v2988, %v2992
  %v2999 = vadd.s32 %v2991, %v2997
  %vm3000 = vc.u32 %v2998, %v2994
  %v3001 = vsel %vm3000, 1, 0
  %v3002 = vadd.s32 %v2998, %v2994
  %v3003 = vadd.s32 %v2999, %v3001
  %v3004 = vadd.s32 %v3003, %v2993
  %v3005 = vadd.s32 %v3004, %v2995
  %v3006 = vmul.u32 %v2961, %v2952
  %v3007 = vadd.s32 %v2983, %v3002
  %vm3008 = vc.u32 %v2983, %v3002
  %v3009 = vadd.s32 %v3005, 1
  %v3010 = vsel %vm3008, %v3009, %v3005
  %v3011 = vadd.s32 %v3006, %v3010
  %v3012 = vadd.s32 %v3011, 536870912
  %v3013 = vshrl.u32 %v3012, 30
  %v3014 = vshll.u32 %v3013, 30
  %v3015 = vsub.s32 %v3011, %v3014
  %vm3016 = vcmp.lt.s32.totalorder %v3015, 0
  %v3017 = vsub.s32 0, %v3015
  %v3018 = vsel %vm3016, %v3017, %v3015
  %v3019 = vclz %v3018
  %v3020 = vsub.s32 %v3019, 2
  %vm3021 = vcmp.gt.s32.totalorder 0, %v3020
  %v3022 = vsel %vm3021, 0, %v3020
  %v3023 = vsub.s32 32, %v3022
  %v3024 = vshll.u32 %v3015, %v3022
  %v3025 = vshrl.u32 %v3007, %v3023
  %v3026 = vor.u32 %v3024, %v3025
  %v3027 = vsub.s32 4294967266, %v3022
  %v3028 = vadd.s32 %v3027, 127
  %v3029 = vshll.u32 %v3028, 23
  %v3030 = vor.u32 4788187, %v3029
  %v3031 = vand.u32 2147483647, %v3030
  %v3033 = vcvt.s32.f32 %v3026
  %v3034 = vmul.f32 %v3033, %v3031
  %v3035 = vxor.u32 %v3034, 2147483648
  %v3036 = vsel %vm2915, %v3035, %v3034
  %v3037 = vsub.s32 4, %v3013
  %v3038 = vsel %vm2915, %v3037, %v3013
  %v3039 = vsel %vm2914, %v125, %v3036
  %v3040 = vsel %vm2914, 0, %v3038
  %v3041 = vmul.f32 %v3039, %v3039
  %v3042 = vmul.f32 %v3041, -0.001358992
  %v3043 = vadd.f32 %v3042, 0.041655596
  %v3044 = vmul.f32 %v3041, %v3043
  %v3045 = vadd.f32 %v3044, -0.4999988
  %v3046 = vmul.f32 %v3041, %v3045
  %v3047 = vadd.f32 1.0, %v3046
  %v3048 = vmul.f32 %v3039, %v3039
  %v3049 = vmul.f32 %v3048, -0.00019511016
  %v3050 = vadd.f32 %v3049, 0.008332121
  %v3051 = vmul.f32 %v3048, %v3050
  %v3052 = vadd.f32 %v3051, -0.16666654
  %v3053 = vmul.f32 %v3048, %v3052
  %v3054 = vadd.f32 %v3053, 1.0
  %v3055 = vmul.f32 %v3054, %v3039
  %vm3056 = vweird.f32 %v125
  %v3057 = vadd.s32 %v3040, 3
  %v3058 = vand.u32 %v3057, 3
  %vm3059 = vcmp.lt.s32.totalorder %v3058, 2
  %vm3060 = vcmp.eq.s32.totalorder %v3058, 0
  %v3061 = vxor.u32 %v3055, 2147483648
  %v3062 = vsel %vm3060, %v3047, %v3061
  %vm3063 = vcmp.eq.s32.totalorder %v3058, 2
  %v3064 = vxor.u32 %v3047, 2147483648
  %v3065 = vsel %vm3063, %v3064, %v3055
  %v3066 = vsel %vm3059, %v3062, %v3065
  %v3067 = vsel %vm3056, nan, %v3066
  %v3068 = vand.u32 2147483647, %v126
  %vm3069 = vcmp.le.f32.partialorder %v3068, 0.7853982
  %vm3070 = vcmp.lt.s32.totalorder %v126, 0
  %v3071 = vand.u32 %v126, 2139095040
  %v3072 = vshrl.u32 %v3071, 23
  %v3073 = vsub.s32 %v3072, 127
  %v3074 = vand.u32 2147483647, %v126
  %v3075 = vand.u32 %v3074, 8388607
  %v3076 = vor.u32 %v3075, 8388608
  %v3077 = vsub.s32 0, %v3076
  %v3078 = vadd.s32 %v3073, 1
  %vm3079 = vcmp.gt.s32.totalorder %v3078, 0
  %v3080 = vsel %vm3079, %v3078, 0
  %v3081 = vshrl.u32 %v3080, 5
  %v3082 = vand.u32 %v3080, 31
  %v3083 = vsub.s32 32, %v3082
  %v3084 = vshrl.u32 683565275, %v3083
  %v3085 = vshll.u32 683565275, %v3082
  %v3086 = vshrl.u32 2475754826, %v3083
  %v3087 = vor.u32 %v3085, %v3086
  %v3088 = vshll.u32 2475754826, %v3082
  %v3089 = vshrl.u32 2131351028, %v3083
  %v3090 = vor.u32 %v3088, %v3089
  %v3091 = vshll.u32 2131351028, %v3082
  %v3092 = vshrl.u32 2102212464, %v3083
  %v3093 = vor.u32 %v3091, %v3092
  %v3094 = vshll.u32 2102212464, %v3082
  %v3095 = vshrl.u32 920167782, %v3083
  %v3096 = vor.u32 %v3094, %v3095
  %v3097 = vshll.u32 920167782, %v3082
  %v3098 = vshrl.u32 1326507024, %v3083
  %v3099 = vor.u32 %v3097, %v3098
  %vm3100 = vcmp.lt.s32.totalorder %v3081, 1
  %vm3101 = vcmp.lt.s32.totalorder %v3081, 2
  %vm3102 = vcmp.lt.s32.totalorder %v3081, 3
  %vm3103 = vcmp.lt.s32.totalorder %v3081, 4
  %v3104 = vsel %vm3100, %v3084, %v3087
  %v3105 = vsel %vm3103, %v3093, 2102212464
  %v3106 = vsel %vm3102, %v3090, %v3105
  %v3107 = vsel %vm3101, %v3104, %v3106
  %v3108 = vsel %vm3100, %v3087, %v3090
  %v3109 = vsel %vm3103, %v3096, 920167782
  %v3110 = vsel %vm3102, %v3093, %v3109
  %v3111 = vsel %vm3101, %v3108, %v3110
  %v3112 = vsel %vm3100, %v3090, %v3093
  %v3113 = vsel %vm3103, %v3099, 1326507024
  %v3114 = vsel %vm3102, %v3096, %v3113
  %v3115 = vsel %vm3101, %v3112, %v3114
  %v3116 = vshll.u32 %v3076, 8
  %v3117 = vand.u32 %v3116, 65535
  %v3118 = vshrl.u32 %v3116, 16
  %v3119 = vand.u32 %v3115, 65535
  %v3120 = vshrl.u32 %v3115, 16
  %v3121 = vmul.u32 %v3117, %v3119
  %v3122 = vmul.u32 %v3117, %v3120
  %v3123 = vmul.u32 %v3118, %v3119
  %v3124 = vmul.u32 %v3118, %v3120
  %v3125 = vshll.u32 %v3122, 16
  %v3126 = vshrl.u32 %v3122, 16
  %v3127 = vshll.u32 %v3123, 16
  %v3128 = vshrl.u32 %v3123, 16
  %vm3129 = vc.u32 %v3121, %v3125
  %v3130 = vsel %vm3129, 1, 0
  %v3131 = vadd.s32 %v3121, %v3125
  %v3132 = vadd.s32 %v3124, %v3130
  %vm3133 = vc.u32 %v3131, %v3127
  %v3134 = vsel %vm3133, 1, 0
  %v3135 = vadd.s32 %v3131, %v3127
  %v3136 = vadd.s32 %v3132, %v3134
  %v3137 = vadd.s32 %v3136, %v3126
  %v3138 = vadd.s32 %v3137, %v3128
  %v3139 = vand.u32 %v3116, 65535
  %v3140 = vshrl.u32 %v3116, 16
  %v3141 = vand.u32 %v3111, 65535
  %v3142 = vshrl.u32 %v3111, 16
  %v3143 = vmul.u32 %v3139, %v3141
  %v3144 = vmul.u32 %v3139, %v3142
  %v3145 = vmul.u32 %v3140, %v3141
  %v3146 = vmul.u32 %v3140, %v3142
  %v3147 = vshll.u32 %v3144, 16
  %v3148 = vshrl.u32 %v3144, 16
  %v3149 = vshll.u32 %v3145, 16
  %v3150 = vshrl.u32 %v3145, 16
  %vm3151 = vc.u32 %v3143, %v3147
  %v3152 = vsel %vm3151, 1, 0
  %v3153 = vadd.s32 %v3143, %v3147
  %v3154 = vadd.s32 %v3146, %v3152
  %vm3155 = vc.u32 %v3153, %v3149
  %v3156 = vsel %vm3155, 1, 0
  %v3157 = vadd.s32 %v3153, %v3149
  %v3158 = vadd.s32 %v3154, %v3156
  %v3159 = vadd.s32 %v3158, %v3148
  %v3160 = vadd.s32 %v3159, %v3150
  %v3161 = vmul.u32 %v3116, %v3107
  %v3162 = vadd.s32 %v3138, %v3157
  %vm3163 = vc.u32 %v3138, %v3157
  %v3164 = vadd.s32 %v3160, 1
  %v3165 = vsel %vm3163, %v3164, %v3160
  %v3166 = vadd.s32 %v3161, %v3165
  %v3167 = vadd.s32 %v3166, 536870912
  %v3168 = vshrl.u32 %v3167, 30
  %v3169 = vshll.u32 %v3168, 30
  %v3170 = vsub.s32 %v3166, %v3169
  %vm3171 = vcmp.lt.s32.totalorder %v3170, 0
  %v3172 = vsub.s32 0, %v3170
  %v3173 = vsel %vm3171, %v3172, %v3170
  %v3174 = vclz %v3173
  %v3175 = vsub.s32 %v3174, 2
  %vm3176 = vcmp.gt.s32.totalorder 0, %v3175
  %v3177 = vsel %vm3176, 0, %v3175
  %v3178 = vsub.s32 32, %v3177
  %v3179 = vshll.u32 %v3170, %v3177
  %v3180 = vshrl.u32 %v3162, %v3178
  %v3181 = vor.u32 %v3179, %v3180
  %v3182 = vsub.s32 4294967266, %v3177
  %v3183 = vadd.s32 %v3182, 127
  %v3184 = vshll.u32 %v3183, 23
  %v3185 = vor.u32 4788187, %v3184
  %v3186 = vand.u32 2147483647, %v3185
  %v3188 = vcvt.s32.f32 %v3181
  %v3189 = vmul.f32 %v3188, %v3186
  %v3190 = vxor.u32 %v3189, 2147483648
  %v3191 = vsel %vm3070, %v3190, %v3189
  %v3192 = vsub.s32 4, %v3168
  %v3193 = vsel %vm3070, %v3192, %v3168
  %v3194 = vsel %vm3069, %v126, %v3191
  %v3195 = vsel %vm3069, 0, %v3193
  %v3196 = vmul.f32 %v3194, %v3194
  %v3197 = vmul.f32 %v3196, -0.001358992
  %v3198 = vadd.f32 %v3197, 0.041655596
  %v3199 = vmul.f32 %v3196, %v3198
  %v3200 = vadd.f32 %v3199, -0.4999988
  %v3201 = vmul.f32 %v3196, %v3200
  %v3202 = vadd.f32 1.0, %v3201
  %v3203 = vmul.f32 %v3194, %v3194
  %v3204 = vmul.f32 %v3203, -0.00019511016
  %v3205 = vadd.f32 %v3204, 0.008332121
  %v3206 = vmul.f32 %v3203, %v3205
  %v3207 = vadd.f32 %v3206, -0.16666654
  %v3208 = vmul.f32 %v3203, %v3207
  %v3209 = vadd.f32 %v3208, 1.0
  %v3210 = vmul.f32 %v3209, %v3194
  %vm3211 = vweird.f32 %v126
  %v3212 = vadd.s32 %v3195, 3
  %v3213 = vand.u32 %v3212, 3
  %vm3214 = vcmp.lt.s32.totalorder %v3213, 2
  %vm3215 = vcmp.eq.s32.totalorder %v3213, 0
  %v3216 = vxor.u32 %v3210, 2147483648
  %v3217 = vsel %vm3215, %v3202, %v3216
  %vm3218 = vcmp.eq.s32.totalorder %v3213, 2
  %v3219 = vxor.u32 %v3202, 2147483648
  %v3220 = vsel %vm3218, %v3219, %v3210
  %v3221 = vsel %vm3214, %v3217, %v3220
  %v3222 = vsel %vm3211, nan, %v3221
  %v3223 = vand.u32 2147483647, %v127
  %vm3224 = vcmp.le.f32.partialorder %v3223, 0.7853982
  %vm3225 = vcmp.lt.s32.totalorder %v127, 0
  %v3226 = vand.u32 %v127, 2139095040
  %v3227 = vshrl.u32 %v3226, 23
  %v3228 = vsub.s32 %v3227, 127
  %v3229 = vand.u32 2147483647, %v127
  %v3230 = vand.u32 %v3229, 8388607
  %v3231 = vor.u32 %v3230, 8388608
  %v3232 = vsub.s32 0, %v3231
  %v3233 = vadd.s32 %v3228, 1
  %vm3234 = vcmp.gt.s32.totalorder %v3233, 0
  %v3235 = vsel %vm3234, %v3233, 0
  %v3236 = vshrl.u32 %v3235, 5
  %v3237 = vand.u32 %v3235, 31
  %v3238 = vsub.s32 32, %v3237
  %v3239 = vshrl.u32 683565275, %v3238
  %v3240 = vshll.u32 683565275, %v3237
  %v3241 = vshrl.u32 2475754826, %v3238
  %v3242 = vor.u32 %v3240, %v3241
  %v3243 = vshll.u32 2475754826, %v3237
  %v3244 = vshrl.u32 2131351028, %v3238
  %v3245 = vor.u32 %v3243, %v3244
  %v3246 = vshll.u32 2131351028, %v3237
  %v3247 = vshrl.u32 2102212464, %v3238
  %v3248 = vor.u32 %v3246, %v3247
  %v3249 = vshll.u32 2102212464, %v3237
  %v3250 = vshrl.u32 920167782, %v3238
  %v3251 = vor.u32 %v3249, %v3250
  %v3252 = vshll.u32 920167782, %v3237
  %v3253 = vshrl.u32 1326507024, %v3238
  %v3254 = vor.u32 %v3252, %v3253
  %vm3255 = vcmp.lt.s32.totalorder %v3236, 1
  %vm3256 = vcmp.lt.s32.totalorder %v3236, 2
  %vm3257 = vcmp.lt.s32.totalorder %v3236, 3
  %vm3258 = vcmp.lt.s32.totalorder %v3236, 4
  %v3259 = vsel %vm3255, %v3239, %v3242
  %v3260 = vsel %vm3258, %v3248, 2102212464
  %v3261 = vsel %vm3257, %v3245, %v3260
  %v3262 = vsel %vm3256, %v3259, %v3261
  %v3263 = vsel %vm3255, %v3242, %v3245
  %v3264 = vsel %vm3258, %v3251, 920167782
  %v3265 = vsel %vm3257, %v3248, %v3264
  %v3266 = vsel %vm3256, %v3263, %v3265
  %v3267 = vsel %vm3255, %v3245, %v3248
  %v3268 = vsel %vm3258, %v3254, 1326507024
  %v3269 = vsel %vm3257, %v3251, %v3268
  %v3270 = vsel %vm3256, %v3267, %v3269
  %v3271 = vshll.u32 %v3231, 8
  %v3272 = vand.u32 %v3271, 65535
  %v3273 = vshrl.u32 %v3271, 16
  %v3274 = vand.u32 %v3270, 65535
  %v3275 = vshrl.u32 %v3270, 16
  %v3276 = vmul.u32 %v3272, %v3274
  %v3277 = vmul.u32 %v3272, %v3275
  %v3278 = vmul.u32 %v3273, %v3274
  %v3279 = vmul.u32 %v3273, %v3275
  %v3280 = vshll.u32 %v3277, 16
  %v3281 = vshrl.u32 %v3277, 16
  %v3282 = vshll.u32 %v3278, 16
  %v3283 = vshrl.u32 %v3278, 16
  %vm3284 = vc.u32 %v3276, %v3280
  %v3285 = vsel %vm3284, 1, 0
  %v3286 = vadd.s32 %v3276, %v3280
  %v3287 = vadd.s32 %v3279, %v3285
  %vm3288 = vc.u32 %v3286, %v3282
  %v3289 = vsel %vm3288, 1, 0
  %v3290 = vadd.s32 %v3286, %v3282
  %v3291 = vadd.s32 %v3287, %v3289
  %v3292 = vadd.s32 %v3291, %v3281
  %v3293 = vadd.s32 %v3292, %v3283
  %v3294 = vand.u32 %v3271, 65535
  %v3295 = vshrl.u32 %v3271, 16
  %v3296 = vand.u32 %v3266, 65535
  %v3297 = vshrl.u32 %v3266, 16
  %v3298 = vmul.u32 %v3294, %v3296
  %v3299 = vmul.u32 %v3294, %v3297
  %v3300 = vmul.u32 %v3295, %v3296
  %v3301 = vmul.u32 %v3295, %v3297
  %v3302 = vshll.u32 %v3299, 16
  %v3303 = vshrl.u32 %v3299, 16
  %v3304 = vshll.u32 %v3300, 16
  %v3305 = vshrl.u32 %v3300, 16
  %vm3306 = vc.u32 %v3298, %v3302
  %v3307 = vsel %vm3306, 1, 0
  %v3308 = vadd.s32 %v3298, %v3302
  %v3309 = vadd.s32 %v3301, %v3307
  %vm3310 = vc.u32 %v3308, %v3304
  %v3311 = vsel %vm3310, 1, 0
  %v3312 = vadd.s32 %v3308, %v3304
  %v3313 = vadd.s32 %v3309, %v3311
  %v3314 = vadd.s32 %v3313, %v3303
  %v3315 = vadd.s32 %v3314, %v3305
  %v3316 = vmul.u32 %v3271, %v3262
  %v3317 = vadd.s32 %v3293, %v3312
  %vm3318 = vc.u32 %v3293, %v3312
  %v3319 = vadd.s32 %v3315, 1
  %v3320 = vsel %vm3318, %v3319, %v3315
  %v3321 = vadd.s32 %v3316, %v3320
  %v3322 = vadd.s32 %v3321, 536870912
  %v3323 = vshrl.u32 %v3322, 30
  %v3324 = vshll.u32 %v3323, 30
  %v3325 = vsub.s32 %v3321, %v3324
  %vm3326 = vcmp.lt.s32.totalorder %v3325, 0
  %v3327 = vsub.s32 0, %v3325
  %v3328 = vsel %vm3326, %v3327, %v3325
  %v3329 = vclz %v3328
  %v3330 = vsub.s32 %v3329, 2
  %vm3331 = vcmp.gt.s32.totalorder 0, %v3330
  %v3332 = vsel %vm3331, 0, %v3330
  %v3333 = vsub.s32 32, %v3332
  %v3334 = vshll.u32 %v3325, %v3332
  %v3335 = vshrl.u32 %v3317, %v3333
  %v3336 = vor.u32 %v3334, %v3335
  %v3337 = vsub.s32 4294967266, %v3332
  %v3338 = vadd.s32 %v3337, 127
  %v3339 = vshll.u32 %v3338, 23
  %v3340 = vor.u32 4788187, %v3339
  %v3341 = vand.u32 2147483647, %v3340
  %v3343 = vcvt.s32.f32 %v3336
  %v3344 = vmul.f32 %v3343, %v3341
  %v3345 = vxor.u32 %v3344, 2147483648
  %v3346 = vsel %vm3225, %v3345, %v3344
  %v3347 = vsub.s32 4, %v3323
  %v3348 = vsel %vm3225, %v3347, %v3323
  %v3349 = vsel %vm3224, %v127, %v3346
  %v3350 = vsel %vm3224, 0, %v3348
  %v3351 = vmul.f32 %v3349, %v3349
  %v3352 = vmul.f32 %v3351, -0.001358992
  %v3353 = vadd.f32 %v3352, 0.041655596
  %v3354 = vmul.f32 %v3351, %v3353
  %v3355 = vadd.f32 %v3354, -0.4999988
  %v3356 = vmul.f32 %v3351, %v3355
  %v3357 = vadd.f32 1.0, %v3356
  %v3358 = vmul.f32 %v3349, %v3349
  %v3359 = vmul.f32 %v3358, -0.00019511016
  %v3360 = vadd.f32 %v3359, 0.008332121
  %v3361 = vmul.f32 %v3358, %v3360
  %v3362 = vadd.f32 %v3361, -0.16666654
  %v3363 = vmul.f32 %v3358, %v3362
  %v3364 = vadd.f32 %v3363, 1.0
  %v3365 = vmul.f32 %v3364, %v3349
  %vm3366 = vweird.f32 %v127
  %v3367 = vadd.s32 %v3350, 3
  %v3368 = vand.u32 %v3367, 3
  %vm3369 = vcmp.lt.s32.totalorder %v3368, 2
  %vm3370 = vcmp.eq.s32.totalorder %v3368, 0
  %v3371 = vxor.u32 %v3365, 2147483648
  %v3372 = vsel %vm3370, %v3357, %v3371
  %vm3373 = vcmp.eq.s32.totalorder %v3368, 2
  %v3374 = vxor.u32 %v3357, 2147483648
  %v3375 = vsel %vm3373, %v3374, %v3365
  %v3376 = vsel %vm3369, %v3372, %v3375
  %v3377 = vsel %vm3366, nan, %v3376
  %v3378 = vand.u32 2147483647, %v128
  %vm3379 = vcmp.le.f32.partialorder %v3378, 0.7853982
  %vm3380 = vcmp.lt.s32.totalorder %v128, 0
  %v3381 = vand.u32 %v128, 2139095040
  %v3382 = vshrl.u32 %v3381, 23
  %v3383 = vsub.s32 %v3382, 127
  %v3384 = vand.u32 2147483647, %v128
  %v3385 = vand.u32 %v3384, 8388607
  %v3386 = vor.u32 %v3385, 8388608
  %v3387 = vsub.s32 0, %v3386
  %v3388 = vadd.s32 %v3383, 1
  %vm3389 = vcmp.gt.s32.totalorder %v3388, 0
  %v3390 = vsel %vm3389, %v3388, 0
  %v3391 = vshrl.u32 %v3390, 5
  %v3392 = vand.u32 %v3390, 31
  %v3393 = vsub.s32 32, %v3392
  %v3394 = vshrl.u32 683565275, %v3393
  %v3395 = vshll.u32 683565275, %v3392
  %v3396 = vshrl.u32 2475754826, %v3393
  %v3397 = vor.u32 %v3395, %v3396
  %v3398 = vshll.u32 2475754826, %v3392
  %v3399 = vshrl.u32 2131351028, %v3393
  %v3400 = vor.u32 %v3398, %v3399
  %v3401 = vshll.u32 2131351028, %v3392
  %v3402 = vshrl.u32 2102212464, %v3393
  %v3403 = vor.u32 %v3401, %v3402
  %v3404 = vshll.u32 2102212464, %v3392
  %v3405 = vshrl.u32 920167782, %v3393
  %v3406 = vor.u32 %v3404, %v3405
  %v3407 = vshll.u32 920167782, %v3392
  %v3408 = vshrl.u32 1326507024, %v3393
  %v3409 = vor.u32 %v3407, %v3408
  %vm3410 = vcmp.lt.s32.totalorder %v3391, 1
  %vm3411 = vcmp.lt.s32.totalorder %v3391, 2
  %vm3412 = vcmp.lt.s32.totalorder %v3391, 3
  %vm3413 = vcmp.lt.s32.totalorder %v3391, 4
  %v3414 = vsel %vm3410, %v3394, %v3397
  %v3415 = vsel %vm3413, %v3403, 2102212464
  %v3416 = vsel %vm3412, %v3400, %v3415
  %v3417 = vsel %vm3411, %v3414, %v3416
  %v3418 = vsel %vm3410, %v3397, %v3400
  %v3419 = vsel %vm3413, %v3406, 920167782
  %v3420 = vsel %vm3412, %v3403, %v3419
  %v3421 = vsel %vm3411, %v3418, %v3420
  %v3422 = vsel %vm3410, %v3400, %v3403
  %v3423 = vsel %vm3413, %v3409, 1326507024
  %v3424 = vsel %vm3412, %v3406, %v3423
  %v3425 = vsel %vm3411, %v3422, %v3424
  %v3426 = vshll.u32 %v3386, 8
  %v3427 = vand.u32 %v3426, 65535
  %v3428 = vshrl.u32 %v3426, 16
  %v3429 = vand.u32 %v3425, 65535
  %v3430 = vshrl.u32 %v3425, 16
  %v3431 = vmul.u32 %v3427, %v3429
  %v3432 = vmul.u32 %v3427, %v3430
  %v3433 = vmul.u32 %v3428, %v3429
  %v3434 = vmul.u32 %v3428, %v3430
  %v3435 = vshll.u32 %v3432, 16
  %v3436 = vshrl.u32 %v3432, 16
  %v3437 = vshll.u32 %v3433, 16
  %v3438 = vshrl.u32 %v3433, 16
  %vm3439 = vc.u32 %v3431, %v3435
  %v3440 = vsel %vm3439, 1, 0
  %v3441 = vadd.s32 %v3431, %v3435
  %v3442 = vadd.s32 %v3434, %v3440
  %vm3443 = vc.u32 %v3441, %v3437
  %v3444 = vsel %vm3443, 1, 0
  %v3445 = vadd.s32 %v3441, %v3437
  %v3446 = vadd.s32 %v3442, %v3444
  %v3447 = vadd.s32 %v3446, %v3436
  %v3448 = vadd.s32 %v3447, %v3438
  %v3449 = vand.u32 %v3426, 65535
  %v3450 = vshrl.u32 %v3426, 16
  %v3451 = vand.u32 %v3421, 65535
  %v3452 = vshrl.u32 %v3421, 16
  %v3453 = vmul.u32 %v3449, %v3451
  %v3454 = vmul.u32 %v3449, %v3452
  %v3455 = vmul.u32 %v3450, %v3451
  %v3456 = vmul.u32 %v3450, %v3452
  %v3457 = vshll.u32 %v3454, 16
  %v3458 = vshrl.u32 %v3454, 16
  %v3459 = vshll.u32 %v3455, 16
  %v3460 = vshrl.u32 %v3455, 16
  %vm3461 = vc.u32 %v3453, %v3457
  %v3462 = vsel %vm3461, 1, 0
  %v3463 = vadd.s32 %v3453, %v3457
  %v3464 = vadd.s32 %v3456, %v3462
  %vm3465 = vc.u32 %v3463, %v3459
  %v3466 = vsel %vm3465, 1, 0
  %v3467 = vadd.s32 %v3463, %v3459
  %v3468 = vadd.s32 %v3464, %v3466
  %v3469 = vadd.s32 %v3468, %v3458
  %v3470 = vadd.s32 %v3469, %v3460
  %v3471 = vmul.u32 %v3426, %v3417
  %v3472 = vadd.s32 %v3448, %v3467
  %vm3473 = vc.u32 %v3448, %v3467
  %v3474 = vadd.s32 %v3470, 1
  %v3475 = vsel %vm3473, %v3474, %v3470
  %v3476 = vadd.s32 %v3471, %v3475
  %v3477 = vadd.s32 %v3476, 536870912
  %v3478 = vshrl.u32 %v3477, 30
  %v3479 = vshll.u32 %v3478, 30
  %v3480 = vsub.s32 %v3476, %v3479
  %vm3481 = vcmp.lt.s32.totalorder %v3480, 0
  %v3482 = vsub.s32 0, %v3480
  %v3483 = vsel %vm3481, %v3482, %v3480
  %v3484 = vclz %v3483
  %v3485 = vsub.s32 %v3484, 2
  %vm3486 = vcmp.gt.s32.totalorder 0, %v3485
  %v3487 = vsel %vm3486, 0, %v3485
  %v3488 = vsub.s32 32, %v3487
  %v3489 = vshll.u32 %v3480, %v3487
  %v3490 = vshrl.u32 %v3472, %v3488
  %v3491 = vor.u32 %v3489, %v3490
  %v3492 = vsub.s32 4294967266, %v3487
  %v3493 = vadd.s32 %v3492, 127
  %v3494 = vshll.u32 %v3493, 23
  %v3495 = vor.u32 4788187, %v3494
  %v3496 = vand.u32 2147483647, %v3495
  %v3498 = vcvt.s32.f32 %v3491
  %v3499 = vmul.f32 %v3498, %v3496
  %v3500 = vxor.u32 %v3499, 2147483648
  %v3501 = vsel %vm3380, %v3500, %v3499
  %v3502 = vsub.s32 4, %v3478
  %v3503 = vsel %vm3380, %v3502, %v3478
  %v3504 = vsel %vm3379, %v128, %v3501
  %v3505 = vsel %vm3379, 0, %v3503
  %v3506 = vmul.f32 %v3504, %v3504
  %v3507 = vmul.f32 %v3506, -0.001358992
  %v3508 = vadd.f32 %v3507, 0.041655596
  %v3509 = vmul.f32 %v3506, %v3508
  %v3510 = vadd.f32 %v3509, -0.4999988
  %v3511 = vmul.f32 %v3506, %v3510
  %v3512 = vadd.f32 1.0, %v3511
  %v3513 = vmul.f32 %v3504, %v3504
  %v3514 = vmul.f32 %v3513, -0.00019511016
  %v3515 = vadd.f32 %v3514, 0.008332121
  %v3516 = vmul.f32 %v3513, %v3515
  %v3517 = vadd.f32 %v3516, -0.16666654
  %v3518 = vmul.f32 %v3513, %v3517
  %v3519 = vadd.f32 %v3518, 1.0
  %v3520 = vmul.f32 %v3519, %v3504
  %vm3521 = vweird.f32 %v128
  %v3522 = vadd.s32 %v3505, 3
  %v3523 = vand.u32 %v3522, 3
  %vm3524 = vcmp.lt.s32.totalorder %v3523, 2
  %vm3525 = vcmp.eq.s32.totalorder %v3523, 0
  %v3526 = vxor.u32 %v3520, 2147483648
  %v3527 = vsel %vm3525, %v3512, %v3526
  %vm3528 = vcmp.eq.s32.totalorder %v3523, 2
  %v3529 = vxor.u32 %v3512, 2147483648
  %v3530 = vsel %vm3528, %v3529, %v3520
  %v3531 = vsel %vm3524, %v3527, %v3530
  %v3532 = vsel %vm3521, nan, %v3531
  %v3533 = vand.u32 2147483647, %v129
  %vm3534 = vcmp.le.f32.partialorder %v3533, 0.7853982
  %vm3535 = vcmp.lt.s32.totalorder %v129, 0
  %v3536 = vand.u32 %v129, 2139095040
  %v3537 = vshrl.u32 %v3536, 23
  %v3538 = vsub.s32 %v3537, 127
  %v3539 = vand.u32 2147483647, %v129
  %v3540 = vand.u32 %v3539, 8388607
  %v3541 = vor.u32 %v3540, 8388608
  %v3542 = vsub.s32 0, %v3541
  %v3543 = vadd.s32 %v3538, 1
  %vm3544 = vcmp.gt.s32.totalorder %v3543, 0
  %v3545 = vsel %vm3544, %v3543, 0
  %v3546 = vshrl.u32 %v3545, 5
  %v3547 = vand.u32 %v3545, 31
  %v3548 = vsub.s32 32, %v3547
  %v3549 = vshrl.u32 683565275, %v3548
  %v3550 = vshll.u32 683565275, %v3547
  %v3551 = vshrl.u32 2475754826, %v3548
  %v3552 = vor.u32 %v3550, %v3551
  %v3553 = vshll.u32 2475754826, %v3547
  %v3554 = vshrl.u32 2131351028, %v3548
  %v3555 = vor.u32 %v3553, %v3554
  %v3556 = vshll.u32 2131351028, %v3547
  %v3557 = vshrl.u32 2102212464, %v3548
  %v3558 = vor.u32 %v3556, %v3557
  %v3559 = vshll.u32 2102212464, %v3547
  %v3560 = vshrl.u32 920167782, %v3548
  %v3561 = vor.u32 %v3559, %v3560
  %v3562 = vshll.u32 920167782, %v3547
  %v3563 = vshrl.u32 1326507024, %v3548
  %v3564 = vor.u32 %v3562, %v3563
  %vm3565 = vcmp.lt.s32.totalorder %v3546, 1
  %vm3566 = vcmp.lt.s32.totalorder %v3546, 2
  %vm3567 = vcmp.lt.s32.totalorder %v3546, 3
  %vm3568 = vcmp.lt.s32.totalorder %v3546, 4
  %v3569 = vsel %vm3565, %v3549, %v3552
  %v3570 = vsel %vm3568, %v3558, 2102212464
  %v3571 = vsel %vm3567, %v3555, %v3570
  %v3572 = vsel %vm3566, %v3569, %v3571
  %v3573 = vsel %vm3565, %v3552, %v3555
  %v3574 = vsel %vm3568, %v3561, 920167782
  %v3575 = vsel %vm3567, %v3558, %v3574
  %v3576 = vsel %vm3566, %v3573, %v3575
  %v3577 = vsel %vm3565, %v3555, %v3558
  %v3578 = vsel %vm3568, %v3564, 1326507024
  %v3579 = vsel %vm3567, %v3561, %v3578
  %v3580 = vsel %vm3566, %v3577, %v3579
  %v3581 = vshll.u32 %v3541, 8
  %v3582 = vand.u32 %v3581, 65535
  %v3583 = vshrl.u32 %v3581, 16
  %v3584 = vand.u32 %v3580, 65535
  %v3585 = vshrl.u32 %v3580, 16
  %v3586 = vmul.u32 %v3582, %v3584
  %v3587 = vmul.u32 %v3582, %v3585
  %v3588 = vmul.u32 %v3583, %v3584
  %v3589 = vmul.u32 %v3583, %v3585
  %v3590 = vshll.u32 %v3587, 16
  %v3591 = vshrl.u32 %v3587, 16
  %v3592 = vshll.u32 %v3588, 16
  %v3593 = vshrl.u32 %v3588, 16
  %vm3594 = vc.u32 %v3586, %v3590
  %v3595 = vsel %vm3594, 1, 0
  %v3596 = vadd.s32 %v3586, %v3590
  %v3597 = vadd.s32 %v3589, %v3595
  %vm3598 = vc.u32 %v3596, %v3592
  %v3599 = vsel %vm3598, 1, 0
  %v3600 = vadd.s32 %v3596, %v3592
  %v3601 = vadd.s32 %v3597, %v3599
  %v3602 = vadd.s32 %v3601, %v3591
  %v3603 = vadd.s32 %v3602, %v3593
  %v3604 = vand.u32 %v3581, 65535
  %v3605 = vshrl.u32 %v3581, 16
  %v3606 = vand.u32 %v3576, 65535
  %v3607 = vshrl.u32 %v3576, 16
  %v3608 = vmul.u32 %v3604, %v3606
  %v3609 = vmul.u32 %v3604, %v3607
  %v3610 = vmul.u32 %v3605, %v3606
  %v3611 = vmul.u32 %v3605, %v3607
  %v3612 = vshll.u32 %v3609, 16
  %v3613 = vshrl.u32 %v3609, 16
  %v3614 = vshll.u32 %v3610, 16
  %v3615 = vshrl.u32 %v3610, 16
  %vm3616 = vc.u32 %v3608, %v3612
  %v3617 = vsel %vm3616, 1, 0
  %v3618 = vadd.s32 %v3608, %v3612
  %v3619 = vadd.s32 %v3611, %v3617
  %vm3620 = vc.u32 %v3618, %v3614
  %v3621 = vsel %vm3620, 1, 0
  %v3622 = vadd.s32 %v3618, %v3614
  %v3623 = vadd.s32 %v3619, %v3621
  %v3624 = vadd.s32 %v3623, %v3613
  %v3625 = vadd.s32 %v3624, %v3615
  %v3626 = vmul.u32 %v3581, %v3572
  %v3627 = vadd.s32 %v3603, %v3622
  %vm3628 = vc.u32 %v3603, %v3622
  %v3629 = vadd.s32 %v3625, 1
  %v3630 = vsel %vm3628, %v3629, %v3625
  %v3631 = vadd.s32 %v3626, %v3630
  %v3632 = vadd.s32 %v3631, 536870912
  %v3633 = vshrl.u32 %v3632, 30
  %v3634 = vshll.u32 %v3633, 30
  %v3635 = vsub.s32 %v3631, %v3634
  %vm3636 = vcmp.lt.s32.totalorder %v3635, 0
  %v3637 = vsub.s32 0, %v3635
  %v3638 = vsel %vm3636, %v3637, %v3635
  %v3639 = vclz %v3638
  %v3640 = vsub.s32 %v3639, 2
  %vm3641 = vcmp.gt.s32.totalorder 0, %v3640
  %v3642 = vsel %vm3641, 0, %v3640
  %v3643 = vsub.s32 32, %v3642
  %v3644 = vshll.u32 %v3635, %v3642
  %v3645 = vshrl.u32 %v3627, %v3643
  %v3646 = vor.u32 %v3644, %v3645
  %v3647 = vsub.s32 4294967266, %v3642
  %v3648 = vadd.s32 %v3647, 127
  %v3649 = vshll.u32 %v3648, 23
  %v3650 = vor.u32 4788187, %v3649
  %v3651 = vand.u32 2147483647, %v3650
  %v3653 = vcvt.s32.f32 %v3646
  %v3654 = vmul.f32 %v3653, %v3651
  %v3655 = vxor.u32 %v3654, 2147483648
  %v3656 = vsel %vm3535, %v3655, %v3654
  %v3657 = vsub.s32 4, %v3633
  %v3658 = vsel %vm3535, %v3657, %v3633
  %v3659 = vsel %vm3534, %v129, %v3656
  %v3660 = vsel %vm3534, 0, %v3658
  %v3661 = vmul.f32 %v3659, %v3659
  %v3662 = vmul.f32 %v3661, -0.001358992
  %v3663 = vadd.f32 %v3662, 0.041655596
  %v3664 = vmul.f32 %v3661, %v3663
  %v3665 = vadd.f32 %v3664, -0.4999988
  %v3666 = vmul.f32 %v3661, %v3665
  %v3667 = vadd.f32 1.0, %v3666
  %v3668 = vmul.f32 %v3659, %v3659
  %v3669 = vmul.f32 %v3668, -0.00019511016
  %v3670 = vadd.f32 %v3669, 0.008332121
  %v3671 = vmul.f32 %v3668, %v3670
  %v3672 = vadd.f32 %v3671, -0.16666654
  %v3673 = vmul.f32 %v3668, %v3672
  %v3674 = vadd.f32 %v3673, 1.0
  %v3675 = vmul.f32 %v3674, %v3659
  %vm3676 = vweird.f32 %v129
  %v3677 = vadd.s32 %v3660, 3
  %v3678 = vand.u32 %v3677, 3
  %vm3679 = vcmp.lt.s32.totalorder %v3678, 2
  %vm3680 = vcmp.eq.s32.totalorder %v3678, 0
  %v3681 = vxor.u32 %v3675, 2147483648
  %v3682 = vsel %vm3680, %v3667, %v3681
  %vm3683 = vcmp.eq.s32.totalorder %v3678, 2
  %v3684 = vxor.u32 %v3667, 2147483648
  %v3685 = vsel %vm3683, %v3684, %v3675
  %v3686 = vsel %vm3679, %v3682, %v3685
  %v3687 = vsel %vm3676, nan, %v3686
  %v3688 = vand.u32 2147483647, %v130
  %vm3689 = vcmp.le.f32.partialorder %v3688, 0.7853982
  %vm3690 = vcmp.lt.s32.totalorder %v130, 0
  %v3691 = vand.u32 %v130, 2139095040
  %v3692 = vshrl.u32 %v3691, 23
  %v3693 = vsub.s32 %v3692, 127
  %v3694 = vand.u32 2147483647, %v130
  %v3695 = vand.u32 %v3694, 8388607
  %v3696 = vor.u32 %v3695, 8388608
  %v3697 = vsub.s32 0, %v3696
  %v3698 = vadd.s32 %v3693, 1
  %vm3699 = vcmp.gt.s32.totalorder %v3698, 0
  %v3700 = vsel %vm3699, %v3698, 0
  %v3701 = vshrl.u32 %v3700, 5
  %v3702 = vand.u32 %v3700, 31
  %v3703 = vsub.s32 32, %v3702
  %v3704 = vshrl.u32 683565275, %v3703
  %v3705 = vshll.u32 683565275, %v3702
  %v3706 = vshrl.u32 2475754826, %v3703
  %v3707 = vor.u32 %v3705, %v3706
  %v3708 = vshll.u32 2475754826, %v3702
  %v3709 = vshrl.u32 2131351028, %v3703
  %v3710 = vor.u32 %v3708, %v3709
  %v3711 = vshll.u32 2131351028, %v3702
  %v3712 = vshrl.u32 2102212464, %v3703
  %v3713 = vor.u32 %v3711, %v3712
  %v3714 = vshll.u32 2102212464, %v3702
  %v3715 = vshrl.u32 920167782, %v3703
  %v3716 = vor.u32 %v3714, %v3715
  %v3717 = vshll.u32 920167782, %v3702
  %v3718 = vshrl.u32 1326507024, %v3703
  %v3719 = vor.u32 %v3717, %v3718
  %vm3720 = vcmp.lt.s32.totalorder %v3701, 1
  %vm3721 = vcmp.lt.s32.totalorder %v3701, 2
  %vm3722 = vcmp.lt.s32.totalorder %v3701, 3
  %vm3723 = vcmp.lt.s32.totalorder %v3701, 4
  %v3724 = vsel %vm3720, %v3704, %v3707
  %v3725 = vsel %vm3723, %v3713, 2102212464
  %v3726 = vsel %vm3722, %v3710, %v3725
  %v3727 = vsel %vm3721, %v3724, %v3726
  %v3728 = vsel %vm3720, %v3707, %v3710
  %v3729 = vsel %vm3723, %v3716, 920167782
  %v3730 = vsel %vm3722, %v3713, %v3729
  %v3731 = vsel %vm3721, %v3728, %v3730
  %v3732 = vsel %vm3720, %v3710, %v3713
  %v3733 = vsel %vm3723, %v3719, 1326507024
  %v3734 = vsel %vm3722, %v3716, %v3733
  %v3735 = vsel %vm3721, %v3732, %v3734
  %v3736 = vshll.u32 %v3696, 8
  %v3737 = vand.u32 %v3736, 65535
  %v3738 = vshrl.u32 %v3736, 16
  %v3739 = vand.u32 %v3735, 65535
  %v3740 = vshrl.u32 %v3735, 16
  %v3741 = vmul.u32 %v3737, %v3739
  %v3742 = vmul.u32 %v3737, %v3740
  %v3743 = vmul.u32 %v3738, %v3739
  %v3744 = vmul.u32 %v3738, %v3740
  %v3745 = vshll.u32 %v3742, 16
  %v3746 = vshrl.u32 %v3742, 16
  %v3747 = vshll.u32 %v3743, 16
  %v3748 = vshrl.u32 %v3743, 16
  %vm3749 = vc.u32 %v3741, %v3745
  %v3750 = vsel %vm3749, 1, 0
  %v3751 = vadd.s32 %v3741, %v3745
  %v3752 = vadd.s32 %v3744, %v3750
  %vm3753 = vc.u32 %v3751, %v3747
  %v3754 = vsel %vm3753, 1, 0
  %v3755 = vadd.s32 %v3751, %v3747
  %v3756 = vadd.s32 %v3752, %v3754
  %v3757 = vadd.s32 %v3756, %v3746
  %v3758 = vadd.s32 %v3757, %v3748
  %v3759 = vand.u32 %v3736, 65535
  %v3760 = vshrl.u32 %v3736, 16
  %v3761 = vand.u32 %v3731, 65535
  %v3762 = vshrl.u32 %v3731, 16
  %v3763 = vmul.u32 %v3759, %v3761
  %v3764 = vmul.u32 %v3759, %v3762
  %v3765 = vmul.u32 %v3760, %v3761
  %v3766 = vmul.u32 %v3760, %v3762
  %v3767 = vshll.u32 %v3764, 16
  %v3768 = vshrl.u32 %v3764, 16
  %v3769 = vshll.u32 %v3765, 16
  %v3770 = vshrl.u32 %v3765, 16
  %vm3771 = vc.u32 %v3763, %v3767
  %v3772 = vsel %vm3771, 1, 0
  %v3773 = vadd.s32 %v3763, %v3767
  %v3774 = vadd.s32 %v3766, %v3772
  %vm3775 = vc.u32 %v3773, %v3769
  %v3776 = vsel %vm3775, 1, 0
  %v3777 = vadd.s32 %v3773, %v3769
  %v3778 = vadd.s32 %v3774, %v3776
  %v3779 = vadd.s32 %v3778, %v3768
  %v3780 = vadd.s32 %v3779, %v3770
  %v3781 = vmul.u32 %v3736, %v3727
  %v3782 = vadd.s32 %v3758, %v3777
  %vm3783 = vc.u32 %v3758, %v3777
  %v3784 = vadd.s32 %v3780, 1
  %v3785 = vsel %vm3783, %v3784, %v3780
  %v3786 = vadd.s32 %v3781, %v3785
  %v3787 = vadd.s32 %v3786, 536870912
  %v3788 = vshrl.u32 %v3787, 30
  %v3789 = vshll.u32 %v3788, 30
  %v3790 = vsub.s32 %v3786, %v3789
  %vm3791 = vcmp.lt.s32.totalorder %v3790, 0
  %v3792 = vsub.s32 0, %v3790
  %v3793 = vsel %vm3791, %v3792, %v3790
  %v3794 = vclz %v3793
  %v3795 = vsub.s32 %v3794, 2
  %vm3796 = vcmp.gt.s32.totalorder 0, %v3795
  %v3797 = vsel %vm3796, 0, %v3795
  %v3798 = vsub.s32 32, %v3797
  %v3799 = vshll.u32 %v3790, %v3797
  %v3800 = vshrl.u32 %v3782, %v3798
  %v3801 = vor.u32 %v3799, %v3800
  %v3802 = vsub.s32 4294967266, %v3797
  %v3803 = vadd.s32 %v3802, 127
  %v3804 = vshll.u32 %v3803, 23
  %v3805 = vor.u32 4788187, %v3804
  %v3806 = vand.u32 2147483647, %v3805
  %v3808 = vcvt.s32.f32 %v3801
  %v3809 = vmul.f32 %v3808, %v3806
  %v3810 = vxor.u32 %v3809, 2147483648
  %v3811 = vsel %vm3690, %v3810, %v3809
  %v3812 = vsub.s32 4, %v3788
  %v3813 = vsel %vm3690, %v3812, %v3788
  %v3814 = vsel %vm3689, %v130, %v3811
  %v3815 = vsel %vm3689, 0, %v3813
  %v3816 = vmul.f32 %v3814, %v3814
  %v3817 = vmul.f32 %v3816, -0.001358992
  %v3818 = vadd.f32 %v3817, 0.041655596
  %v3819 = vmul.f32 %v3816, %v3818
  %v3820 = vadd.f32 %v3819, -0.4999988
  %v3821 = vmul.f32 %v3816, %v3820
  %v3822 = vadd.f32 1.0, %v3821
  %v3823 = vmul.f32 %v3814, %v3814
  %v3824 = vmul.f32 %v3823, -0.00019511016
  %v3825 = vadd.f32 %v3824, 0.008332121
  %v3826 = vmul.f32 %v3823, %v3825
  %v3827 = vadd.f32 %v3826, -0.16666654
  %v3828 = vmul.f32 %v3823, %v3827
  %v3829 = vadd.f32 %v3828, 1.0
  %v3830 = vmul.f32 %v3829, %v3814
  %vm3831 = vweird.f32 %v130
  %v3832 = vadd.s32 %v3815, 3
  %v3833 = vand.u32 %v3832, 3
  %vm3834 = vcmp.lt.s32.totalorder %v3833, 2
  %vm3835 = vcmp.eq.s32.totalorder %v3833, 0
  %v3836 = vxor.u32 %v3830, 2147483648
  %v3837 = vsel %vm3835, %v3822, %v3836
  %vm3838 = vcmp.eq.s32.totalorder %v3833, 2
  %v3839 = vxor.u32 %v3822, 2147483648
  %v3840 = vsel %vm3838, %v3839, %v3830
  %v3841 = vsel %vm3834, %v3837, %v3840
  %v3842 = vsel %vm3831, nan, %v3841
  %v3843 = vand.u32 2147483647, %v131
  %vm3844 = vcmp.le.f32.partialorder %v3843, 0.7853982
  %vm3845 = vcmp.lt.s32.totalorder %v131, 0
  %v3846 = vand.u32 %v131, 2139095040
  %v3847 = vshrl.u32 %v3846, 23
  %v3848 = vsub.s32 %v3847, 127
  %v3849 = vand.u32 2147483647, %v131
  %v3850 = vand.u32 %v3849, 8388607
  %v3851 = vor.u32 %v3850, 8388608
  %v3852 = vsub.s32 0, %v3851
  %v3853 = vadd.s32 %v3848, 1
  %vm3854 = vcmp.gt.s32.totalorder %v3853, 0
  %v3855 = vsel %vm3854, %v3853, 0
  %v3856 = vshrl.u32 %v3855, 5
  %v3857 = vand.u32 %v3855, 31
  %v3858 = vsub.s32 32, %v3857
  %v3859 = vshrl.u32 683565275, %v3858
  %v3860 = vshll.u32 683565275, %v3857
  %v3861 = vshrl.u32 2475754826, %v3858
  %v3862 = vor.u32 %v3860, %v3861
  %v3863 = vshll.u32 2475754826, %v3857
  %v3864 = vshrl.u32 2131351028, %v3858
  %v3865 = vor.u32 %v3863, %v3864
  %v3866 = vshll.u32 2131351028, %v3857
  %v3867 = vshrl.u32 2102212464, %v3858
  %v3868 = vor.u32 %v3866, %v3867
  %v3869 = vshll.u32 2102212464, %v3857
  %v3870 = vshrl.u32 920167782, %v3858
  %v3871 = vor.u32 %v3869, %v3870
  %v3872 = vshll.u32 920167782, %v3857
  %v3873 = vshrl.u32 1326507024, %v3858
  %v3874 = vor.u32 %v3872, %v3873
  %vm3875 = vcmp.lt.s32.totalorder %v3856, 1
  %vm3876 = vcmp.lt.s32.totalorder %v3856, 2
  %vm3877 = vcmp.lt.s32.totalorder %v3856, 3
  %vm3878 = vcmp.lt.s32.totalorder %v3856, 4
  %v3879 = vsel %vm3875, %v3859, %v3862
  %v3880 = vsel %vm3878, %v3868, 2102212464
  %v3881 = vsel %vm3877, %v3865, %v3880
  %v3882 = vsel %vm3876, %v3879, %v3881
  %v3883 = vsel %vm3875, %v3862, %v3865
  %v3884 = vsel %vm3878, %v3871, 920167782
  %v3885 = vsel %vm3877, %v3868, %v3884
  %v3886 = vsel %vm3876, %v3883, %v3885
  %v3887 = vsel %vm3875, %v3865, %v3868
  %v3888 = vsel %vm3878, %v3874, 1326507024
  %v3889 = vsel %vm3877, %v3871, %v3888
  %v3890 = vsel %vm3876, %v3887, %v3889
  %v3891 = vshll.u32 %v3851, 8
  %v3892 = vand.u32 %v3891, 65535
  %v3893 = vshrl.u32 %v3891, 16
  %v3894 = vand.u32 %v3890, 65535
  %v3895 = vshrl.u32 %v3890, 16
  %v3896 = vmul.u32 %v3892, %v3894
  %v3897 = vmul.u32 %v3892, %v3895
  %v3898 = vmul.u32 %v3893, %v3894
  %v3899 = vmul.u32 %v3893, %v3895
  %v3900 = vshll.u32 %v3897, 16
  %v3901 = vshrl.u32 %v3897, 16
  %v3902 = vshll.u32 %v3898, 16
  %v3903 = vshrl.u32 %v3898, 16
  %vm3904 = vc.u32 %v3896, %v3900
  %v3905 = vsel %vm3904, 1, 0
  %v3906 = vadd.s32 %v3896, %v3900
  %v3907 = vadd.s32 %v3899, %v3905
  %vm3908 = vc.u32 %v3906, %v3902
  %v3909 = vsel %vm3908, 1, 0
  %v3910 = vadd.s32 %v3906, %v3902
  %v3911 = vadd.s32 %v3907, %v3909
  %v3912 = vadd.s32 %v3911, %v3901
  %v3913 = vadd.s32 %v3912, %v3903
  %v3914 = vand.u32 %v3891, 65535
  %v3915 = vshrl.u32 %v3891, 16
  %v3916 = vand.u32 %v3886, 65535
  %v3917 = vshrl.u32 %v3886, 16
  %v3918 = vmul.u32 %v3914, %v3916
  %v3919 = vmul.u32 %v3914, %v3917
  %v3920 = vmul.u32 %v3915, %v3916
  %v3921 = vmul.u32 %v3915, %v3917
  %v3922 = vshll.u32 %v3919, 16
  %v3923 = vshrl.u32 %v3919, 16
  %v3924 = vshll.u32 %v3920, 16
  %v3925 = vshrl.u32 %v3920, 16
  %vm3926 = vc.u32 %v3918, %v3922
  %v3927 = vsel %vm3926, 1, 0
  %v3928 = vadd.s32 %v3918, %v3922
  %v3929 = vadd.s32 %v3921, %v3927
  %vm3930 = vc.u32 %v3928, %v3924
  %v3931 = vsel %vm3930, 1, 0
  %v3932 = vadd.s32 %v3928, %v3924
  %v3933 = vadd.s32 %v3929, %v3931
  %v3934 = vadd.s32 %v3933, %v3923
  %v3935 = vadd.s32 %v3934, %v3925
  %v3936 = vmul.u32 %v3891, %v3882
  %v3937 = vadd.s32 %v3913, %v3932
  %vm3938 = vc.u32 %v3913, %v3932
  %v3939 = vadd.s32 %v3935, 1
  %v3940 = vsel %vm3938, %v3939, %v3935
  %v3941 = vadd.s32 %v3936, %v3940
  %v3942 = vadd.s32 %v3941, 536870912
  %v3943 = vshrl.u32 %v3942, 30
  %v3944 = vshll.u32 %v3943, 30
  %v3945 = vsub.s32 %v3941, %v3944
  %vm3946 = vcmp.lt.s32.totalorder %v3945, 0
  %v3947 = vsub.s32 0, %v3945
  %v3948 = vsel %vm3946, %v3947, %v3945
  %v3949 = vclz %v3948
  %v3950 = vsub.s32 %v3949, 2
  %vm3951 = vcmp.gt.s32.totalorder 0, %v3950
  %v3952 = vsel %vm3951, 0, %v3950
  %v3953 = vsub.s32 32, %v3952
  %v3954 = vshll.u32 %v3945, %v3952
  %v3955 = vshrl.u32 %v3937, %v3953
  %v3956 = vor.u32 %v3954, %v3955
  %v3957 = vsub.s32 4294967266, %v3952
  %v3958 = vadd.s32 %v3957, 127
  %v3959 = vshll.u32 %v3958, 23
  %v3960 = vor.u32 4788187, %v3959
  %v3961 = vand.u32 2147483647, %v3960
  %v3963 = vcvt.s32.f32 %v3956
  %v3964 = vmul.f32 %v3963, %v3961
  %v3965 = vxor.u32 %v3964, 2147483648
  %v3966 = vsel %vm3845, %v3965, %v3964
  %v3967 = vsub.s32 4, %v3943
  %v3968 = vsel %vm3845, %v3967, %v3943
  %v3969 = vsel %vm3844, %v131, %v3966
  %v3970 = vsel %vm3844, 0, %v3968
  %v3971 = vmul.f32 %v3969, %v3969
  %v3972 = vmul.f32 %v3971, -0.001358992
  %v3973 = vadd.f32 %v3972, 0.041655596
  %v3974 = vmul.f32 %v3971, %v3973
  %v3975 = vadd.f32 %v3974, -0.4999988
  %v3976 = vmul.f32 %v3971, %v3975
  %v3977 = vadd.f32 1.0, %v3976
  %v3978 = vmul.f32 %v3969, %v3969
  %v3979 = vmul.f32 %v3978, -0.00019511016
  %v3980 = vadd.f32 %v3979, 0.008332121
  %v3981 = vmul.f32 %v3978, %v3980
  %v3982 = vadd.f32 %v3981, -0.16666654
  %v3983 = vmul.f32 %v3978, %v3982
  %v3984 = vadd.f32 %v3983, 1.0
  %v3985 = vmul.f32 %v3984, %v3969
  %vm3986 = vweird.f32 %v131
  %v3987 = vadd.s32 %v3970, 3
  %v3988 = vand.u32 %v3987, 3
  %vm3989 = vcmp.lt.s32.totalorder %v3988, 2
  %vm3990 = vcmp.eq.s32.totalorder %v3988, 0
  %v3991 = vxor.u32 %v3985, 2147483648
  %v3992 = vsel %vm3990, %v3977, %v3991
  %vm3993 = vcmp.eq.s32.totalorder %v3988, 2
  %v3994 = vxor.u32 %v3977, 2147483648
  %v3995 = vsel %vm3993, %v3994, %v3985
  %v3996 = vsel %vm3989, %v3992, %v3995
  %v3997 = vsel %vm3986, nan, %v3996
  %v3998 = vand.u32 2147483647, %v132
  %vm3999 = vcmp.le.f32.partialorder %v3998, 0.7853982
  %vm4000 = vcmp.lt.s32.totalorder %v132, 0
  %v4001 = vand.u32 %v132, 2139095040
  %v4002 = vshrl.u32 %v4001, 23
  %v4003 = vsub.s32 %v4002, 127
  %v4004 = vand.u32 2147483647, %v132
  %v4005 = vand.u32 %v4004, 8388607
  %v4006 = vor.u32 %v4005, 8388608
  %v4007 = vsub.s32 0, %v4006
  %v4008 = vadd.s32 %v4003, 1
  %vm4009 = vcmp.gt.s32.totalorder %v4008, 0
  %v4010 = vsel %vm4009, %v4008, 0
  %v4011 = vshrl.u32 %v4010, 5
  %v4012 = vand.u32 %v4010, 31
  %v4013 = vsub.s32 32, %v4012
  %v4014 = vshrl.u32 683565275, %v4013
  %v4015 = vshll.u32 683565275, %v4012
  %v4016 = vshrl.u32 2475754826, %v4013
  %v4017 = vor.u32 %v4015, %v4016
  %v4018 = vshll.u32 2475754826, %v4012
  %v4019 = vshrl.u32 2131351028, %v4013
  %v4020 = vor.u32 %v4018, %v4019
  %v4021 = vshll.u32 2131351028, %v4012
  %v4022 = vshrl.u32 2102212464, %v4013
  %v4023 = vor.u32 %v4021, %v4022
  %v4024 = vshll.u32 2102212464, %v4012
  %v4025 = vshrl.u32 920167782, %v4013
  %v4026 = vor.u32 %v4024, %v4025
  %v4027 = vshll.u32 920167782, %v4012
  %v4028 = vshrl.u32 1326507024, %v4013
  %v4029 = vor.u32 %v4027, %v4028
  %vm4030 = vcmp.lt.s32.totalorder %v4011, 1
  %vm4031 = vcmp.lt.s32.totalorder %v4011, 2
  %vm4032 = vcmp.lt.s32.totalorder %v4011, 3
  %vm4033 = vcmp.lt.s32.totalorder %v4011, 4
  %v4034 = vsel %vm4030, %v4014, %v4017
  %v4035 = vsel %vm4033, %v4023, 2102212464
  %v4036 = vsel %vm4032, %v4020, %v4035
  %v4037 = vsel %vm4031, %v4034, %v4036
  %v4038 = vsel %vm4030, %v4017, %v4020
  %v4039 = vsel %vm4033, %v4026, 920167782
  %v4040 = vsel %vm4032, %v4023, %v4039
  %v4041 = vsel %vm4031, %v4038, %v4040
  %v4042 = vsel %vm4030, %v4020, %v4023
  %v4043 = vsel %vm4033, %v4029, 1326507024
  %v4044 = vsel %vm4032, %v4026, %v4043
  %v4045 = vsel %vm4031, %v4042, %v4044
  %v4046 = vshll.u32 %v4006, 8
  %v4047 = vand.u32 %v4046, 65535
  %v4048 = vshrl.u32 %v4046, 16
  %v4049 = vand.u32 %v4045, 65535
  %v4050 = vshrl.u32 %v4045, 16
  %v4051 = vmul.u32 %v4047, %v4049
  %v4052 = vmul.u32 %v4047, %v4050
  %v4053 = vmul.u32 %v4048, %v4049
  %v4054 = vmul.u32 %v4048, %v4050
  %v4055 = vshll.u32 %v4052, 16
  %v4056 = vshrl.u32 %v4052, 16
  %v4057 = vshll.u32 %v4053, 16
  %v4058 = vshrl.u32 %v4053, 16
  %vm4059 = vc.u32 %v4051, %v4055
  %v4060 = vsel %vm4059, 1, 0
  %v4061 = vadd.s32 %v4051, %v4055
  %v4062 = vadd.s32 %v4054, %v4060
  %vm4063 = vc.u32 %v4061, %v4057
  %v4064 = vsel %vm4063, 1, 0
  %v4065 = vadd.s32 %v4061, %v4057
  %v4066 = vadd.s32 %v4062, %v4064
  %v4067 = vadd.s32 %v4066, %v4056
  %v4068 = vadd.s32 %v4067, %v4058
  %v4069 = vand.u32 %v4046, 65535
  %v4070 = vshrl.u32 %v4046, 16
  %v4071 = vand.u32 %v4041, 65535
  %v4072 = vshrl.u32 %v4041, 16
  %v4073 = vmul.u32 %v4069, %v4071
  %v4074 = vmul.u32 %v4069, %v4072
  %v4075 = vmul.u32 %v4070, %v4071
  %v4076 = vmul.u32 %v4070, %v4072
  %v4077 = vshll.u32 %v4074, 16
  %v4078 = vshrl.u32 %v4074, 16
  %v4079 = vshll.u32 %v4075, 16
  %v4080 = vshrl.u32 %v4075, 16
  %vm4081 = vc.u32 %v4073, %v4077
  %v4082 = vsel %vm4081, 1, 0
  %v4083 = vadd.s32 %v4073, %v4077
  %v4084 = vadd.s32 %v4076, %v4082
  %vm4085 = vc.u32 %v4083, %v4079
  %v4086 = vsel %vm4085, 1, 0
  %v4087 = vadd.s32 %v4083, %v4079
  %v4088 = vadd.s32 %v4084, %v4086
  %v4089 = vadd.s32 %v4088, %v4078
  %v4090 = vadd.s32 %v4089, %v4080
  %v4091 = vmul.u32 %v4046, %v4037
  %v4092 = vadd.s32 %v4068, %v4087
  %vm4093 = vc.u32 %v4068, %v4087
  %v4094 = vadd.s32 %v4090, 1
  %v4095 = vsel %vm4093, %v4094, %v4090
  %v4096 = vadd.s32 %v4091, %v4095
  %v4097 = vadd.s32 %v4096, 536870912
  %v4098 = vshrl.u32 %v4097, 30
  %v4099 = vshll.u32 %v4098, 30
  %v4100 = vsub.s32 %v4096, %v4099
  %vm4101 = vcmp.lt.s32.totalorder %v4100, 0
  %v4102 = vsub.s32 0, %v4100
  %v4103 = vsel %vm4101, %v4102, %v4100
  %v4104 = vclz %v4103
  %v4105 = vsub.s32 %v4104, 2
  %vm4106 = vcmp.gt.s32.totalorder 0, %v4105
  %v4107 = vsel %vm4106, 0, %v4105
  %v4108 = vsub.s32 32, %v4107
  %v4109 = vshll.u32 %v4100, %v4107
  %v4110 = vshrl.u32 %v4092, %v4108
  %v4111 = vor.u32 %v4109, %v4110
  %v4112 = vsub.s32 4294967266, %v4107
  %v4113 = vadd.s32 %v4112, 127
  %v4114 = vshll.u32 %v4113, 23
  %v4115 = vor.u32 4788187, %v4114
  %v4116 = vand.u32 2147483647, %v4115
  %v4118 = vcvt.s32.f32 %v4111
  %v4119 = vmul.f32 %v4118, %v4116
  %v4120 = vxor.u32 %v4119, 2147483648
  %v4121 = vsel %vm4000, %v4120, %v4119
  %v4122 = vsub.s32 4, %v4098
  %v4123 = vsel %vm4000, %v4122, %v4098
  %v4124 = vsel %vm3999, %v132, %v4121
  %v4125 = vsel %vm3999, 0, %v4123
  %v4126 = vmul.f32 %v4124, %v4124
  %v4127 = vmul.f32 %v4126, -0.001358992
  %v4128 = vadd.f32 %v4127, 0.041655596
  %v4129 = vmul.f32 %v4126, %v4128
  %v4130 = vadd.f32 %v4129, -0.4999988
  %v4131 = vmul.f32 %v4126, %v4130
  %v4132 = vadd.f32 1.0, %v4131
  %v4133 = vmul.f32 %v4124, %v4124
  %v4134 = vmul.f32 %v4133, -0.00019511016
  %v4135 = vadd.f32 %v4134, 0.008332121
  %v4136 = vmul.f32 %v4133, %v4135
  %v4137 = vadd.f32 %v4136, -0.16666654
  %v4138 = vmul.f32 %v4133, %v4137
  %v4139 = vadd.f32 %v4138, 1.0
  %v4140 = vmul.f32 %v4139, %v4124
  %vm4141 = vweird.f32 %v132
  %v4142 = vadd.s32 %v4125, 3
  %v4143 = vand.u32 %v4142, 3
  %vm4144 = vcmp.lt.s32.totalorder %v4143, 2
  %vm4145 = vcmp.eq.s32.totalorder %v4143, 0
  %v4146 = vxor.u32 %v4140, 2147483648
  %v4147 = vsel %vm4145, %v4132, %v4146
  %vm4148 = vcmp.eq.s32.totalorder %v4143, 2
  %v4149 = vxor.u32 %v4132, 2147483648
  %v4150 = vsel %vm4148, %v4149, %v4140
  %v4151 = vsel %vm4144, %v4147, %v4150
  %v4152 = vsel %vm4141, nan, %v4151
  %v4153 = vand.u32 2147483647, %v133
  %vm4154 = vcmp.le.f32.partialorder %v4153, 0.7853982
  %vm4155 = vcmp.lt.s32.totalorder %v133, 0
  %v4156 = vand.u32 %v133, 2139095040
  %v4157 = vshrl.u32 %v4156, 23
  %v4158 = vsub.s32 %v4157, 127
  %v4159 = vand.u32 2147483647, %v133
  %v4160 = vand.u32 %v4159, 8388607
  %v4161 = vor.u32 %v4160, 8388608
  %v4162 = vsub.s32 0, %v4161
  %v4163 = vadd.s32 %v4158, 1
  %vm4164 = vcmp.gt.s32.totalorder %v4163, 0
  %v4165 = vsel %vm4164, %v4163, 0
  %v4166 = vshrl.u32 %v4165, 5
  %v4167 = vand.u32 %v4165, 31
  %v4168 = vsub.s32 32, %v4167
  %v4169 = vshrl.u32 683565275, %v4168
  %v4170 = vshll.u32 683565275, %v4167
  %v4171 = vshrl.u32 2475754826, %v4168
  %v4172 = vor.u32 %v4170, %v4171
  %v4173 = vshll.u32 2475754826, %v4167
  %v4174 = vshrl.u32 2131351028, %v4168
  %v4175 = vor.u32 %v4173, %v4174
  %v4176 = vshll.u32 2131351028, %v4167
  %v4177 = vshrl.u32 2102212464, %v4168
  %v4178 = vor.u32 %v4176, %v4177
  %v4179 = vshll.u32 2102212464, %v4167
  %v4180 = vshrl.u32 920167782, %v4168
  %v4181 = vor.u32 %v4179, %v4180
  %v4182 = vshll.u32 920167782, %v4167
  %v4183 = vshrl.u32 1326507024, %v4168
  %v4184 = vor.u32 %v4182, %v4183
  %vm4185 = vcmp.lt.s32.totalorder %v4166, 1
  %vm4186 = vcmp.lt.s32.totalorder %v4166, 2
  %vm4187 = vcmp.lt.s32.totalorder %v4166, 3
  %vm4188 = vcmp.lt.s32.totalorder %v4166, 4
  %v4189 = vsel %vm4185, %v4169, %v4172
  %v4190 = vsel %vm4188, %v4178, 2102212464
  %v4191 = vsel %vm4187, %v4175, %v4190
  %v4192 = vsel %vm4186, %v4189, %v4191
  %v4193 = vsel %vm4185, %v4172, %v4175
  %v4194 = vsel %vm4188, %v4181, 920167782
  %v4195 = vsel %vm4187, %v4178, %v4194
  %v4196 = vsel %vm4186, %v4193, %v4195
  %v4197 = vsel %vm4185, %v4175, %v4178
  %v4198 = vsel %vm4188, %v4184, 1326507024
  %v4199 = vsel %vm4187, %v4181, %v4198
  %v4200 = vsel %vm4186, %v4197, %v4199
  %v4201 = vshll.u32 %v4161, 8
  %v4202 = vand.u32 %v4201, 65535
  %v4203 = vshrl.u32 %v4201, 16
  %v4204 = vand.u32 %v4200, 65535
  %v4205 = vshrl.u32 %v4200, 16
  %v4206 = vmul.u32 %v4202, %v4204
  %v4207 = vmul.u32 %v4202, %v4205
  %v4208 = vmul.u32 %v4203, %v4204
  %v4209 = vmul.u32 %v4203, %v4205
  %v4210 = vshll.u32 %v4207, 16
  %v4211 = vshrl.u32 %v4207, 16
  %v4212 = vshll.u32 %v4208, 16
  %v4213 = vshrl.u32 %v4208, 16
  %vm4214 = vc.u32 %v4206, %v4210
  %v4215 = vsel %vm4214, 1, 0
  %v4216 = vadd.s32 %v4206, %v4210
  %v4217 = vadd.s32 %v4209, %v4215
  %vm4218 = vc.u32 %v4216, %v4212
  %v4219 = vsel %vm4218, 1, 0
  %v4220 = vadd.s32 %v4216, %v4212
  %v4221 = vadd.s32 %v4217, %v4219
  %v4222 = vadd.s32 %v4221, %v4211
  %v4223 = vadd.s32 %v4222, %v4213
  %v4224 = vand.u32 %v4201, 65535
  %v4225 = vshrl.u32 %v4201, 16
  %v4226 = vand.u32 %v4196, 65535
  %v4227 = vshrl.u32 %v4196, 16
  %v4228 = vmul.u32 %v4224, %v4226
  %v4229 = vmul.u32 %v4224, %v4227
  %v4230 = vmul.u32 %v4225, %v4226
  %v4231 = vmul.u32 %v4225, %v4227
  %v4232 = vshll.u32 %v4229, 16
  %v4233 = vshrl.u32 %v4229, 16
  %v4234 = vshll.u32 %v4230, 16
  %v4235 = vshrl.u32 %v4230, 16
  %vm4236 = vc.u32 %v4228, %v4232
  %v4237 = vsel %vm4236, 1, 0
  %v4238 = vadd.s32 %v4228, %v4232
  %v4239 = vadd.s32 %v4231, %v4237
  %vm4240 = vc.u32 %v4238, %v4234
  %v4241 = vsel %vm4240, 1, 0
  %v4242 = vadd.s32 %v4238, %v4234
  %v4243 = vadd.s32 %v4239, %v4241
  %v4244 = vadd.s32 %v4243, %v4233
  %v4245 = vadd.s32 %v4244, %v4235
  %v4246 = vmul.u32 %v4201, %v4192
  %v4247 = vadd.s32 %v4223, %v4242
  %vm4248 = vc.u32 %v4223, %v4242
  %v4249 = vadd.s32 %v4245, 1
  %v4250 = vsel %vm4248, %v4249, %v4245
  %v4251 = vadd.s32 %v4246, %v4250
  %v4252 = vadd.s32 %v4251, 536870912
  %v4253 = vshrl.u32 %v4252, 30
  %v4254 = vshll.u32 %v4253, 30
  %v4255 = vsub.s32 %v4251, %v4254
  %vm4256 = vcmp.lt.s32.totalorder %v4255, 0
  %v4257 = vsub.s32 0, %v4255
  %v4258 = vsel %vm4256, %v4257, %v4255
  %v4259 = vclz %v4258
  %v4260 = vsub.s32 %v4259, 2
  %vm4261 = vcmp.gt.s32.totalorder 0, %v4260
  %v4262 = vsel %vm4261, 0, %v4260
  %v4263 = vsub.s32 32, %v4262
  %v4264 = vshll.u32 %v4255, %v4262
  %v4265 = vshrl.u32 %v4247, %v4263
  %v4266 = vor.u32 %v4264, %v4265
  %v4267 = vsub.s32 4294967266, %v4262
  %v4268 = vadd.s32 %v4267, 127
  %v4269 = vshll.u32 %v4268, 23
  %v4270 = vor.u32 4788187, %v4269
  %v4271 = vand.u32 2147483647, %v4270
  %v4273 = vcvt.s32.f32 %v4266
  %v4274 = vmul.f32 %v4273, %v4271
  %v4275 = vxor.u32 %v4274, 2147483648
  %v4276 = vsel %vm4155, %v4275, %v4274
  %v4277 = vsub.s32 4, %v4253
  %v4278 = vsel %vm4155, %v4277, %v4253
  %v4279 = vsel %vm4154, %v133, %v4276
  %v4280 = vsel %vm4154, 0, %v4278
  %v4281 = vmul.f32 %v4279, %v4279
  %v4282 = vmul.f32 %v4281, -0.001358992
  %v4283 = vadd.f32 %v4282, 0.041655596
  %v4284 = vmul.f32 %v4281, %v4283
  %v4285 = vadd.f32 %v4284, -0.4999988
  %v4286 = vmul.f32 %v4281, %v4285
  %v4287 = vadd.f32 1.0, %v4286
  %v4288 = vmul.f32 %v4279, %v4279
  %v4289 = vmul.f32 %v4288, -0.00019511016
  %v4290 = vadd.f32 %v4289, 0.008332121
  %v4291 = vmul.f32 %v4288, %v4290
  %v4292 = vadd.f32 %v4291, -0.16666654
  %v4293 = vmul.f32 %v4288, %v4292
  %v4294 = vadd.f32 %v4293, 1.0
  %v4295 = vmul.f32 %v4294, %v4279
  %vm4296 = vweird.f32 %v133
  %v4297 = vadd.s32 %v4280, 3
  %v4298 = vand.u32 %v4297, 3
  %vm4299 = vcmp.lt.s32.totalorder %v4298, 2
  %vm4300 = vcmp.eq.s32.totalorder %v4298, 0
  %v4301 = vxor.u32 %v4295, 2147483648
  %v4302 = vsel %vm4300, %v4287, %v4301
  %vm4303 = vcmp.eq.s32.totalorder %v4298, 2
  %v4304 = vxor.u32 %v4287, 2147483648
  %v4305 = vsel %vm4303, %v4304, %v4295
  %v4306 = vsel %vm4299, %v4302, %v4305
  %v4307 = vsel %vm4296, nan, %v4306
  %v4308 = vand.u32 2147483647, %v134
  %vm4309 = vcmp.le.f32.partialorder %v4308, 0.7853982
  %vm4310 = vcmp.lt.s32.totalorder %v134, 0
  %v4311 = vand.u32 %v134, 2139095040
  %v4312 = vshrl.u32 %v4311, 23
  %v4313 = vsub.s32 %v4312, 127
  %v4314 = vand.u32 2147483647, %v134
  %v4315 = vand.u32 %v4314, 8388607
  %v4316 = vor.u32 %v4315, 8388608
  %v4317 = vsub.s32 0, %v4316
  %v4318 = vadd.s32 %v4313, 1
  %vm4319 = vcmp.gt.s32.totalorder %v4318, 0
  %v4320 = vsel %vm4319, %v4318, 0
  %v4321 = vshrl.u32 %v4320, 5
  %v4322 = vand.u32 %v4320, 31
  %v4323 = vsub.s32 32, %v4322
  %v4324 = vshrl.u32 683565275, %v4323
  %v4325 = vshll.u32 683565275, %v4322
  %v4326 = vshrl.u32 2475754826, %v4323
  %v4327 = vor.u32 %v4325, %v4326
  %v4328 = vshll.u32 2475754826, %v4322
  %v4329 = vshrl.u32 2131351028, %v4323
  %v4330 = vor.u32 %v4328, %v4329
  %v4331 = vshll.u32 2131351028, %v4322
  %v4332 = vshrl.u32 2102212464, %v4323
  %v4333 = vor.u32 %v4331, %v4332
  %v4334 = vshll.u32 2102212464, %v4322
  %v4335 = vshrl.u32 920167782, %v4323
  %v4336 = vor.u32 %v4334, %v4335
  %v4337 = vshll.u32 920167782, %v4322
  %v4338 = vshrl.u32 1326507024, %v4323
  %v4339 = vor.u32 %v4337, %v4338
  %vm4340 = vcmp.lt.s32.totalorder %v4321, 1
  %vm4341 = vcmp.lt.s32.totalorder %v4321, 2
  %vm4342 = vcmp.lt.s32.totalorder %v4321, 3
  %vm4343 = vcmp.lt.s32.totalorder %v4321, 4
  %v4344 = vsel %vm4340, %v4324, %v4327
  %v4345 = vsel %vm4343, %v4333, 2102212464
  %v4346 = vsel %vm4342, %v4330, %v4345
  %v4347 = vsel %vm4341, %v4344, %v4346
  %v4348 = vsel %vm4340, %v4327, %v4330
  %v4349 = vsel %vm4343, %v4336, 920167782
  %v4350 = vsel %vm4342, %v4333, %v4349
  %v4351 = vsel %vm4341, %v4348, %v4350
  %v4352 = vsel %vm4340, %v4330, %v4333
  %v4353 = vsel %vm4343, %v4339, 1326507024
  %v4354 = vsel %vm4342, %v4336, %v4353
  %v4355 = vsel %vm4341, %v4352, %v4354
  %v4356 = vshll.u32 %v4316, 8
  %v4357 = vand.u32 %v4356, 65535
  %v4358 = vshrl.u32 %v4356, 16
  %v4359 = vand.u32 %v4355, 65535
  %v4360 = vshrl.u32 %v4355, 16
  %v4361 = vmul.u32 %v4357, %v4359
  %v4362 = vmul.u32 %v4357, %v4360
  %v4363 = vmul.u32 %v4358, %v4359
  %v4364 = vmul.u32 %v4358, %v4360
  %v4365 = vshll.u32 %v4362, 16
  %v4366 = vshrl.u32 %v4362, 16
  %v4367 = vshll.u32 %v4363, 16
  %v4368 = vshrl.u32 %v4363, 16
  %vm4369 = vc.u32 %v4361, %v4365
  %v4370 = vsel %vm4369, 1, 0
  %v4371 = vadd.s32 %v4361, %v4365
  %v4372 = vadd.s32 %v4364, %v4370
  %vm4373 = vc.u32 %v4371, %v4367
  %v4374 = vsel %vm4373, 1, 0
  %v4375 = vadd.s32 %v4371, %v4367
  %v4376 = vadd.s32 %v4372, %v4374
  %v4377 = vadd.s32 %v4376, %v4366
  %v4378 = vadd.s32 %v4377, %v4368
  %v4379 = vand.u32 %v4356, 65535
  %v4380 = vshrl.u32 %v4356, 16
  %v4381 = vand.u32 %v4351, 65535
  %v4382 = vshrl.u32 %v4351, 16
  %v4383 = vmul.u32 %v4379, %v4381
  %v4384 = vmul.u32 %v4379, %v4382
  %v4385 = vmul.u32 %v4380, %v4381
  %v4386 = vmul.u32 %v4380, %v4382
  %v4387 = vshll.u32 %v4384, 16
  %v4388 = vshrl.u32 %v4384, 16
  %v4389 = vshll.u32 %v4385, 16
  %v4390 = vshrl.u32 %v4385, 16
  %vm4391 = vc.u32 %v4383, %v4387
  %v4392 = vsel %vm4391, 1, 0
  %v4393 = vadd.s32 %v4383, %v4387
  %v4394 = vadd.s32 %v4386, %v4392
  %vm4395 = vc.u32 %v4393, %v4389
  %v4396 = vsel %vm4395, 1, 0
  %v4397 = vadd.s32 %v4393, %v4389
  %v4398 = vadd.s32 %v4394, %v4396
  %v4399 = vadd.s32 %v4398, %v4388
  %v4400 = vadd.s32 %v4399, %v4390
  %v4401 = vmul.u32 %v4356, %v4347
  %v4402 = vadd.s32 %v4378, %v4397
  %vm4403 = vc.u32 %v4378, %v4397
  %v4404 = vadd.s32 %v4400, 1
  %v4405 = vsel %vm4403, %v4404, %v4400
  %v4406 = vadd.s32 %v4401, %v4405
  %v4407 = vadd.s32 %v4406, 536870912
  %v4408 = vshrl.u32 %v4407, 30
  %v4409 = vshll.u32 %v4408, 30
  %v4410 = vsub.s32 %v4406, %v4409
  %vm4411 = vcmp.lt.s32.totalorder %v4410, 0
  %v4412 = vsub.s32 0, %v4410
  %v4413 = vsel %vm4411, %v4412, %v4410
  %v4414 = vclz %v4413
  %v4415 = vsub.s32 %v4414, 2
  %vm4416 = vcmp.gt.s32.totalorder 0, %v4415
  %v4417 = vsel %vm4416, 0, %v4415
  %v4418 = vsub.s32 32, %v4417
  %v4419 = vshll.u32 %v4410, %v4417
  %v4420 = vshrl.u32 %v4402, %v4418
  %v4421 = vor.u32 %v4419, %v4420
  %v4422 = vsub.s32 4294967266, %v4417
  %v4423 = vadd.s32 %v4422, 127
  %v4424 = vshll.u32 %v4423, 23
  %v4425 = vor.u32 4788187, %v4424
  %v4426 = vand.u32 2147483647, %v4425
  %v4428 = vcvt.s32.f32 %v4421
  %v4429 = vmul.f32 %v4428, %v4426
  %v4430 = vxor.u32 %v4429, 2147483648
  %v4431 = vsel %vm4310, %v4430, %v4429
  %v4432 = vsub.s32 4, %v4408
  %v4433 = vsel %vm4310, %v4432, %v4408
  %v4434 = vsel %vm4309, %v134, %v4431
  %v4435 = vsel %vm4309, 0, %v4433
  %v4436 = vmul.f32 %v4434, %v4434
  %v4437 = vmul.f32 %v4436, -0.001358992
  %v4438 = vadd.f32 %v4437, 0.041655596
  %v4439 = vmul.f32 %v4436, %v4438
  %v4440 = vadd.f32 %v4439, -0.4999988
  %v4441 = vmul.f32 %v4436, %v4440
  %v4442 = vadd.f32 1.0, %v4441
  %v4443 = vmul.f32 %v4434, %v4434
  %v4444 = vmul.f32 %v4443, -0.00019511016
  %v4445 = vadd.f32 %v4444, 0.008332121
  %v4446 = vmul.f32 %v4443, %v4445
  %v4447 = vadd.f32 %v4446, -0.16666654
  %v4448 = vmul.f32 %v4443, %v4447
  %v4449 = vadd.f32 %v4448, 1.0
  %v4450 = vmul.f32 %v4449, %v4434
  %vm4451 = vweird.f32 %v134
  %v4452 = vadd.s32 %v4435, 3
  %v4453 = vand.u32 %v4452, 3
  %vm4454 = vcmp.lt.s32.totalorder %v4453, 2
  %vm4455 = vcmp.eq.s32.totalorder %v4453, 0
  %v4456 = vxor.u32 %v4450, 2147483648
  %v4457 = vsel %vm4455, %v4442, %v4456
  %vm4458 = vcmp.eq.s32.totalorder %v4453, 2
  %v4459 = vxor.u32 %v4442, 2147483648
  %v4460 = vsel %vm4458, %v4459, %v4450
  %v4461 = vsel %vm4454, %v4457, %v4460
  %v4462 = vsel %vm4451, nan, %v4461
  %v4463 = vand.u32 2147483647, %v135
  %vm4464 = vcmp.le.f32.partialorder %v4463, 0.7853982
  %vm4465 = vcmp.lt.s32.totalorder %v135, 0
  %v4466 = vand.u32 %v135, 2139095040
  %v4467 = vshrl.u32 %v4466, 23
  %v4468 = vsub.s32 %v4467, 127
  %v4469 = vand.u32 2147483647, %v135
  %v4470 = vand.u32 %v4469, 8388607
  %v4471 = vor.u32 %v4470, 8388608
  %v4472 = vsub.s32 0, %v4471
  %v4473 = vadd.s32 %v4468, 1
  %vm4474 = vcmp.gt.s32.totalorder %v4473, 0
  %v4475 = vsel %vm4474, %v4473, 0
  %v4476 = vshrl.u32 %v4475, 5
  %v4477 = vand.u32 %v4475, 31
  %v4478 = vsub.s32 32, %v4477
  %v4479 = vshrl.u32 683565275, %v4478
  %v4480 = vshll.u32 683565275, %v4477
  %v4481 = vshrl.u32 2475754826, %v4478
  %v4482 = vor.u32 %v4480, %v4481
  %v4483 = vshll.u32 2475754826, %v4477
  %v4484 = vshrl.u32 2131351028, %v4478
  %v4485 = vor.u32 %v4483, %v4484
  %v4486 = vshll.u32 2131351028, %v4477
  %v4487 = vshrl.u32 2102212464, %v4478
  %v4488 = vor.u32 %v4486, %v4487
  %v4489 = vshll.u32 2102212464, %v4477
  %v4490 = vshrl.u32 920167782, %v4478
  %v4491 = vor.u32 %v4489, %v4490
  %v4492 = vshll.u32 920167782, %v4477
  %v4493 = vshrl.u32 1326507024, %v4478
  %v4494 = vor.u32 %v4492, %v4493
  %vm4495 = vcmp.lt.s32.totalorder %v4476, 1
  %vm4496 = vcmp.lt.s32.totalorder %v4476, 2
  %vm4497 = vcmp.lt.s32.totalorder %v4476, 3
  %vm4498 = vcmp.lt.s32.totalorder %v4476, 4
  %v4499 = vsel %vm4495, %v4479, %v4482
  %v4500 = vsel %vm4498, %v4488, 2102212464
  %v4501 = vsel %vm4497, %v4485, %v4500
  %v4502 = vsel %vm4496, %v4499, %v4501
  %v4503 = vsel %vm4495, %v4482, %v4485
  %v4504 = vsel %vm4498, %v4491, 920167782
  %v4505 = vsel %vm4497, %v4488, %v4504
  %v4506 = vsel %vm4496, %v4503, %v4505
  %v4507 = vsel %vm4495, %v4485, %v4488
  %v4508 = vsel %vm4498, %v4494, 1326507024
  %v4509 = vsel %vm4497, %v4491, %v4508
  %v4510 = vsel %vm4496, %v4507, %v4509
  %v4511 = vshll.u32 %v4471, 8
  %v4512 = vand.u32 %v4511, 65535
  %v4513 = vshrl.u32 %v4511, 16
  %v4514 = vand.u32 %v4510, 65535
  %v4515 = vshrl.u32 %v4510, 16
  %v4516 = vmul.u32 %v4512, %v4514
  %v4517 = vmul.u32 %v4512, %v4515
  %v4518 = vmul.u32 %v4513, %v4514
  %v4519 = vmul.u32 %v4513, %v4515
  %v4520 = vshll.u32 %v4517, 16
  %v4521 = vshrl.u32 %v4517, 16
  %v4522 = vshll.u32 %v4518, 16
  %v4523 = vshrl.u32 %v4518, 16
  %vm4524 = vc.u32 %v4516, %v4520
  %v4525 = vsel %vm4524, 1, 0
  %v4526 = vadd.s32 %v4516, %v4520
  %v4527 = vadd.s32 %v4519, %v4525
  %vm4528 = vc.u32 %v4526, %v4522
  %v4529 = vsel %vm4528, 1, 0
  %v4530 = vadd.s32 %v4526, %v4522
  %v4531 = vadd.s32 %v4527, %v4529
  %v4532 = vadd.s32 %v4531, %v4521
  %v4533 = vadd.s32 %v4532, %v4523
  %v4534 = vand.u32 %v4511, 65535
  %v4535 = vshrl.u32 %v4511, 16
  %v4536 = vand.u32 %v4506, 65535
  %v4537 = vshrl.u32 %v4506, 16
  %v4538 = vmul.u32 %v4534, %v4536
  %v4539 = vmul.u32 %v4534, %v4537
  %v4540 = vmul.u32 %v4535, %v4536
  %v4541 = vmul.u32 %v4535, %v4537
  %v4542 = vshll.u32 %v4539, 16
  %v4543 = vshrl.u32 %v4539, 16
  %v4544 = vshll.u32 %v4540, 16
  %v4545 = vshrl.u32 %v4540, 16
  %vm4546 = vc.u32 %v4538, %v4542
  %v4547 = vsel %vm4546, 1, 0
  %v4548 = vadd.s32 %v4538, %v4542
  %v4549 = vadd.s32 %v4541, %v4547
  %vm4550 = vc.u32 %v4548, %v4544
  %v4551 = vsel %vm4550, 1, 0
  %v4552 = vadd.s32 %v4548, %v4544
  %v4553 = vadd.s32 %v4549, %v4551
  %v4554 = vadd.s32 %v4553, %v4543
  %v4555 = vadd.s32 %v4554, %v4545
  %v4556 = vmul.u32 %v4511, %v4502
  %v4557 = vadd.s32 %v4533, %v4552
  %vm4558 = vc.u32 %v4533, %v4552
  %v4559 = vadd.s32 %v4555, 1
  %v4560 = vsel %vm4558, %v4559, %v4555
  %v4561 = vadd.s32 %v4556, %v4560
  %v4562 = vadd.s32 %v4561, 536870912
  %v4563 = vshrl.u32 %v4562, 30
  %v4564 = vshll.u32 %v4563, 30
  %v4565 = vsub.s32 %v4561, %v4564
  %vm4566 = vcmp.lt.s32.totalorder %v4565, 0
  %v4567 = vsub.s32 0, %v4565
  %v4568 = vsel %vm4566, %v4567, %v4565
  %v4569 = vclz %v4568
  %v4570 = vsub.s32 %v4569, 2
  %vm4571 = vcmp.gt.s32.totalorder 0, %v4570
  %v4572 = vsel %vm4571, 0, %v4570
  %v4573 = vsub.s32 32, %v4572
  %v4574 = vshll.u32 %v4565, %v4572
  %v4575 = vshrl.u32 %v4557, %v4573
  %v4576 = vor.u32 %v4574, %v4575
  %v4577 = vsub.s32 4294967266, %v4572
  %v4578 = vadd.s32 %v4577, 127
  %v4579 = vshll.u32 %v4578, 23
  %v4580 = vor.u32 4788187, %v4579
  %v4581 = vand.u32 2147483647, %v4580
  %v4583 = vcvt.s32.f32 %v4576
  %v4584 = vmul.f32 %v4583, %v4581
  %v4585 = vxor.u32 %v4584, 2147483648
  %v4586 = vsel %vm4465, %v4585, %v4584
  %v4587 = vsub.s32 4, %v4563
  %v4588 = vsel %vm4465, %v4587, %v4563
  %v4589 = vsel %vm4464, %v135, %v4586
  %v4590 = vsel %vm4464, 0, %v4588
  %v4591 = vmul.f32 %v4589, %v4589
  %v4592 = vmul.f32 %v4591, -0.001358992
  %v4593 = vadd.f32 %v4592, 0.041655596
  %v4594 = vmul.f32 %v4591, %v4593
  %v4595 = vadd.f32 %v4594, -0.4999988
  %v4596 = vmul.f32 %v4591, %v4595
  %v4597 = vadd.f32 1.0, %v4596
  %v4598 = vmul.f32 %v4589, %v4589
  %v4599 = vmul.f32 %v4598, -0.00019511016
  %v4600 = vadd.f32 %v4599, 0.008332121
  %v4601 = vmul.f32 %v4598, %v4600
  %v4602 = vadd.f32 %v4601, -0.16666654
  %v4603 = vmul.f32 %v4598, %v4602
  %v4604 = vadd.f32 %v4603, 1.0
  %v4605 = vmul.f32 %v4604, %v4589
  %vm4606 = vweird.f32 %v135
  %v4607 = vadd.s32 %v4590, 3
  %v4608 = vand.u32 %v4607, 3
  %vm4609 = vcmp.lt.s32.totalorder %v4608, 2
  %vm4610 = vcmp.eq.s32.totalorder %v4608, 0
  %v4611 = vxor.u32 %v4605, 2147483648
  %v4612 = vsel %vm4610, %v4597, %v4611
  %vm4613 = vcmp.eq.s32.totalorder %v4608, 2
  %v4614 = vxor.u32 %v4597, 2147483648
  %v4615 = vsel %vm4613, %v4614, %v4605
  %v4616 = vsel %vm4609, %v4612, %v4615
  %v4617 = vsel %vm4606, nan, %v4616
  %v4618 = vand.u32 2147483647, %v136
  %vm4619 = vcmp.le.f32.partialorder %v4618, 0.7853982
  %vm4620 = vcmp.lt.s32.totalorder %v136, 0
  %v4621 = vand.u32 %v136, 2139095040
  %v4622 = vshrl.u32 %v4621, 23
  %v4623 = vsub.s32 %v4622, 127
  %v4624 = vand.u32 2147483647, %v136
  %v4625 = vand.u32 %v4624, 8388607
  %v4626 = vor.u32 %v4625, 8388608
  %v4627 = vsub.s32 0, %v4626
  %v4628 = vadd.s32 %v4623, 1
  %vm4629 = vcmp.gt.s32.totalorder %v4628, 0
  %v4630 = vsel %vm4629, %v4628, 0
  %v4631 = vshrl.u32 %v4630, 5
  %v4632 = vand.u32 %v4630, 31
  %v4633 = vsub.s32 32, %v4632
  %v4634 = vshrl.u32 683565275, %v4633
  %v4635 = vshll.u32 683565275, %v4632
  %v4636 = vshrl.u32 2475754826, %v4633
  %v4637 = vor.u32 %v4635, %v4636
  %v4638 = vshll.u32 2475754826, %v4632
  %v4639 = vshrl.u32 2131351028, %v4633
  %v4640 = vor.u32 %v4638, %v4639
  %v4641 = vshll.u32 2131351028, %v4632
  %v4642 = vshrl.u32 2102212464, %v4633
  %v4643 = vor.u32 %v4641, %v4642
  %v4644 = vshll.u32 2102212464, %v4632
  %v4645 = vshrl.u32 920167782, %v4633
  %v4646 = vor.u32 %v4644, %v4645
  %v4647 = vshll.u32 920167782, %v4632
  %v4648 = vshrl.u32 1326507024, %v4633
  %v4649 = vor.u32 %v4647, %v4648
  %vm4650 = vcmp.lt.s32.totalorder %v4631, 1
  %vm4651 = vcmp.lt.s32.totalorder %v4631, 2
  %vm4652 = vcmp.lt.s32.totalorder %v4631, 3
  %vm4653 = vcmp.lt.s32.totalorder %v4631, 4
  %v4654 = vsel %vm4650, %v4634, %v4637
  %v4655 = vsel %vm4653, %v4643, 2102212464
  %v4656 = vsel %vm4652, %v4640, %v4655
  %v4657 = vsel %vm4651, %v4654, %v4656
  %v4658 = vsel %vm4650, %v4637, %v4640
  %v4659 = vsel %vm4653, %v4646, 920167782
  %v4660 = vsel %vm4652, %v4643, %v4659
  %v4661 = vsel %vm4651, %v4658, %v4660
  %v4662 = vsel %vm4650, %v4640, %v4643
  %v4663 = vsel %vm4653, %v4649, 1326507024
  %v4664 = vsel %vm4652, %v4646, %v4663
  %v4665 = vsel %vm4651, %v4662, %v4664
  %v4666 = vshll.u32 %v4626, 8
  %v4667 = vand.u32 %v4666, 65535
  %v4668 = vshrl.u32 %v4666, 16
  %v4669 = vand.u32 %v4665, 65535
  %v4670 = vshrl.u32 %v4665, 16
  %v4671 = vmul.u32 %v4667, %v4669
  %v4672 = vmul.u32 %v4667, %v4670
  %v4673 = vmul.u32 %v4668, %v4669
  %v4674 = vmul.u32 %v4668, %v4670
  %v4675 = vshll.u32 %v4672, 16
  %v4676 = vshrl.u32 %v4672, 16
  %v4677 = vshll.u32 %v4673, 16
  %v4678 = vshrl.u32 %v4673, 16
  %vm4679 = vc.u32 %v4671, %v4675
  %v4680 = vsel %vm4679, 1, 0
  %v4681 = vadd.s32 %v4671, %v4675
  %v4682 = vadd.s32 %v4674, %v4680
  %vm4683 = vc.u32 %v4681, %v4677
  %v4684 = vsel %vm4683, 1, 0
  %v4685 = vadd.s32 %v4681, %v4677
  %v4686 = vadd.s32 %v4682, %v4684
  %v4687 = vadd.s32 %v4686, %v4676
  %v4688 = vadd.s32 %v4687, %v4678
  %v4689 = vand.u32 %v4666, 65535
  %v4690 = vshrl.u32 %v4666, 16
  %v4691 = vand.u32 %v4661, 65535
  %v4692 = vshrl.u32 %v4661, 16
  %v4693 = vmul.u32 %v4689, %v4691
  %v4694 = vmul.u32 %v4689, %v4692
  %v4695 = vmul.u32 %v4690, %v4691
  %v4696 = vmul.u32 %v4690, %v4692
  %v4697 = vshll.u32 %v4694, 16
  %v4698 = vshrl.u32 %v4694, 16
  %v4699 = vshll.u32 %v4695, 16
  %v4700 = vshrl.u32 %v4695, 16
  %vm4701 = vc.u32 %v4693, %v4697
  %v4702 = vsel %vm4701, 1, 0
  %v4703 = vadd.s32 %v4693, %v4697
  %v4704 = vadd.s32 %v4696, %v4702
  %vm4705 = vc.u32 %v4703, %v4699
  %v4706 = vsel %vm4705, 1, 0
  %v4707 = vadd.s32 %v4703, %v4699
  %v4708 = vadd.s32 %v4704, %v4706
  %v4709 = vadd.s32 %v4708, %v4698
  %v4710 = vadd.s32 %v4709, %v4700
  %v4711 = vmul.u32 %v4666, %v4657
  %v4712 = vadd.s32 %v4688, %v4707
  %vm4713 = vc.u32 %v4688, %v4707
  %v4714 = vadd.s32 %v4710, 1
  %v4715 = vsel %vm4713, %v4714, %v4710
  %v4716 = vadd.s32 %v4711, %v4715
  %v4717 = vadd.s32 %v4716, 536870912
  %v4718 = vshrl.u32 %v4717, 30
  %v4719 = vshll.u32 %v4718, 30
  %v4720 = vsub.s32 %v4716, %v4719
  %vm4721 = vcmp.lt.s32.totalorder %v4720, 0
  %v4722 = vsub.s32 0, %v4720
  %v4723 = vsel %vm4721, %v4722, %v4720
  %v4724 = vclz %v4723
  %v4725 = vsub.s32 %v4724, 2
  %vm4726 = vcmp.gt.s32.totalorder 0, %v4725
  %v4727 = vsel %vm4726, 0, %v4725
  %v4728 = vsub.s32 32, %v4727
  %v4729 = vshll.u32 %v4720, %v4727
  %v4730 = vshrl.u32 %v4712, %v4728
  %v4731 = vor.u32 %v4729, %v4730
  %v4732 = vsub.s32 4294967266, %v4727
  %v4733 = vadd.s32 %v4732, 127
  %v4734 = vshll.u32 %v4733, 23
  %v4735 = vor.u32 4788187, %v4734
  %v4736 = vand.u32 2147483647, %v4735
  %v4738 = vcvt.s32.f32 %v4731
  %v4739 = vmul.f32 %v4738, %v4736
  %v4740 = vxor.u32 %v4739, 2147483648
  %v4741 = vsel %vm4620, %v4740, %v4739
  %v4742 = vsub.s32 4, %v4718
  %v4743 = vsel %vm4620, %v4742, %v4718
  %v4744 = vsel %vm4619, %v136, %v4741
  %v4745 = vsel %vm4619, 0, %v4743
  %v4746 = vmul.f32 %v4744, %v4744
  %v4747 = vmul.f32 %v4746, -0.001358992
  %v4748 = vadd.f32 %v4747, 0.041655596
  %v4749 = vmul.f32 %v4746, %v4748
  %v4750 = vadd.f32 %v4749, -0.4999988
  %v4751 = vmul.f32 %v4746, %v4750
  %v4752 = vadd.f32 1.0, %v4751
  %v4753 = vmul.f32 %v4744, %v4744
  %v4754 = vmul.f32 %v4753, -0.00019511016
  %v4755 = vadd.f32 %v4754, 0.008332121
  %v4756 = vmul.f32 %v4753, %v4755
  %v4757 = vadd.f32 %v4756, -0.16666654
  %v4758 = vmul.f32 %v4753, %v4757
  %v4759 = vadd.f32 %v4758, 1.0
  %v4760 = vmul.f32 %v4759, %v4744
  %vm4761 = vweird.f32 %v136
  %v4762 = vadd.s32 %v4745, 3
  %v4763 = vand.u32 %v4762, 3
  %vm4764 = vcmp.lt.s32.totalorder %v4763, 2
  %vm4765 = vcmp.eq.s32.totalorder %v4763, 0
  %v4766 = vxor.u32 %v4760, 2147483648
  %v4767 = vsel %vm4765, %v4752, %v4766
  %vm4768 = vcmp.eq.s32.totalorder %v4763, 2
  %v4769 = vxor.u32 %v4752, 2147483648
  %v4770 = vsel %vm4768, %v4769, %v4760
  %v4771 = vsel %vm4764, %v4767, %v4770
  %v4772 = vsel %vm4761, nan, %v4771
  %v4773 = vand.u32 2147483647, %v137
  %vm4774 = vcmp.le.f32.partialorder %v4773, 0.7853982
  %vm4775 = vcmp.lt.s32.totalorder %v137, 0
  %v4776 = vand.u32 %v137, 2139095040
  %v4777 = vshrl.u32 %v4776, 23
  %v4778 = vsub.s32 %v4777, 127
  %v4779 = vand.u32 2147483647, %v137
  %v4780 = vand.u32 %v4779, 8388607
  %v4781 = vor.u32 %v4780, 8388608
  %v4782 = vsub.s32 0, %v4781
  %v4783 = vadd.s32 %v4778, 1
  %vm4784 = vcmp.gt.s32.totalorder %v4783, 0
  %v4785 = vsel %vm4784, %v4783, 0
  %v4786 = vshrl.u32 %v4785, 5
  %v4787 = vand.u32 %v4785, 31
  %v4788 = vsub.s32 32, %v4787
  %v4789 = vshrl.u32 683565275, %v4788
  %v4790 = vshll.u32 683565275, %v4787
  %v4791 = vshrl.u32 2475754826, %v4788
  %v4792 = vor.u32 %v4790, %v4791
  %v4793 = vshll.u32 2475754826, %v4787
  %v4794 = vshrl.u32 2131351028, %v4788
  %v4795 = vor.u32 %v4793, %v4794
  %v4796 = vshll.u32 2131351028, %v4787
  %v4797 = vshrl.u32 2102212464, %v4788
  %v4798 = vor.u32 %v4796, %v4797
  %v4799 = vshll.u32 2102212464, %v4787
  %v4800 = vshrl.u32 920167782, %v4788
  %v4801 = vor.u32 %v4799, %v4800
  %v4802 = vshll.u32 920167782, %v4787
  %v4803 = vshrl.u32 1326507024, %v4788
  %v4804 = vor.u32 %v4802, %v4803
  %vm4805 = vcmp.lt.s32.totalorder %v4786, 1
  %vm4806 = vcmp.lt.s32.totalorder %v4786, 2
  %vm4807 = vcmp.lt.s32.totalorder %v4786, 3
  %vm4808 = vcmp.lt.s32.totalorder %v4786, 4
  %v4809 = vsel %vm4805, %v4789, %v4792
  %v4810 = vsel %vm4808, %v4798, 2102212464
  %v4811 = vsel %vm4807, %v4795, %v4810
  %v4812 = vsel %vm4806, %v4809, %v4811
  %v4813 = vsel %vm4805, %v4792, %v4795
  %v4814 = vsel %vm4808, %v4801, 920167782
  %v4815 = vsel %vm4807, %v4798, %v4814
  %v4816 = vsel %vm4806, %v4813, %v4815
  %v4817 = vsel %vm4805, %v4795, %v4798
  %v4818 = vsel %vm4808, %v4804, 1326507024
  %v4819 = vsel %vm4807, %v4801, %v4818
  %v4820 = vsel %vm4806, %v4817, %v4819
  %v4821 = vshll.u32 %v4781, 8
  %v4822 = vand.u32 %v4821, 65535
  %v4823 = vshrl.u32 %v4821, 16
  %v4824 = vand.u32 %v4820, 65535
  %v4825 = vshrl.u32 %v4820, 16
  %v4826 = vmul.u32 %v4822, %v4824
  %v4827 = vmul.u32 %v4822, %v4825
  %v4828 = vmul.u32 %v4823, %v4824
  %v4829 = vmul.u32 %v4823, %v4825
  %v4830 = vshll.u32 %v4827, 16
  %v4831 = vshrl.u32 %v4827, 16
  %v4832 = vshll.u32 %v4828, 16
  %v4833 = vshrl.u32 %v4828, 16
  %vm4834 = vc.u32 %v4826, %v4830
  %v4835 = vsel %vm4834, 1, 0
  %v4836 = vadd.s32 %v4826, %v4830
  %v4837 = vadd.s32 %v4829, %v4835
  %vm4838 = vc.u32 %v4836, %v4832
  %v4839 = vsel %vm4838, 1, 0
  %v4840 = vadd.s32 %v4836, %v4832
  %v4841 = vadd.s32 %v4837, %v4839
  %v4842 = vadd.s32 %v4841, %v4831
  %v4843 = vadd.s32 %v4842, %v4833
  %v4844 = vand.u32 %v4821, 65535
  %v4845 = vshrl.u32 %v4821, 16
  %v4846 = vand.u32 %v4816, 65535
  %v4847 = vshrl.u32 %v4816, 16
  %v4848 = vmul.u32 %v4844, %v4846
  %v4849 = vmul.u32 %v4844, %v4847
  %v4850 = vmul.u32 %v4845, %v4846
  %v4851 = vmul.u32 %v4845, %v4847
  %v4852 = vshll.u32 %v4849, 16
  %v4853 = vshrl.u32 %v4849, 16
  %v4854 = vshll.u32 %v4850, 16
  %v4855 = vshrl.u32 %v4850, 16
  %vm4856 = vc.u32 %v4848, %v4852
  %v4857 = vsel %vm4856, 1, 0
  %v4858 = vadd.s32 %v4848, %v4852
  %v4859 = vadd.s32 %v4851, %v4857
  %vm4860 = vc.u32 %v4858, %v4854
  %v4861 = vsel %vm4860, 1, 0
  %v4862 = vadd.s32 %v4858, %v4854
  %v4863 = vadd.s32 %v4859, %v4861
  %v4864 = vadd.s32 %v4863, %v4853
  %v4865 = vadd.s32 %v4864, %v4855
  %v4866 = vmul.u32 %v4821, %v4812
  %v4867 = vadd.s32 %v4843, %v4862
  %vm4868 = vc.u32 %v4843, %v4862
  %v4869 = vadd.s32 %v4865, 1
  %v4870 = vsel %vm4868, %v4869, %v4865
  %v4871 = vadd.s32 %v4866, %v4870
  %v4872 = vadd.s32 %v4871, 536870912
  %v4873 = vshrl.u32 %v4872, 30
  %v4874 = vshll.u32 %v4873, 30
  %v4875 = vsub.s32 %v4871, %v4874
  %vm4876 = vcmp.lt.s32.totalorder %v4875, 0
  %v4877 = vsub.s32 0, %v4875
  %v4878 = vsel %vm4876, %v4877, %v4875
  %v4879 = vclz %v4878
  %v4880 = vsub.s32 %v4879, 2
  %vm4881 = vcmp.gt.s32.totalorder 0, %v4880
  %v4882 = vsel %vm4881, 0, %v4880
  %v4883 = vsub.s32 32, %v4882
  %v4884 = vshll.u32 %v4875, %v4882
  %v4885 = vshrl.u32 %v4867, %v4883
  %v4886 = vor.u32 %v4884, %v4885
  %v4887 = vsub.s32 4294967266, %v4882
  %v4888 = vadd.s32 %v4887, 127
  %v4889 = vshll.u32 %v4888, 23
  %v4890 = vor.u32 4788187, %v4889
  %v4891 = vand.u32 2147483647, %v4890
  %v4893 = vcvt.s32.f32 %v4886
  %v4894 = vmul.f32 %v4893, %v4891
  %v4895 = vxor.u32 %v4894, 2147483648
  %v4896 = vsel %vm4775, %v4895, %v4894
  %v4897 = vsub.s32 4, %v4873
  %v4898 = vsel %vm4775, %v4897, %v4873
  %v4899 = vsel %vm4774, %v137, %v4896
  %v4900 = vsel %vm4774, 0, %v4898
  %v4901 = vmul.f32 %v4899, %v4899
  %v4902 = vmul.f32 %v4901, -0.001358992
  %v4903 = vadd.f32 %v4902, 0.041655596
  %v4904 = vmul.f32 %v4901, %v4903
  %v4905 = vadd.f32 %v4904, -0.4999988
  %v4906 = vmul.f32 %v4901, %v4905
  %v4907 = vadd.f32 1.0, %v4906
  %v4908 = vmul.f32 %v4899, %v4899
  %v4909 = vmul.f32 %v4908, -0.00019511016
  %v4910 = vadd.f32 %v4909, 0.008332121
  %v4911 = vmul.f32 %v4908, %v4910
  %v4912 = vadd.f32 %v4911, -0.16666654
  %v4913 = vmul.f32 %v4908, %v4912
  %v4914 = vadd.f32 %v4913, 1.0
  %v4915 = vmul.f32 %v4914, %v4899
  %vm4916 = vweird.f32 %v137
  %v4917 = vadd.s32 %v4900, 3
  %v4918 = vand.u32 %v4917, 3
  %vm4919 = vcmp.lt.s32.totalorder %v4918, 2
  %vm4920 = vcmp.eq.s32.totalorder %v4918, 0
  %v4921 = vxor.u32 %v4915, 2147483648
  %v4922 = vsel %vm4920, %v4907, %v4921
  %vm4923 = vcmp.eq.s32.totalorder %v4918, 2
  %v4924 = vxor.u32 %v4907, 2147483648
  %v4925 = vsel %vm4923, %v4924, %v4915
  %v4926 = vsel %vm4919, %v4922, %v4925
  %v4927 = vsel %vm4916, nan, %v4926
  %v4928 = vand.u32 2147483647, %v138
  %vm4929 = vcmp.le.f32.partialorder %v4928, 0.7853982
  %vm4930 = vcmp.lt.s32.totalorder %v138, 0
  %v4931 = vand.u32 %v138, 2139095040
  %v4932 = vshrl.u32 %v4931, 23
  %v4933 = vsub.s32 %v4932, 127
  %v4934 = vand.u32 2147483647, %v138
  %v4935 = vand.u32 %v4934, 8388607
  %v4936 = vor.u32 %v4935, 8388608
  %v4937 = vsub.s32 0, %v4936
  %v4938 = vadd.s32 %v4933, 1
  %vm4939 = vcmp.gt.s32.totalorder %v4938, 0
  %v4940 = vsel %vm4939, %v4938, 0
  %v4941 = vshrl.u32 %v4940, 5
  %v4942 = vand.u32 %v4940, 31
  %v4943 = vsub.s32 32, %v4942
  %v4944 = vshrl.u32 683565275, %v4943
  %v4945 = vshll.u32 683565275, %v4942
  %v4946 = vshrl.u32 2475754826, %v4943
  %v4947 = vor.u32 %v4945, %v4946
  %v4948 = vshll.u32 2475754826, %v4942
  %v4949 = vshrl.u32 2131351028, %v4943
  %v4950 = vor.u32 %v4948, %v4949
  %v4951 = vshll.u32 2131351028, %v4942
  %v4952 = vshrl.u32 2102212464, %v4943
  %v4953 = vor.u32 %v4951, %v4952
  %v4954 = vshll.u32 2102212464, %v4942
  %v4955 = vshrl.u32 920167782, %v4943
  %v4956 = vor.u32 %v4954, %v4955
  %v4957 = vshll.u32 920167782, %v4942
  %v4958 = vshrl.u32 1326507024, %v4943
  %v4959 = vor.u32 %v4957, %v4958
  %vm4960 = vcmp.lt.s32.totalorder %v4941, 1
  %vm4961 = vcmp.lt.s32.totalorder %v4941, 2
  %vm4962 = vcmp.lt.s32.totalorder %v4941, 3
  %vm4963 = vcmp.lt.s32.totalorder %v4941, 4
  %v4964 = vsel %vm4960, %v4944, %v4947
  %v4965 = vsel %vm4963, %v4953, 2102212464
  %v4966 = vsel %vm4962, %v4950, %v4965
  %v4967 = vsel %vm4961, %v4964, %v4966
  %v4968 = vsel %vm4960, %v4947, %v4950
  %v4969 = vsel %vm4963, %v4956, 920167782
  %v4970 = vsel %vm4962, %v4953, %v4969
  %v4971 = vsel %vm4961, %v4968, %v4970
  %v4972 = vsel %vm4960, %v4950, %v4953
  %v4973 = vsel %vm4963, %v4959, 1326507024
  %v4974 = vsel %vm4962, %v4956, %v4973
  %v4975 = vsel %vm4961, %v4972, %v4974
  %v4976 = vshll.u32 %v4936, 8
  %v4977 = vand.u32 %v4976, 65535
  %v4978 = vshrl.u32 %v4976, 16
  %v4979 = vand.u32 %v4975, 65535
  %v4980 = vshrl.u32 %v4975, 16
  %v4981 = vmul.u32 %v4977, %v4979
  %v4982 = vmul.u32 %v4977, %v4980
  %v4983 = vmul.u32 %v4978, %v4979
  %v4984 = vmul.u32 %v4978, %v4980
  %v4985 = vshll.u32 %v4982, 16
  %v4986 = vshrl.u32 %v4982, 16
  %v4987 = vshll.u32 %v4983, 16
  %v4988 = vshrl.u32 %v4983, 16
  %vm4989 = vc.u32 %v4981, %v4985
  %v4990 = vsel %vm4989, 1, 0
  %v4991 = vadd.s32 %v4981, %v4985
  %v4992 = vadd.s32 %v4984, %v4990
  %vm4993 = vc.u32 %v4991, %v4987
  %v4994 = vsel %vm4993, 1, 0
  %v4995 = vadd.s32 %v4991, %v4987
  %v4996 = vadd.s32 %v4992, %v4994
  %v4997 = vadd.s32 %v4996, %v4986
  %v4998 = vadd.s32 %v4997, %v4988
  %v4999 = vand.u32 %v4976, 65535
  %v5000 = vshrl.u32 %v4976, 16
  %v5001 = vand.u32 %v4971, 65535
  %v5002 = vshrl.u32 %v4971, 16
  %v5003 = vmul.u32 %v4999, %v5001
  %v5004 = vmul.u32 %v4999, %v5002
  %v5005 = vmul.u32 %v5000, %v5001
  %v5006 = vmul.u32 %v5000, %v5002
  %v5007 = vshll.u32 %v5004, 16
  %v5008 = vshrl.u32 %v5004, 16
  %v5009 = vshll.u32 %v5005, 16
  %v5010 = vshrl.u32 %v5005, 16
  %vm5011 = vc.u32 %v5003, %v5007
  %v5012 = vsel %vm5011, 1, 0
  %v5013 = vadd.s32 %v5003, %v5007
  %v5014 = vadd.s32 %v5006, %v5012
  %vm5015 = vc.u32 %v5013, %v5009
  %v5016 = vsel %vm5015, 1, 0
  %v5017 = vadd.s32 %v5013, %v5009
  %v5018 = vadd.s32 %v5014, %v5016
  %v5019 = vadd.s32 %v5018, %v5008
  %v5020 = vadd.s32 %v5019, %v5010
  %v5021 = vmul.u32 %v4976, %v4967
  %v5022 = vadd.s32 %v4998, %v5017
  %vm5023 = vc.u32 %v4998, %v5017
  %v5024 = vadd.s32 %v5020, 1
  %v5025 = vsel %vm5023, %v5024, %v5020
  %v5026 = vadd.s32 %v5021, %v5025
  %v5027 = vadd.s32 %v5026, 536870912
  %v5028 = vshrl.u32 %v5027, 30
  %v5029 = vshll.u32 %v5028, 30
  %v5030 = vsub.s32 %v5026, %v5029
  %vm5031 = vcmp.lt.s32.totalorder %v5030, 0
  %v5032 = vsub.s32 0, %v5030
  %v5033 = vsel %vm5031, %v5032, %v5030
  %v5034 = vclz %v5033
  %v5035 = vsub.s32 %v5034, 2
  %vm5036 = vcmp.gt.s32.totalorder 0, %v5035
  %v5037 = vsel %vm5036, 0, %v5035
  %v5038 = vsub.s32 32, %v5037
  %v5039 = vshll.u32 %v5030, %v5037
  %v5040 = vshrl.u32 %v5022, %v5038
  %v5041 = vor.u32 %v5039, %v5040
  %v5042 = vsub.s32 4294967266, %v5037
  %v5043 = vadd.s32 %v5042, 127
  %v5044 = vshll.u32 %v5043, 23
  %v5045 = vor.u32 4788187, %v5044
  %v5046 = vand.u32 2147483647, %v5045
  %v5048 = vcvt.s32.f32 %v5041
  %v5049 = vmul.f32 %v5048, %v5046
  %v5050 = vxor.u32 %v5049, 2147483648
  %v5051 = vsel %vm4930, %v5050, %v5049
  %v5052 = vsub.s32 4, %v5028
  %v5053 = vsel %vm4930, %v5052, %v5028
  %v5054 = vsel %vm4929, %v138, %v5051
  %v5055 = vsel %vm4929, 0, %v5053
  %v5056 = vmul.f32 %v5054, %v5054
  %v5057 = vmul.f32 %v5056, -0.001358992
  %v5058 = vadd.f32 %v5057, 0.041655596
  %v5059 = vmul.f32 %v5056, %v5058
  %v5060 = vadd.f32 %v5059, -0.4999988
  %v5061 = vmul.f32 %v5056, %v5060
  %v5062 = vadd.f32 1.0, %v5061
  %v5063 = vmul.f32 %v5054, %v5054
  %v5064 = vmul.f32 %v5063, -0.00019511016
  %v5065 = vadd.f32 %v5064, 0.008332121
  %v5066 = vmul.f32 %v5063, %v5065
  %v5067 = vadd.f32 %v5066, -0.16666654
  %v5068 = vmul.f32 %v5063, %v5067
  %v5069 = vadd.f32 %v5068, 1.0
  %v5070 = vmul.f32 %v5069, %v5054
  %vm5071 = vweird.f32 %v138
  %v5072 = vadd.s32 %v5055, 3
  %v5073 = vand.u32 %v5072, 3
  %vm5074 = vcmp.lt.s32.totalorder %v5073, 2
  %vm5075 = vcmp.eq.s32.totalorder %v5073, 0
  %v5076 = vxor.u32 %v5070, 2147483648
  %v5077 = vsel %vm5075, %v5062, %v5076
  %vm5078 = vcmp.eq.s32.totalorder %v5073, 2
  %v5079 = vxor.u32 %v5062, 2147483648
  %v5080 = vsel %vm5078, %v5079, %v5070
  %v5081 = vsel %vm5074, %v5077, %v5080
  %v5082 = vsel %vm5071, nan, %v5081
  %v5083 = vld [vmem:[%s2] sm:$0xff]
  %v5084 = vld [vmem:[%s2 + $0x8] sm:$0xff]
  %v5085 = vld [vmem:[%s2 + $0x10] sm:$0xff]
  %v5086 = vld [vmem:[%s2 + $0x18] sm:$0xff]
  %v5087 = vld [vmem:[%s2 + $0x20] sm:$0xff]
  %v5088 = vld [vmem:[%s2 + $0x28] sm:$0xff]
  %v5089 = vld [vmem:[%s2 + $0x30] sm:$0xff]
  %v5090 = vld [vmem:[%s2 + $0x38] sm:$0xff]
  %v5091 = vld [vmem:[%s3] sm:$0xff]
  %v5092 = vld [vmem:[%s3 + $0x8] sm:$0xff]
  %v5093 = vld [vmem:[%s3 + $0x10] sm:$0xff]
  %v5094 = vld [vmem:[%s3 + $0x18] sm:$0xff]
  %5096 = vset.pattern.permute.xlu0 0
  %5097 = vperm.xlu0 %5096, %v5091
  %v5098 = vpop.permute.xlu0 %5097
  %5101 = vset.pattern.permute.xlu0 0
  %5102 = vperm.xlu0 %5101, %v5092
  %v5103 = vpop.permute.xlu0 %5102
  %5106 = vset.pattern.permute.xlu0 0
  %5107 = vperm.xlu0 %5106, %v5093
  %v5108 = vpop.permute.xlu0 %5107
  %5111 = vset.pattern.permute.xlu0 0
  %5112 = vperm.xlu0 %5111, %v5094
  %v5113 = vpop.permute.xlu0 %5112
  %5115 = vmatpush.msra.mxu0 %v2602
  %5116 = vmatpush.msra.mxu0 %v2448
  %5117 = vmatpush.msra.mxu0 %v2294
  %5118 = vmatpush.msra.mxu0 %v2140
  %5119 = vmatpush.msra.mxu0 %v1986
  %5120 = vmatpush.msra.mxu0 %v1832
  %5121 = vmatpush.msra.mxu0 %v1678
  %5122 = vmatpush.msra.mxu0 %v1524
  %5123 = vmatpush.msra.mxu0 %v1370
  %5124 = vmatpush.msra.mxu0 %v1216
  %5125 = vmatpush.msra.mxu0 %v1062
  %5126 = vmatpush.msra.mxu0 %v908
  %5127 = vmatpush.msra.mxu0 %v754
  %5128 = vmatpush.msra.mxu0 %v600
  %5129 = vmatpush.msra.mxu0 %v446
  %5130 = vmatpush.msra.mxu0 %v292
  %5131 = vmatmul.f32.gmra.mxu0 %v5083
  %v5132 = vpop.f32.mrf.mxu0
  %v5133 = vadd.f32 %v5098, %v5132
  %5134 = vmatmul.f32.gmra.mxu0 %v5085
  %v5135 = vpop.f32.mrf.mxu0
  %v5136 = vadd.f32 %v5103, %v5135
  %5137 = vmatmul.f32.gmra.mxu0 %v5087
  %v5138 = vpop.f32.mrf.mxu0
  %v5139 = vadd.f32 %v5108, %v5138
  %5140 = vmatmul.f32.gmra.mxu0 %v5089
  %v5141 = vpop.f32.mrf.mxu0
  %v5142 = vadd.f32 %v5113, %v5141
  %5143 = vdwg.mxu0
  %5144 = vmatpush.msra.mxu0 %v5082
  %5145 = vmatpush.msra.mxu0 %v4927
  %5146 = vmatpush.msra.mxu0 %v4772
  %5147 = vmatpush.msra.mxu0 %v4617
  %5148 = vmatpush.msra.mxu0 %v4462
  %5149 = vmatpush.msra.mxu0 %v4307
  %5150 = vmatpush.msra.mxu0 %v4152
  %5151 = vmatpush.msra.mxu0 %v3997
  %5152 = vmatpush.msra.mxu0 %v3842
  %5153 = vmatpush.msra.mxu0 %v3687
  %5154 = vmatpush.msra.mxu0 %v3532
  %5155 = vmatpush.msra.mxu0 %v3377
  %5156 = vmatpush.msra.mxu0 %v3222
  %5157 = vmatpush.msra.mxu0 %v3067
  %5158 = vmatpush.msra.mxu0 %v2912
  %5159 = vmatpush.msra.mxu0 %v2757
  %5160 = vmatmul.f32.gmra.mxu0 %v5084
  %v5161 = vpop.f32.mrf.mxu0
  %v5162 = vadd.f32 %v5133, %v5161
  %5163 = vmatmul.f32.gmra.mxu0 %v5086
  %v5164 = vpop.f32.mrf.mxu0
  %v5165 = vadd.f32 %v5136, %v5164
  %5166 = vmatmul.f32.gmra.mxu0 %v5088
  %v5167 = vpop.f32.mrf.mxu0
  %v5168 = vadd.f32 %v5139, %v5167
  %5169 = vmatmul.f32.gmra.mxu0 %v5090
  %v5170 = vpop.f32.mrf.mxu0
  %v5171 = vadd.f32 %v5142, %v5170
  %5172 = vdwg.mxu0
  %v5173 = vxor.u32 %v5162, 2147483648
  %v5174 = vxor.u32 %v5165, 2147483648
  %v5175 = vxor.u32 %v5168, 2147483648
  %v5176 = vxor.u32 %v5171, 2147483648
  %v5177 = vmul.f32 %v5173, 1.442695
  %v5178 = vpow.pop %v5177
  %v5179 = vmul.f32 %v5174, 1.442695
  %v5180 = vpow.pop %v5179
  %v5181 = vmul.f32 %v5175, 1.442695
  %v5182 = vpow.pop %v5181
  %v5183 = vmul.f32 %v5176, 1.442695
  %v5184 = vpow.pop %v5183
  %v5185 = vadd.f32 %v5178, 1.0
  %v5186 = vadd.f32 %v5180, 1.0
  %v5187 = vadd.f32 %v5182, 1.0
  %v5188 = vadd.f32 %v5184, 1.0
  %v5189 = vrcp.pop %v5185
  %v5190 = vmul.f32 %v5185, %v5189
  %v5191 = vsub.f32 1.0, %v5190
  %v5192 = vmul.f32 %v5189, %v5191
  %v5193 = vadd.f32 %v5189, %v5192
  %vm5194 = vweird.f32 %v5185
  %vm5195 = vweird.f32 %v5189
  %vm5196 = vmor %vm5194, %vm5195
  %v5197 = vsel %vm5196, %v5189, %v5193
  %v5198 = vand.u32 2147483647, %v5185
  %vm5199 = vcmp.eq.f32.partialorder %v5198, 8.507059e+37
  %v5200 = vand.u32 %v5185, 2147483648
  %v5201 = vor.u32 1.1754944e-38, %v5200
  %v5202 = vsel %vm5199, %v5201, %v5197
  %v5203 = vmul.f32 1.0, %v5202
  %v5204 = vrcp.pop %v5186
  %v5205 = vmul.f32 %v5186, %v5204
  %v5206 = vsub.f32 1.0, %v5205
  %v5207 = vmul.f32 %v5204, %v5206
  %v5208 = vadd.f32 %v5204, %v5207
  %vm5209 = vweird.f32 %v5186
  %vm5210 = vweird.f32 %v5204
  %vm5211 = vmor %vm5209, %vm5210
  %v5212 = vsel %vm5211, %v5204, %v5208
  %v5213 = vand.u32 2147483647, %v5186
  %vm5214 = vcmp.eq.f32.partialorder %v5213, 8.507059e+37
  %v5215 = vand.u32 %v5186, 2147483648
  %v5216 = vor.u32 1.1754944e-38, %v5215
  %v5217 = vsel %vm5214, %v5216, %v5212
  %v5218 = vmul.f32 1.0, %v5217
  %v5219 = vrcp.pop %v5187
  %v5220 = vmul.f32 %v5187, %v5219
  %v5221 = vsub.f32 1.0, %v5220
  %v5222 = vmul.f32 %v5219, %v5221
  %v5223 = vadd.f32 %v5219, %v5222
  %vm5224 = vweird.f32 %v5187
  %vm5225 = vweird.f32 %v5219
  %vm5226 = vmor %vm5224, %vm5225
  %v5227 = vsel %vm5226, %v5219, %v5223
  %v5228 = vand.u32 2147483647, %v5187
  %vm5229 = vcmp.eq.f32.partialorder %v5228, 8.507059e+37
  %v5230 = vand.u32 %v5187, 2147483648
  %v5231 = vor.u32 1.1754944e-38, %v5230
  %v5232 = vsel %vm5229, %v5231, %v5227
  %v5233 = vmul.f32 1.0, %v5232
  %v5234 = vrcp.pop %v5188
  %v5235 = vmul.f32 %v5188, %v5234
  %v5236 = vsub.f32 1.0, %v5235
  %v5237 = vmul.f32 %v5234, %v5236
  %v5238 = vadd.f32 %v5234, %v5237
  %vm5239 = vweird.f32 %v5188
  %vm5240 = vweird.f32 %v5234
  %vm5241 = vmor %vm5239, %vm5240
  %v5242 = vsel %vm5241, %v5234, %v5238
  %v5243 = vand.u32 2147483647, %v5188
  %vm5244 = vcmp.eq.f32.partialorder %v5243, 8.507059e+37
  %v5245 = vand.u32 %v5188, 2147483648
  %v5246 = vor.u32 1.1754944e-38, %v5245
  %v5247 = vsel %vm5244, %v5246, %v5242
  %v5248 = vmul.f32 1.0, %v5247
  %v5249 = vmul.f32 %v5162, %v5203
  %v5250 = vmul.f32 %v5165, %v5218
  %v5251 = vmul.f32 %v5168, %v5233
  %v5252 = vmul.f32 %v5171, %v5248
  %v5253 = vld [vmem:[%s4] sm:$0xff]
  %v5254 = vld [vmem:[%s4 + $0x8] sm:$0xff]
  %v5255 = vld [vmem:[%s4 + $0x10] sm:$0xff]
  %v5256 = vld [vmem:[%s4 + $0x18] sm:$0xff]
  %v5257 = vld [vmem:[%s5] sm:$0x1]
  %v5259 = vperm.slane %v5257, 0
  %5261 = vxpose.xlu0.b32.start [1/16] %v5249, 128
  %5262 = vxpose.xlu0.b32.cont [2/16] %v5250, 128
  %5263 = vxpose.xlu0.b32.cont [3/16] %v5251, 128
  %5264 = vxpose.xlu0.b32.cont [4/16] %v5252, 128
  %5265 = vxpose.xlu0.b32.cont [5/16] 0.0, 128
  %5266 = vxpose.xlu0.b32.cont [6/16] 0.0, 128
  %5267 = vxpose.xlu0.b32.cont [7/16] 0.0, 128
  %5268 = vxpose.xlu0.b32.cont [8/16] 0.0, 128
  %5269 = vxpose.xlu0.b32.cont [9/16] 0.0, 128
  %5270 = vxpose.xlu0.b32.cont [10/16] 0.0, 128
  %5271 = vxpose.xlu0.b32.cont [11/16] 0.0, 128
  %5272 = vxpose.xlu0.b32.cont [12/16] 0.0, 128
  %5273 = vxpose.xlu0.b32.cont [13/16] 0.0, 128
  %5274 = vxpose.xlu0.b32.cont [14/16] 0.0, 128
  %5275 = vxpose.xlu0.b32.cont [15/16] 0.0, 128
  %5276 = vxpose.xlu0.b32.end [16/16] 0.0, 128
  %v5277 = vpop.trf.xlu0
  %v5278 = vpop.trf.xlu0
  %v5279 = vpop.trf.xlu0
  %v5280 = vpop.trf.xlu0
  %v5281 = vpop.trf.xlu0
  %v5282 = vpop.trf.xlu0
  %v5283 = vpop.trf.xlu0
  %v5284 = vpop.trf.xlu0
  %v5285 = vpop.trf.xlu0
  %v5286 = vpop.trf.xlu0
  %v5287 = vpop.trf.xlu0
  %v5288 = vpop.trf.xlu0
  %v5289 = vpop.trf.xlu0
  %v5290 = vpop.trf.xlu0
  %v5291 = vpop.trf.xlu0
  %v5292 = vpop.trf.xlu0
  %vm5293 = vcmask 261120
  %v5295 = vsel %vm5293, %v5277, 0
  %v5298 = vsel %vm5293, %v5278, 0
  %v5301 = vsel %vm5293, %v5279, 0
  %v5304 = vsel %vm5293, %v5280, 0
  %v5307 = vsel %vm5293, %v5281, 0
  %v5310 = vsel %vm5293, %v5282, 0
  %v5313 = vsel %vm5293, %v5283, 0
  %v5316 = vsel %vm5293, %v5284, 0
  %v5319 = vsel %vm5293, %v5285, 0
  %v5322 = vsel %vm5293, %v5286, 0
  %v5325 = vsel %vm5293, %v5287, 0
  %v5328 = vsel %vm5293, %v5288, 0
  %v5331 = vsel %vm5293, %v5289, 0
  %v5334 = vsel %vm5293, %v5290, 0
  %v5337 = vsel %vm5293, %v5291, 0
  %v5340 = vsel %vm5293, %v5292, 0
  %5342 = vmatpush.msra.mxu0 0.0
  %5343 = vmatpush.msra.mxu0 0.0
  %5344 = vmatpush.msra.mxu0 0.0
  %5345 = vmatpush.msra.mxu0 0.0
  %5346 = vmatpush.msra.mxu0 0.0
  %5347 = vmatpush.msra.mxu0 0.0
  %5348 = vmatpush.msra.mxu0 0.0
  %5349 = vmatpush.msra.mxu0 0.0
  %5350 = vmatpush.msra.mxu0 0.0
  %5351 = vmatpush.msra.mxu0 0.0
  %5352 = vmatpush.msra.mxu0 0.0
  %5353 = vmatpush.msra.mxu0 0.0
  %5354 = vmatpush.msra.mxu0 %v5256
  %5355 = vmatpush.msra.mxu0 %v5255
  %5356 = vmatpush.msra.mxu0 %v5254
  %5357 = vmatpush.msra.mxu0 %v5253
  %5358 = vmatmul.f32.gmra.mxu0 %v5295
  %v5359 = vpop.f32.mrf.mxu0
  %v5360 = vadd.f32 %v5259, %v5359
  %5361 = vmatmul.f32.gmra.mxu0 %v5298
  %v5362 = vpop.f32.mrf.mxu0
  %v5363 = vadd.f32 %v5259, %v5362
  %5364 = vmatmul.f32.gmra.mxu0 %v5301
  %v5365 = vpop.f32.mrf.mxu0
  %v5366 = vadd.f32 %v5259, %v5365
  %5367 = vmatmul.f32.gmra.mxu0 %v5304
  %v5368 = vpop.f32.mrf.mxu0
  %v5369 = vadd.f32 %v5259, %v5368
  %5370 = vmatmul.f32.gmra.mxu0 %v5307
  %v5371 = vpop.f32.mrf.mxu0
  %v5372 = vadd.f32 %v5259, %v5371
  %5373 = vmatmul.f32.gmra.mxu0 %v5310
  %v5374 = vpop.f32.mrf.mxu0
  %v5375 = vadd.f32 %v5259, %v5374
  %5376 = vmatmul.f32.gmra.mxu0 %v5313
  %v5377 = vpop.f32.mrf.mxu0
  %v5378 = vadd.f32 %v5259, %v5377
  %5379 = vmatmul.f32.gmra.mxu0 %v5316
  %v5380 = vpop.f32.mrf.mxu0
  %v5381 = vadd.f32 %v5259, %v5380
  %5382 = vmatmul.f32.gmra.mxu0 %v5319
  %v5383 = vpop.f32.mrf.mxu0
  %v5384 = vadd.f32 %v5259, %v5383
  %5385 = vmatmul.f32.gmra.mxu0 %v5322
  %v5386 = vpop.f32.mrf.mxu0
  %v5387 = vadd.f32 %v5259, %v5386
  %5388 = vmatmul.f32.gmra.mxu0 %v5325
  %v5389 = vpop.f32.mrf.mxu0
  %v5390 = vadd.f32 %v5259, %v5389
  %5391 = vmatmul.f32.gmra.mxu0 %v5328
  %v5392 = vpop.f32.mrf.mxu0
  %v5393 = vadd.f32 %v5259, %v5392
  %5394 = vmatmul.f32.gmra.mxu0 %v5331
  %v5395 = vpop.f32.mrf.mxu0
  %v5396 = vadd.f32 %v5259, %v5395
  %5397 = vmatmul.f32.gmra.mxu0 %v5334
  %v5398 = vpop.f32.mrf.mxu0
  %v5399 = vadd.f32 %v5259, %v5398
  %5400 = vmatmul.f32.gmra.mxu0 %v5337
  %v5401 = vpop.f32.mrf.mxu0
  %v5402 = vadd.f32 %v5259, %v5401
  %5403 = vmatmul.f32.gmra.mxu0 %v5340
  %v5404 = vpop.f32.mrf.mxu0
  %v5405 = vadd.f32 %v5259, %v5404
  %5406 = vdwg.mxu0
  %5407 = vst.msk [vmem:[%s6] sm:$0xff] %vm5293, %v5360
  %5408 = vst.msk [vmem:[%s6 + $0x8] sm:$0xff] %vm5293, %v5363
  %5409 = vst.msk [vmem:[%s6 + $0x10] sm:$0xff] %vm5293, %v5366
  %5410 = vst.msk [vmem:[%s6 + $0x18] sm:$0xff] %vm5293, %v5369
  %5411 = vst.msk [vmem:[%s6 + $0x20] sm:$0xff] %vm5293, %v5372
  %5412 = vst.msk [vmem:[%s6 + $0x28] sm:$0xff] %vm5293, %v5375
  %5413 = vst.msk [vmem:[%s6 + $0x30] sm:$0xff] %vm5293, %v5378
  %5414 = vst.msk [vmem:[%s6 + $0x38] sm:$0xff] %vm5293, %v5381
  %5415 = vst.msk [vmem:[%s6 + $0x40] sm:$0xff] %vm5293, %v5384
  %5416 = vst.msk [vmem:[%s6 + $0x48] sm:$0xff] %vm5293, %v5387
  %5417 = vst.msk [vmem:[%s6 + $0x50] sm:$0xff] %vm5293, %v5390
  %5418 = vst.msk [vmem:[%s6 + $0x58] sm:$0xff] %vm5293, %v5393
  %5419 = vst.msk [vmem:[%s6 + $0x60] sm:$0xff] %vm5293, %v5396
  %5420 = vst.msk [vmem:[%s6 + $0x68] sm:$0xff] %vm5293, %v5399
  %5421 = vst.msk [vmem:[%s6 + $0x70] sm:$0xff] %vm5293, %v5402
  %5422 = vst.msk [vmem:[%s6 + $0x78] sm:$0xff] %vm5293, %v5405
  // Predicated region
  $region26: #{tpu_custom_call.1} parent=0 // pred_check
    _
  $region27: #{tpu_custom_call.1} parent=0 // pred_check_branch
    %5424 = sbr.rel (0) target = $region29
  $region28: #{tpu_custom_call.1} parent=0 // pred_region
    _
  $region29: #{tpu_custom_call.1} parent=0 // pred_fallthru
    _
  // Predicated region
  $region30: #{tpu_custom_call.1} parent=0 // pred_check
    _
  $region31: #{tpu_custom_call.1} parent=0 // pred_check_branch
    %5426 = sbr.rel (0) target = $region33
  $region32: #{tpu_custom_call.1} parent=0 // pred_region
    _
  $region33: #{tpu_custom_call.1} parent=0 // pred_fallthru
    _

</llo_original>
